<compile_context>
chip_gen: v6e
topology: v6e:2x2x1
jax: 0.10.0
libtpu: 0.0.40
codegen_flags: <defaults>
</compile_context>

<pallas_src>
import jax
import jax.numpy as jnp
from jax import lax
from jax.experimental import pallas as pl
from jax.experimental.pallas import tpu as pltpu


def _fused_banded_weights(w_hwio, W, dtype=jnp.bfloat16):
    """Fold the 3 width taps of a 3x3 'SAME' conv into block-banded matrices and
    concatenate the 3 height taps along N.

    w_hwio: (3, 3, Cin, Cout) f32.  Returns (W*C, 3*W*C) such that for a
    flattened image row `in_row` (length W*C) and height tap ki,
        (in_row @ out[:, ki*WC:(ki+1)*WC])[j*C + co]
          = sum_{kj, ci} in_row[(j+kj-1)*C + ci] * w[ki, kj, ci, co]
    with taps falling outside [0, W) dropped (== zero width padding).
    """
    C = w_hwio.shape[-1]
    WC = W * C
    eye_w = jnp.eye(W, dtype=jnp.float32)
    mats = []
    for ki in range(3):
        m = jnp.zeros((WC + 2 * C, WC), jnp.float32)
        for kj in range(3):
            blk = jnp.kron(eye_w, w_hwio[ki, kj].astype(jnp.float32))  # (WC, WC)
            m = m.at[kj * C: kj * C + WC, :].add(blk)
        mats.append(m[C: C + WC, :])           # crop the width-padding rows
    return jnp.concatenate(mats, axis=1).astype(dtype)   # (WC, 3*WC)


def pack_resblock_params(w1, w2, scale1, bias1, scale2, bias2, W):
    """Fold BN scale into the conv weights (then bf16), tile biases to (1, W*C)."""
    C = w1.shape[-1]
    w1s = w1.astype(jnp.float32) * scale1.reshape(1, 1, 1, C)
    w2s = w2.astype(jnp.float32) * scale2.reshape(1, 1, 1, C)
    return dict(
        w1m=_fused_banded_weights(w1s, W),                       # (WC, 3*WC) bf16
        w2m=_fused_banded_weights(w2s, W),                       # (WC, 3*WC) bf16
        b1t=jnp.tile(bias1.astype(jnp.float32), W).reshape(1, W * C),
        b2t=jnp.tile(bias2.astype(jnp.float32), W).reshape(1, W * C),
    )


def resblock_rows(x_rows, mask_rows, w1m, w2m, b1t, b2t, B, H, W, C):
    """x_rows: (B*(H+2), W*C) f32 with per-image top/bottom rows zeroed.
    mask_rows: (B*(H+2), 1) f32, 1.0 on interior rows, 0.0 on border rows."""
    R = B * (H + 2)
    WC = W * C
    WC3 = 3 * WC

    def kernel(x_ref, m_ref, w1_ref, w2_ref, b1_ref, b2_ref, o_ref):
        x = x_ref[...]                              # (R, WC)  f32
        mask = m_ref[...]                           # (R, 1)   f32
        zero_row = jnp.zeros((1, WC), jnp.float32)

        def conv_bn_relu(lhs_f32, w_ref, b_ref):
            # One MXU matmul: (R, WC)bf16 x (WC, 3*WC)bf16 -> (R, 3*WC)f32.
            y = jnp.dot(lhs_f32.astype(jnp.bfloat16), w_ref[...],
                        preferred_element_type=jnp.float32)
            # Row-shifted VPU combine of the 3 height-tap slabs:
            #   acc[g] = Y0[g-1] + Y1[g] + Y2[g+1]   (borders are masked later)
            acc = (y[:, WC:2 * WC]
                   + jnp.concatenate([zero_row, y[:-1, 0:WC]], axis=0)
                   + jnp.concatenate([y[1:, 2 * WC:WC3], zero_row], axis=0))
            return jnp.maximum(acc + b_ref[...], 0.0)

        # conv1 + folded BN1 + ReLU; border rows forced to 0 (height padding).
        h1 = mask * conv_bn_relu(x, w1_ref, b1_ref)          # (R, WC)
        # conv2 + folded BN2 + ReLU directly from registers (no scratch).
        h2 = conv_bn_relu(h1, w2_ref, b2_ref)                 # (R, WC)
        # Residual add; border rows zeroed (they are discarded by the wrapper).
        o_ref[...] = x + mask * h2

    grid_spec = pltpu.PrefetchScalarGridSpec(
        num_scalar_prefetch=0,
        grid=(1,),                                   # whole batch folded into M
        in_specs=[
            pl.BlockSpec((R, WC), lambda i: (0, 0)),      # x rows (f32)
            pl.BlockSpec((R, 1), lambda i: (0, 0)),       # interior-row mask
            pl.BlockSpec((WC, WC3), lambda i: (0, 0)),    # fused banded w1 (bf16)
            pl.BlockSpec((WC, WC3), lambda i: (0, 0)),    # fused banded w2 (bf16)
            pl.BlockSpec((1, WC), lambda i: (0, 0)),      # bias1 (tiled, f32)
            pl.BlockSpec((1, WC), lambda i: (0, 0)),      # bias2 (tiled, f32)
        ],
        out_specs=pl.BlockSpec((R, WC), lambda i: (0, 0)),
    )

    return pl.pallas_call(
        kernel,
        out_shape=jax.ShapeDtypeStruct((R, WC), jnp.float32),
        grid_spec=grid_spec,
        compiler_params=pltpu.CompilerParams(
            dimension_semantics=("arbitrary",),
            vmem_limit_bytes=32 * 1024 * 1024),
    )(x_rows, mask_rows, w1m, w2m, b1t, b2t)


def resblock_nchw(x_nchw, params):
    """PyTorch-facing entry: NCHW in / NCHW out."""
    B, C, H, W = x_nchw.shape
    WC = W * C
    x_nhwc = jnp.transpose(x_nchw, (0, 2, 3, 1))
    x_rows = jnp.pad(x_nhwc.reshape(B, H, WC), ((0, 0), (1, 1), (0, 0)))
    x_rows = x_rows.reshape(B * (H + 2), WC)

    row_in_img = jnp.arange(B * (H + 2), dtype=jnp.int32) % (H + 2)
    interior = jnp.logical_and(row_in_img >= 1, row_in_img <= H)
    mask_rows = interior.astype(jnp.float32).reshape(B * (H + 2), 1)

    y = resblock_rows(x_rows, mask_rows, params["w1m"], params["w2m"],
                      params["b1t"], params["b2t"], B, H, W, C)
    y = y.reshape(B, H + 2, W, C)[:, 1:H + 1]
    return jnp.transpose(y, (0, 3, 1, 2))


# ----------------------------- references -----------------------------------

def ref_resblock_f32_nhwc(x, w1, w2, s1, b1, s2, b2):
    """True eval-mode ResBlock semantics, full f32."""
    dn = ("NHWC", "HWIO", "NHWC")
    y = lax.conv_general_dilated(x, w1, (1, 1), "SAME", dimension_numbers=dn,
                                 precision=lax.Precision.HIGHEST)
    y = jnp.maximum(y * s1.reshape(1, 1, 1, -1) + b1.reshape(1, 1, 1, -1), 0.0)
    y = lax.conv_general_dilated(y, w2, (1, 1), "SAME", dimension_numbers=dn,
                                 precision=lax.Precision.HIGHEST)
    y = jnp.maximum(y * s2.reshape(1, 1, 1, -1) + b2.reshape(1, 1, 1, -1), 0.0)
    return x + y


def ref_resblock_quant_nhwc(x, w1s, w2s, b1, b2):
    """Mirrors the kernel numerics: bf16-rounded weights & matmul LHS, f32 accum."""
    dn = ("NHWC", "HWIO", "NHWC")
    q = lambda a: a.astype(jnp.bfloat16).astype(jnp.float32)
    y = lax.conv_general_dilated(q(x), q(w1s), (1, 1), "SAME",
                                 dimension_numbers=dn,
                                 precision=lax.Precision.HIGHEST)
    y = jnp.maximum(y + b1.reshape(1, 1, 1, -1), 0.0)
    y = lax.conv_general_dilated(q(y), q(w2s), (1, 1), "SAME",
                                 dimension_numbers=dn,
                                 precision=lax.Precision.HIGHEST)
    y = jnp.maximum(y + b2.reshape(1, 1, 1, -1), 0.0)
    return x + y


if __name__ == "__main__":
    B, C, H, W = 2, 32, 16, 16  # ResBlock(nf=32) on a 2x32x16x16 NCHW input

    key = jax.random.PRNGKey(0)
    kx, kw1, kw2, kg1, kb1, km1, kv1, kg2, kb2, km2, kv2 = jax.random.split(key, 11)

    x_nchw = jax.random.normal(kx, (B, C, H, W), jnp.float32)

    # Conv weights stored as HWIO (3, 3, Cin, Cout); same op as PyTorch's OIHW.
    w1 = jax.random.normal(kw1, (3, 3, C, C), jnp.float32) * 0.1
    w2 = jax.random.normal(kw2, (3, 3, C, C), jnp.float32) * 0.1

    # BatchNorm (eval mode) folded into per-channel scale/bias.
    eps = 1e-5
    gamma1 = 1.0 + 0.1 * jax.random.normal(kg1, (C,), jnp.float32)
    beta1 = 0.1 * jax.random.normal(kb1, (C,), jnp.float32)
    mean1 = 0.1 * jax.random.normal(km1, (C,), jnp.float32)
    var1 = 0.5 + jnp.abs(jax.random.normal(kv1, (C,), jnp.float32))
    gamma2 = 1.0 + 0.1 * jax.random.normal(kg2, (C,), jnp.float32)
    beta2 = 0.1 * jax.random.normal(kb2, (C,), jnp.float32)
    mean2 = 0.1 * jax.random.normal(km2, (C,), jnp.float32)
    var2 = 0.5 + jnp.abs(jax.random.normal(kv2, (C,), jnp.float32))

    scale1 = gamma1 / jnp.sqrt(var1 + eps)
    bias1 = beta1 - mean1 * scale1
    scale2 = gamma2 / jnp.sqrt(var2 + eps)
    bias2 = beta2 - mean2 * scale2

    params = pack_resblock_params(w1, w2, scale1, bias1, scale2, bias2, W)
    params = jax.tree_util.tree_map(jax.block_until_ready, params)

    fwd = jax.jit(resblock_nchw)
    out = jax.block_until_ready(fwd(x_nchw, params))
    assert out.shape == (B, C, H, W)

    x_nhwc = jnp.transpose(x_nchw, (0, 2, 3, 1))

    # Tight structural check: reference mirrors the kernel's bf16 quantization
    # (scaled weights + matmul LHS rounded to bf16, f32 accumulation); remaining
    # differences are accumulation order + occasional bf16 rounding-boundary
    # flips of the intermediate, well inside 2e-2.
    w1s = w1 * scale1.reshape(1, 1, 1, C)
    w2s = w2 * scale2.reshape(1, 1, 1, C)
    ref_q = jnp.transpose(
        ref_resblock_quant_nhwc(x_nhwc, w1s, w2s, bias1, bias2), (0, 3, 1, 2))
    assert jnp.allclose(out, ref_q, atol=2e-2, rtol=2e-2), "mismatch vs bf16-mirrored reference"

    # Semantics check against the true f32 module (tolerance is the bf16-weight
    # / bf16-LHS quantization envelope, ~0.5% of the conv-branch magnitude).
    ref_f = jnp.transpose(
        ref_resblock_f32_nhwc(x_nhwc, w1, w2, scale1, bias1, scale2, bias2),
        (0, 3, 1, 2))
    assert jnp.allclose(out, ref_f, atol=1e-1, rtol=2e-2), "mismatch vs f32 reference"

    print("KERNEL_OK")
</pallas_src>

<mosaic_0001>
module attributes {stable_mosaic.version = 11 : i64} {
  func.func @kernel(%arg0: i32, %arg1: memref<36x512xf32, #tpu.memory_space<vmem>>, %arg2: memref<36x1xf32, #tpu.memory_space<vmem>>, %arg3: memref<512x1536xbf16, #tpu.memory_space<vmem>>, %arg4: memref<512x1536xbf16, #tpu.memory_space<vmem>>, %arg5: memref<1x512xf32, #tpu.memory_space<vmem>>, %arg6: memref<1x512xf32, #tpu.memory_space<vmem>>, %arg7: memref<36x512xf32, #tpu.memory_space<vmem>>) attributes {dimension_semantics = [#tpu.dimension_semantics<arbitrary>], iteration_bounds = array<i64: 1>, scalar_prefetch = 0 : i64, scratch_operands = 0 : i64, tpu.core_type = #tpu.core_type<tc>, window_params = [{pipeline_mode = #tpu.pipeline_mode<synchronous>, transform_indices = @transform_0, window_bounds = array<i64: 36, 512>}, {pipeline_mode = #tpu.pipeline_mode<synchronous>, transform_indices = @transform_1, window_bounds = array<i64: 36, 1>}, {pipeline_mode = #tpu.pipeline_mode<synchronous>, transform_indices = @transform_2, window_bounds = array<i64: 512, 1536>}, {pipeline_mode = #tpu.pipeline_mode<synchronous>, transform_indices = @transform_3, window_bounds = array<i64: 512, 1536>}, {pipeline_mode = #tpu.pipeline_mode<synchronous>, transform_indices = @transform_4, window_bounds = array<i64: 1, 512>}, {pipeline_mode = #tpu.pipeline_mode<synchronous>, transform_indices = @transform_5, window_bounds = array<i64: 1, 512>}, {pipeline_mode = #tpu.pipeline_mode<synchronous>, transform_indices = @transform_6, window_bounds = array<i64: 36, 512>}]} {
    %c0 = arith.constant 0 : index
    %c0_0 = arith.constant 0 : index
    %0 = vector.load %arg1[%c0, %c0_0] : memref<36x512xf32, #tpu.memory_space<vmem>>, vector<36x512xf32>
    %c0_1 = arith.constant 0 : index
    %c0_2 = arith.constant 0 : index
    %1 = vector.load %arg2[%c0_1, %c0_2] : memref<36x1xf32, #tpu.memory_space<vmem>>, vector<36x1xf32>
    %cst = arith.constant 0.000000e+00 : f32
    %2 = vector.broadcast %cst : f32 to vector<1x512xf32>
    %3 = arith.truncf %0 : vector<36x512xf32> to vector<36x512xbf16>
    %c0_3 = arith.constant 0 : index
    %c0_4 = arith.constant 0 : index
    %4 = vector.load %arg3[%c0_3, %c0_4] : memref<512x1536xbf16, #tpu.memory_space<vmem>>, vector<512x1536xbf16>
    %cst_5 = arith.constant dense<0.000000e+00> : vector<36x1536xf32>
    %5 = tpu.matmul %3, %4, %cst_5 {dimension_numbers = #tpu.dot_dimension_numbers<[1], [0], [0], [1], [0, 0, 1, 1], [], []>} : vector<36x512xbf16>, vector<512x1536xbf16>, vector<36x1536xf32> -> vector<36x1536xf32>
    %6 = vector.extract_strided_slice %5 {offsets = [0, 512], sizes = [36, 512], strides = [1, 1]} : vector<36x1536xf32> to vector<36x512xf32>
    %7 = vector.extract_strided_slice %5 {offsets = [0, 0], sizes = [35, 512], strides = [1, 1]} : vector<36x1536xf32> to vector<35x512xf32>
    %8 = tpu.concatenate %2, %7 in 0 : vector<1x512xf32>, vector<35x512xf32> -> vector<36x512xf32>
    %9 = arith.addf %6, %8 : vector<36x512xf32>
    %10 = vector.extract_strided_slice %5 {offsets = [1, 1024], sizes = [35, 512], strides = [1, 1]} : vector<36x1536xf32> to vector<35x512xf32>
    %11 = tpu.concatenate %10, %2 in 0 : vector<35x512xf32>, vector<1x512xf32> -> vector<36x512xf32>
    %12 = arith.addf %9, %11 : vector<36x512xf32>
    %c0_6 = arith.constant 0 : index
    %c0_7 = arith.constant 0 : index
    %13 = vector.load %arg5[%c0_6, %c0_7] : memref<1x512xf32, #tpu.memory_space<vmem>>, vector<1x512xf32>
    %14 = vector.broadcast %13 : vector<1x512xf32> to vector<36x512xf32>
    %15 = arith.addf %12, %14 : vector<36x512xf32>
    %cst_8 = arith.constant 0.000000e+00 : f32
    %16 = vector.broadcast %cst_8 : f32 to vector<36x512xf32>
    %17 = arith.maximumf %15, %16 : vector<36x512xf32>
    %18 = vector.broadcast %1 : vector<36x1xf32> to vector<36x512xf32>
    %19 = arith.mulf %18, %17 : vector<36x512xf32>
    %20 = arith.truncf %19 : vector<36x512xf32> to vector<36x512xbf16>
    %c0_9 = arith.constant 0 : index
    %c0_10 = arith.constant 0 : index
    %21 = vector.load %arg4[%c0_9, %c0_10] : memref<512x1536xbf16, #tpu.memory_space<vmem>>, vector<512x1536xbf16>
    %cst_11 = arith.constant dense<0.000000e+00> : vector<36x1536xf32>
    %22 = tpu.matmul %20, %21, %cst_11 {dimension_numbers = #tpu.dot_dimension_numbers<[1], [0], [0], [1], [0, 0, 1, 1], [], []>} : vector<36x512xbf16>, vector<512x1536xbf16>, vector<36x1536xf32> -> vector<36x1536xf32>
    %23 = vector.extract_strided_slice %22 {offsets = [0, 512], sizes = [36, 512], strides = [1, 1]} : vector<36x1536xf32> to vector<36x512xf32>
    %24 = vector.extract_strided_slice %22 {offsets = [0, 0], sizes = [35, 512], strides = [1, 1]} : vector<36x1536xf32> to vector<35x512xf32>
    %25 = tpu.concatenate %2, %24 in 0 : vector<1x512xf32>, vector<35x512xf32> -> vector<36x512xf32>
    %26 = arith.addf %23, %25 : vector<36x512xf32>
    %27 = vector.extract_strided_slice %22 {offsets = [1, 1024], sizes = [35, 512], strides = [1, 1]} : vector<36x1536xf32> to vector<35x512xf32>
    %28 = tpu.concatenate %27, %2 in 0 : vector<35x512xf32>, vector<1x512xf32> -> vector<36x512xf32>
    %29 = arith.addf %26, %28 : vector<36x512xf32>
    %c0_12 = arith.constant 0 : index
    %c0_13 = arith.constant 0 : index
    %30 = vector.load %arg6[%c0_12, %c0_13] : memref<1x512xf32, #tpu.memory_space<vmem>>, vector<1x512xf32>
    %31 = vector.broadcast %30 : vector<1x512xf32> to vector<36x512xf32>
    %32 = arith.addf %29, %31 : vector<36x512xf32>
    %cst_14 = arith.constant 0.000000e+00 : f32
    %33 = vector.broadcast %cst_14 : f32 to vector<36x512xf32>
    %34 = arith.maximumf %32, %33 : vector<36x512xf32>
    %35 = vector.broadcast %1 : vector<36x1xf32> to vector<36x512xf32>
    %36 = arith.mulf %35, %34 : vector<36x512xf32>
    %37 = arith.addf %0, %36 : vector<36x512xf32>
    %c0_15 = arith.constant 0 : index
    %c0_16 = arith.constant 0 : index
    %38 = vector.load %arg7[%c0_15, %c0_16] : memref<36x512xf32, #tpu.memory_space<vmem>>, vector<36x512xf32>
    tpu.vector_store %arg7[%c0_15, %c0_16], %37 {strides = array<i32>} : memref<36x512xf32, #tpu.memory_space<vmem>>, vector<36x512xf32>,
    return
  }
  func.func @transform_0(%arg0: i32) -> (i32, i32) {
    %c0_i32 = arith.constant 0 : i32
    %c0_i32_0 = arith.constant 0 : i32
    %c0_i32_1 = arith.constant 0 : i32
    return %c0_i32, %c0_i32_0 : i32, i32
  }
  func.func @transform_1(%arg0: i32) -> (i32, i32) {
    %c0_i32 = arith.constant 0 : i32
    %c0_i32_0 = arith.constant 0 : i32
    %c0_i32_1 = arith.constant 0 : i32
    return %c0_i32, %c0_i32_0 : i32, i32
  }
  func.func @transform_2(%arg0: i32) -> (i32, i32) {
    %c0_i32 = arith.constant 0 : i32
    %c0_i32_0 = arith.constant 0 : i32
    %c0_i32_1 = arith.constant 0 : i32
    return %c0_i32, %c0_i32_0 : i32, i32
  }
  func.func @transform_3(%arg0: i32) -> (i32, i32) {
    %c0_i32 = arith.constant 0 : i32
    %c0_i32_0 = arith.constant 0 : i32
    %c0_i32_1 = arith.constant 0 : i32
    return %c0_i32, %c0_i32_0 : i32, i32
  }
  func.func @transform_4(%arg0: i32) -> (i32, i32) {
    %c0_i32 = arith.constant 0 : i32
    %c0_i32_0 = arith.constant 0 : i32
    %c0_i32_1 = arith.constant 0 : i32
    return %c0_i32, %c0_i32_0 : i32, i32
  }
  func.func @transform_5(%arg0: i32) -> (i32, i32) {
    %c0_i32 = arith.constant 0 : i32
    %c0_i32_0 = arith.constant 0 : i32
    %c0_i32_1 = arith.constant 0 : i32
    return %c0_i32, %c0_i32_0 : i32, i32
  }
  func.func @transform_6(%arg0: i32) -> (i32, i32) {
    %c0_i32 = arith.constant 0 : i32
    %c0_i32_0 = arith.constant 0 : i32
    %c0_i32_1 = arith.constant 0 : i32
    return %c0_i32, %c0_i32_0 : i32, i32
  }
}

</mosaic_0001>

<llo_original>
// kernel: resblock_nchw.1
$region0: #{resblock_nchw.1}
  #allocation0 [shape = 'u32[]', space=smem, size = 0x4, offset = 0x4, fixed_abs, tag = 'smem constant byte address 0x4 - core index']
  #allocation1 [shape = 'u32[144,128]{1,0:T(1,128)}', space=vmem, size = 0x12000, scoped, tag = 'internal scratch']
  %s0 = inlined_call_operand.vmem [shape: f32[36,512], index: 0, kind: input, shape index: {}]
  %s1 = inlined_call_operand.vmem [shape: f32[36,1], index: 1, kind: input, shape index: {}]
  %s2 = inlined_call_operand.hbm [shape: bf16[512,1536], index: 2, kind: input, shape index: {}]
  %s3 = inlined_call_operand.hbm [shape: bf16[512,1536], index: 3, kind: input, shape index: {}]
  %s4 = inlined_call_operand.hbm [shape: f32[1,512], index: 4, kind: input, shape index: {}]
  %s5 = inlined_call_operand.hbm [shape: f32[1,512], index: 5, kind: input, shape index: {}]
  %s6 = inlined_call_operand.vmem [shape: f32[36,512], index: 6, kind: output, shape index: {}]
  %s7 = sld [smem:[#allocation0]]
  $region50: #{resblock_nchw.1} parent=0
    _
  %s9 = ssub.s32 1, %s7
  %s10 = scalar_select 0, %s9, %s7
  $region1: #{resblock_nchw.1} parent=0
    #allocation2 [shape = 'u8[1572864]{0}', space=vmem, size = 0x180000, scoped, tag = 'input window, operand 2, single buffered']
    #allocation3 [shape = 's32[1]{0}', space=sflag, size = 0x4, scoped, tag = 'scoped memory for resblock_nchw.1']
    #allocation4 [shape = 'u8[1572864]{0}', space=vmem, size = 0x180000, scoped, tag = 'input window, operand 3, single buffered']
    #allocation5 [shape = 's32[1]{0}', space=sflag, size = 0x4, scoped, tag = 'scoped memory for resblock_nchw.1']
    #allocation6 [shape = 'u8[2048]{0}', space=vmem, size = 0x800, scoped, tag = 'input window, operand 4, single buffered']
    #allocation7 [shape = 'u8[2048]{0}', space=vmem, size = 0x800, scoped, tag = 'input window, operand 5, single buffered']
    #allocation8 [shape = 's32[1]{0}', space=sflag, size = 0x4, scoped, tag = 'scoped memory for resblock_nchw.1']
    %11 = vsyncpa [#allocation3], 0
    %12 = vsyncpa [#allocation5], 0
    %13 = vsyncpa [#allocation8], 0
    // Predicated region
    $region2: #{resblock_nchw.1} parent=1 // pred_check
      _
    $region3: #{resblock_nchw.1} parent=1 // pred_check_branch
      %15 = sbr.rel (0) target = $region5
    $region4: #{resblock_nchw.1} parent=1 // pred_region
      _
    $region5: #{resblock_nchw.1} parent=1 // pred_fallthru
      _
    // Predicated region
    $region6: #{resblock_nchw.1} parent=1 // pred_check
      _
    $region7: #{resblock_nchw.1} parent=1 // pred_check_branch
      %17 = sbr.rel (0) target = $region9
    $region8: #{resblock_nchw.1} parent=1 // pred_region
      _
    $region9: #{resblock_nchw.1} parent=1 // pred_fallthru
      _
    // Predicated region
    $region10: #{resblock_nchw.1} parent=1 // pred_check
      _
    $region11: #{resblock_nchw.1} parent=1 // pred_check_branch
      %19 = sbr.rel (0) target = $region13
    $region12: #{resblock_nchw.1} parent=1 // pred_region
      %s21 = ssub.s32 49152, 49152
      %22 = vsyncadd [#allocation3], %s21
      %s23 = sshll.u32 [#allocation2], 4
      %s24 = int_to_ptr.vmem [resolvable:$true] %s23
      %29 = dma.hbm_to_vmem [thread:$0]  %s2, 49152, %s24, [#allocation3], 768, 768, 48
    $region13: #{resblock_nchw.1} parent=1 // pred_fallthru
      _
    // Predicated region
    $region14: #{resblock_nchw.1} parent=1 // pred_check
      _
    $region15: #{resblock_nchw.1} parent=1 // pred_check_branch
      %31 = sbr.rel (0) target = $region17
    $region16: #{resblock_nchw.1} parent=1 // pred_region
      %s33 = ssub.s32 49152, 49152
      %34 = vsyncadd [#allocation5], %s33
      %s35 = sshll.u32 [#allocation4], 4
      %s36 = int_to_ptr.vmem [resolvable:$true] %s35
      %41 = dma.hbm_to_vmem [thread:$0]  %s3, 49152, %s36, [#allocation5], 768, 768, 48
    $region17: #{resblock_nchw.1} parent=1 // pred_fallthru
      _
    // Predicated region
    $region18: #{resblock_nchw.1} parent=1 // pred_check
      _
    $region19: #{resblock_nchw.1} parent=1 // pred_check_branch
      %43 = sbr.rel (0) target = $region21
    $region20: #{resblock_nchw.1} parent=1 // pred_region
      %s45 = ssub.s32 64, 64
      %46 = vsyncadd [#allocation5], %s45
      %s48 = sshll.u32 [#allocation6], 4
      %s49 = int_to_ptr.vmem [resolvable:$true] %s48
      %51 = dma.hbm_to_vmem [thread:$0]  %s4, 64, %s49, [#allocation5]
    $region21: #{resblock_nchw.1} parent=1 // pred_fallthru
      _
    // Predicated region
    $region22: #{resblock_nchw.1} parent=1 // pred_check
      _
    $region23: #{resblock_nchw.1} parent=1 // pred_check_branch
      %53 = sbr.rel (0) target = $region25
    $region24: #{resblock_nchw.1} parent=1 // pred_region
      %s55 = ssub.s32 64, 64
      %56 = vsyncadd [#allocation8], %s55
      %s58 = sshll.u32 [#allocation7], 4
      %s59 = int_to_ptr.vmem [resolvable:$true] %s58
      %61 = dma.hbm_to_vmem [thread:$0]  %s5, 64, %s59, [#allocation8]
    $region25: #{resblock_nchw.1} parent=1 // pred_fallthru
      _
    // Predicated region
    $region26: #{resblock_nchw.1} parent=1 // pred_check
      _
    $region27: #{resblock_nchw.1} parent=1 // pred_check_branch
      %63 = sbr.rel (0) target = $region29
    $region28: #{resblock_nchw.1} parent=1 // pred_region
      %64 = dma.done [#allocation3], 49152
    $region29: #{resblock_nchw.1} parent=1 // pred_fallthru
      _
    // Predicated region
    $region30: #{resblock_nchw.1} parent=1 // pred_check
      _
    $region31: #{resblock_nchw.1} parent=1 // pred_check_branch
      %66 = sbr.rel (0) target = $region33
    $region32: #{resblock_nchw.1} parent=1 // pred_region
      %67 = dma.done [#allocation5], 49152
    $region33: #{resblock_nchw.1} parent=1 // pred_fallthru
      _
    // Predicated region
    $region34: #{resblock_nchw.1} parent=1 // pred_check
      _
    $region35: #{resblock_nchw.1} parent=1 // pred_check_branch
      %69 = sbr.rel (0) target = $region37
    $region36: #{resblock_nchw.1} parent=1 // pred_region
      %70 = dma.done [#allocation5], 64
    $region37: #{resblock_nchw.1} parent=1 // pred_fallthru
      _
    // Predicated region
    $region38: #{resblock_nchw.1} parent=1 // pred_check
      _
    $region39: #{resblock_nchw.1} parent=1 // pred_check_branch
      %72 = sbr.rel (0) target = $region41
    $region40: #{resblock_nchw.1} parent=1 // pred_region
      %73 = dma.done [#allocation8], 64
    $region41: #{resblock_nchw.1} parent=1 // pred_fallthru
      _
    %v74 = vld [vmem:[%s0] sm:$0xff]
    %v75 = vld [vmem:[%s0 + $0x8] sm:$0xff]
    %v76 = vld [vmem:[%s0 + $0x10] sm:$0xff]
    %v77 = vld [vmem:[%s0 + $0x18] sm:$0xff]
    %v78 = vld [vmem:[%s0 + $0x20] sm:$0xff]
    %v79 = vld [vmem:[%s0 + $0x28] sm:$0xff]
    %v80 = vld [vmem:[%s0 + $0x30] sm:$0xff]
    %v81 = vld [vmem:[%s0 + $0x38] sm:$0xff]
    %v82 = vld [vmem:[%s0 + $0x40] sm:$0xff]
    %v83 = vld [vmem:[%s0 + $0x48] sm:$0xff]
    %v84 = vld [vmem:[%s0 + $0x50] sm:$0xff]
    %v85 = vld [vmem:[%s0 + $0x58] sm:$0xff]
    %v86 = vld [vmem:[%s0 + $0x60] sm:$0xff]
    %v87 = vld [vmem:[%s0 + $0x68] sm:$0xff]
    %v88 = vld [vmem:[%s0 + $0x70] sm:$0xff]
    %v89 = vld [vmem:[%s0 + $0x78] sm:$0xff]
    %v90 = vld [vmem:[%s0 + $0x80] sm:$0xf]
    %v91 = vld [vmem:[%s0 + $0x88] sm:$0xf]
    %v92 = vld [vmem:[%s0 + $0x90] sm:$0xf]
    %v93 = vld [vmem:[%s0 + $0x98] sm:$0xf]
    %v94 = vld [vmem:[%s1] sm:$0xff]
    %v95 = vld [vmem:[%s1 + $0x8] sm:$0xff]
    %v96 = vld [vmem:[%s1 + $0x10] sm:$0xff]
    %v97 = vld [vmem:[%s1 + $0x18] sm:$0xff]
    %v98 = vld [vmem:[%s1 + $0x20] sm:$0xf]
    %v99 = vpack.c.bf16 %v78, %v74
    %v100 = vpack.c.bf16 %v79, %v75
    %v101 = vpack.c.bf16 %v80, %v76
    %v102 = vpack.c.bf16 %v81, %v77
    %v103 = vpack.c.bf16 %v86, %v82
    %v104 = vpack.c.bf16 %v87, %v83
    %v105 = vpack.c.bf16 %v88, %v84
    %v106 = vpack.c.bf16 %v89, %v85
    %v107 = vpack.c.bf16 %v90, %v90
    %v108 = vpack.c.bf16 %v91, %v91
    %v109 = vpack.c.bf16 %v92, %v92
    %v110 = vpack.c.bf16 %v93, %v93
    %v111 = vld [vmem:[#allocation2] sm:$0xff]
    %v112 = vld [vmem:[#allocation2 + $0x8] sm:$0xff]
    %v113 = vld [vmem:[#allocation2 + $0x10] sm:$0xff]
    %v114 = vld [vmem:[#allocation2 + $0x18] sm:$0xff]
    %v115 = vld [vmem:[#allocation2 + $0x20] sm:$0xff]
    %v116 = vld [vmem:[#allocation2 + $0x28] sm:$0xff]
    %v117 = vld [vmem:[#allocation2 + $0x30] sm:$0xff]
    %v118 = vld [vmem:[#allocation2 + $0x38] sm:$0xff]
    %v119 = vld [vmem:[#allocation2 + $0x40] sm:$0xff]
    %v120 = vld [vmem:[#allocation2 + $0x48] sm:$0xff]
    %v121 = vld [vmem:[#allocation2 + $0x50] sm:$0xff]
    %v122 = vld [vmem:[#allocation2 + $0x58] sm:$0xff]
    %v123 = vld [vmem:[#allocation2 + $0x60] sm:$0xff]
    %v124 = vld [vmem:[#allocation2 + $0x68] sm:$0xff]
    %v125 = vld [vmem:[#allocation2 + $0x70] sm:$0xff]
    %v126 = vld [vmem:[#allocation2 + $0x78] sm:$0xff]
    %v127 = vld [vmem:[#allocation2 + $0x80] sm:$0xff]
    %v128 = vld [vmem:[#allocation2 + $0x88] sm:$0xff]
    %v129 = vld [vmem:[#allocation2 + $0x90] sm:$0xff]
    %v130 = vld [vmem:[#allocation2 + $0x98] sm:$0xff]
    %v131 = vld [vmem:[#allocation2 + $0xa0] sm:$0xff]
    %v132 = vld [vmem:[#allocation2 + $0xa8] sm:$0xff]
    %v133 = vld [vmem:[#allocation2 + $0xb0] sm:$0xff]
    %v134 = vld [vmem:[#allocation2 + $0xb8] sm:$0xff]
    %v135 = vld [vmem:[#allocation2 + $0xc0] sm:$0xff]
    %v136 = vld [vmem:[#allocation2 + $0xc8] sm:$0xff]
    %v137 = vld [vmem:[#allocation2 + $0xd0] sm:$0xff]
    %v138 = vld [vmem:[#allocation2 + $0xd8] sm:$0xff]
    %v139 = vld [vmem:[#allocation2 + $0xe0] sm:$0xff]
    %v140 = vld [vmem:[#allocation2 + $0xe8] sm:$0xff]
    %v141 = vld [vmem:[#allocation2 + $0xf0] sm:$0xff]
    %v142 = vld [vmem:[#allocation2 + $0xf8] sm:$0xff]
    %v143 = vld [vmem:[#allocation2 + $0x100] sm:$0xff]
    %v144 = vld [vmem:[#allocation2 + $0x108] sm:$0xff]
    %v145 = vld [vmem:[#allocation2 + $0x110] sm:$0xff]
    %v146 = vld [vmem:[#allocation2 + $0x118] sm:$0xff]
    %v147 = vld [vmem:[#allocation2 + $0x120] sm:$0xff]
    %v148 = vld [vmem:[#allocation2 + $0x128] sm:$0xff]
    %v149 = vld [vmem:[#allocation2 + $0x130] sm:$0xff]
    %v150 = vld [vmem:[#allocation2 + $0x138] sm:$0xff]
    %v151 = vld [vmem:[#allocation2 + $0x140] sm:$0xff]
    %v152 = vld [vmem:[#allocation2 + $0x148] sm:$0xff]
    %v153 = vld [vmem:[#allocation2 + $0x150] sm:$0xff]
    %v154 = vld [vmem:[#allocation2 + $0x158] sm:$0xff]
    %v155 = vld [vmem:[#allocation2 + $0x160] sm:$0xff]
    %v156 = vld [vmem:[#allocation2 + $0x168] sm:$0xff]
    %v157 = vld [vmem:[#allocation2 + $0x170] sm:$0xff]
    %v158 = vld [vmem:[#allocation2 + $0x178] sm:$0xff]
    %v159 = vld [vmem:[#allocation2 + $0x180] sm:$0xff]
    %v160 = vld [vmem:[#allocation2 + $0x188] sm:$0xff]
    %v161 = vld [vmem:[#allocation2 + $0x190] sm:$0xff]
    %v162 = vld [vmem:[#allocation2 + $0x198] sm:$0xff]
    %v163 = vld [vmem:[#allocation2 + $0x1a0] sm:$0xff]
    %v164 = vld [vmem:[#allocation2 + $0x1a8] sm:$0xff]
    %v165 = vld [vmem:[#allocation2 + $0x1b0] sm:$0xff]
    %v166 = vld [vmem:[#allocation2 + $0x1b8] sm:$0xff]
    %v167 = vld [vmem:[#allocation2 + $0x1c0] sm:$0xff]
    %v168 = vld [vmem:[#allocation2 + $0x1c8] sm:$0xff]
    %v169 = vld [vmem:[#allocation2 + $0x1d0] sm:$0xff]
    %v170 = vld [vmem:[#allocation2 + $0x1d8] sm:$0xff]
    %v171 = vld [vmem:[#allocation2 + $0x1e0] sm:$0xff]
    %v172 = vld [vmem:[#allocation2 + $0x1e8] sm:$0xff]
    %v173 = vld [vmem:[#allocation2 + $0x1f0] sm:$0xff]
    %v174 = vld [vmem:[#allocation2 + $0x1f8] sm:$0xff]
    %v175 = vld [vmem:[#allocation2 + $0x200] sm:$0xff]
    %v176 = vld [vmem:[#allocation2 + $0x208] sm:$0xff]
    %v177 = vld [vmem:[#allocation2 + $0x210] sm:$0xff]
    %v178 = vld [vmem:[#allocation2 + $0x218] sm:$0xff]
    %v179 = vld [vmem:[#allocation2 + $0x220] sm:$0xff]
    %v180 = vld [vmem:[#allocation2 + $0x228] sm:$0xff]
    %v181 = vld [vmem:[#allocation2 + $0x230] sm:$0xff]
    %v182 = vld [vmem:[#allocation2 + $0x238] sm:$0xff]
    %v183 = vld [vmem:[#allocation2 + $0x240] sm:$0xff]
    %v184 = vld [vmem:[#allocation2 + $0x248] sm:$0xff]
    %v185 = vld [vmem:[#allocation2 + $0x250] sm:$0xff]
    %v186 = vld [vmem:[#allocation2 + $0x258] sm:$0xff]
    %v187 = vld [vmem:[#allocation2 + $0x260] sm:$0xff]
    %v188 = vld [vmem:[#allocation2 + $0x268] sm:$0xff]
    %v189 = vld [vmem:[#allocation2 + $0x270] sm:$0xff]
    %v190 = vld [vmem:[#allocation2 + $0x278] sm:$0xff]
    %v191 = vld [vmem:[#allocation2 + $0x280] sm:$0xff]
    %v192 = vld [vmem:[#allocation2 + $0x288] sm:$0xff]
    %v193 = vld [vmem:[#allocation2 + $0x290] sm:$0xff]
    %v194 = vld [vmem:[#allocation2 + $0x298] sm:$0xff]
    %v195 = vld [vmem:[#allocation2 + $0x2a0] sm:$0xff]
    %v196 = vld [vmem:[#allocation2 + $0x2a8] sm:$0xff]
    %v197 = vld [vmem:[#allocation2 + $0x2b0] sm:$0xff]
    %v198 = vld [vmem:[#allocation2 + $0x2b8] sm:$0xff]
    %v199 = vld [vmem:[#allocation2 + $0x2c0] sm:$0xff]
    %v200 = vld [vmem:[#allocation2 + $0x2c8] sm:$0xff]
    %v201 = vld [vmem:[#allocation2 + $0x2d0] sm:$0xff]
    %v202 = vld [vmem:[#allocation2 + $0x2d8] sm:$0xff]
    %v203 = vld [vmem:[#allocation2 + $0x2e0] sm:$0xff]
    %v204 = vld [vmem:[#allocation2 + $0x2e8] sm:$0xff]
    %v205 = vld [vmem:[#allocation2 + $0x2f0] sm:$0xff]
    %v206 = vld [vmem:[#allocation2 + $0x2f8] sm:$0xff]
    %v207 = vld [vmem:[#allocation2 + $0x300] sm:$0xff]
    %v208 = vld [vmem:[#allocation2 + $0x308] sm:$0xff]
    %v209 = vld [vmem:[#allocation2 + $0x310] sm:$0xff]
    %v210 = vld [vmem:[#allocation2 + $0x318] sm:$0xff]
    %v211 = vld [vmem:[#allocation2 + $0x320] sm:$0xff]
    %v212 = vld [vmem:[#allocation2 + $0x328] sm:$0xff]
    %v213 = vld [vmem:[#allocation2 + $0x330] sm:$0xff]
    %v214 = vld [vmem:[#allocation2 + $0x338] sm:$0xff]
    %v215 = vld [vmem:[#allocation2 + $0x340] sm:$0xff]
    %v216 = vld [vmem:[#allocation2 + $0x348] sm:$0xff]
    %v217 = vld [vmem:[#allocation2 + $0x350] sm:$0xff]
    %v218 = vld [vmem:[#allocation2 + $0x358] sm:$0xff]
    %v219 = vld [vmem:[#allocation2 + $0x360] sm:$0xff]
    %v220 = vld [vmem:[#allocation2 + $0x368] sm:$0xff]
    %v221 = vld [vmem:[#allocation2 + $0x370] sm:$0xff]
    %v222 = vld [vmem:[#allocation2 + $0x378] sm:$0xff]
    %v223 = vld [vmem:[#allocation2 + $0x380] sm:$0xff]
    %v224 = vld [vmem:[#allocation2 + $0x388] sm:$0xff]
    %v225 = vld [vmem:[#allocation2 + $0x390] sm:$0xff]
    %v226 = vld [vmem:[#allocation2 + $0x398] sm:$0xff]
    %v227 = vld [vmem:[#allocation2 + $0x3a0] sm:$0xff]
    %v228 = vld [vmem:[#allocation2 + $0x3a8] sm:$0xff]
    %v229 = vld [vmem:[#allocation2 + $0x3b0] sm:$0xff]
    %v230 = vld [vmem:[#allocation2 + $0x3b8] sm:$0xff]
    %v231 = vld [vmem:[#allocation2 + $0x3c0] sm:$0xff]
    %v232 = vld [vmem:[#allocation2 + $0x3c8] sm:$0xff]
    %v233 = vld [vmem:[#allocation2 + $0x3d0] sm:$0xff]
    %v234 = vld [vmem:[#allocation2 + $0x3d8] sm:$0xff]
    %v235 = vld [vmem:[#allocation2 + $0x3e0] sm:$0xff]
    %v236 = vld [vmem:[#allocation2 + $0x3e8] sm:$0xff]
    %v237 = vld [vmem:[#allocation2 + $0x3f0] sm:$0xff]
    %v238 = vld [vmem:[#allocation2 + $0x3f8] sm:$0xff]
    %v239 = vld [vmem:[#allocation2 + $0x400] sm:$0xff]
    %v240 = vld [vmem:[#allocation2 + $0x408] sm:$0xff]
    %v241 = vld [vmem:[#allocation2 + $0x410] sm:$0xff]
    %v242 = vld [vmem:[#allocation2 + $0x418] sm:$0xff]
    %v243 = vld [vmem:[#allocation2 + $0x420] sm:$0xff]
    %v244 = vld [vmem:[#allocation2 + $0x428] sm:$0xff]
    %v245 = vld [vmem:[#allocation2 + $0x430] sm:$0xff]
    %v246 = vld [vmem:[#allocation2 + $0x438] sm:$0xff]
    %v247 = vld [vmem:[#allocation2 + $0x440] sm:$0xff]
    %v248 = vld [vmem:[#allocation2 + $0x448] sm:$0xff]
    %v249 = vld [vmem:[#allocation2 + $0x450] sm:$0xff]
    %v250 = vld [vmem:[#allocation2 + $0x458] sm:$0xff]
    %v251 = vld [vmem:[#allocation2 + $0x460] sm:$0xff]
    %v252 = vld [vmem:[#allocation2 + $0x468] sm:$0xff]
    %v253 = vld [vmem:[#allocation2 + $0x470] sm:$0xff]
    %v254 = vld [vmem:[#allocation2 + $0x478] sm:$0xff]
    %v255 = vld [vmem:[#allocation2 + $0x480] sm:$0xff]
    %v256 = vld [vmem:[#allocation2 + $0x488] sm:$0xff]
    %v257 = vld [vmem:[#allocation2 + $0x490] sm:$0xff]
    %v258 = vld [vmem:[#allocation2 + $0x498] sm:$0xff]
    %v259 = vld [vmem:[#allocation2 + $0x4a0] sm:$0xff]
    %v260 = vld [vmem:[#allocation2 + $0x4a8] sm:$0xff]
    %v261 = vld [vmem:[#allocation2 + $0x4b0] sm:$0xff]
    %v262 = vld [vmem:[#allocation2 + $0x4b8] sm:$0xff]
    %v263 = vld [vmem:[#allocation2 + $0x4c0] sm:$0xff]
    %v264 = vld [vmem:[#allocation2 + $0x4c8] sm:$0xff]
    %v265 = vld [vmem:[#allocation2 + $0x4d0] sm:$0xff]
    %v266 = vld [vmem:[#allocation2 + $0x4d8] sm:$0xff]
    %v267 = vld [vmem:[#allocation2 + $0x4e0] sm:$0xff]
    %v268 = vld [vmem:[#allocation2 + $0x4e8] sm:$0xff]
    %v269 = vld [vmem:[#allocation2 + $0x4f0] sm:$0xff]
    %v270 = vld [vmem:[#allocation2 + $0x4f8] sm:$0xff]
    %v271 = vld [vmem:[#allocation2 + $0x500] sm:$0xff]
    %v272 = vld [vmem:[#allocation2 + $0x508] sm:$0xff]
    %v273 = vld [vmem:[#allocation2 + $0x510] sm:$0xff]
    %v274 = vld [vmem:[#allocation2 + $0x518] sm:$0xff]
    %v275 = vld [vmem:[#allocation2 + $0x520] sm:$0xff]
    %v276 = vld [vmem:[#allocation2 + $0x528] sm:$0xff]
    %v277 = vld [vmem:[#allocation2 + $0x530] sm:$0xff]
    %v278 = vld [vmem:[#allocation2 + $0x538] sm:$0xff]
    %v279 = vld [vmem:[#allocation2 + $0x540] sm:$0xff]
    %v280 = vld [vmem:[#allocation2 + $0x548] sm:$0xff]
    %v281 = vld [vmem:[#allocation2 + $0x550] sm:$0xff]
    %v282 = vld [vmem:[#allocation2 + $0x558] sm:$0xff]
    %v283 = vld [vmem:[#allocation2 + $0x560] sm:$0xff]
    %v284 = vld [vmem:[#allocation2 + $0x568] sm:$0xff]
    %v285 = vld [vmem:[#allocation2 + $0x570] sm:$0xff]
    %v286 = vld [vmem:[#allocation2 + $0x578] sm:$0xff]
    %v287 = vld [vmem:[#allocation2 + $0x580] sm:$0xff]
    %v288 = vld [vmem:[#allocation2 + $0x588] sm:$0xff]
    %v289 = vld [vmem:[#allocation2 + $0x590] sm:$0xff]
    %v290 = vld [vmem:[#allocation2 + $0x598] sm:$0xff]
    %v291 = vld [vmem:[#allocation2 + $0x5a0] sm:$0xff]
    %v292 = vld [vmem:[#allocation2 + $0x5a8] sm:$0xff]
    %v293 = vld [vmem:[#allocation2 + $0x5b0] sm:$0xff]
    %v294 = vld [vmem:[#allocation2 + $0x5b8] sm:$0xff]
    %v295 = vld [vmem:[#allocation2 + $0x5c0] sm:$0xff]
    %v296 = vld [vmem:[#allocation2 + $0x5c8] sm:$0xff]
    %v297 = vld [vmem:[#allocation2 + $0x5d0] sm:$0xff]
    %v298 = vld [vmem:[#allocation2 + $0x5d8] sm:$0xff]
    %v299 = vld [vmem:[#allocation2 + $0x5e0] sm:$0xff]
    %v300 = vld [vmem:[#allocation2 + $0x5e8] sm:$0xff]
    %v301 = vld [vmem:[#allocation2 + $0x5f0] sm:$0xff]
    %v302 = vld [vmem:[#allocation2 + $0x5f8] sm:$0xff]
    %v303 = vld [vmem:[#allocation2 + $0x600] sm:$0xff]
    %v304 = vld [vmem:[#allocation2 + $0x608] sm:$0xff]
    %v305 = vld [vmem:[#allocation2 + $0x610] sm:$0xff]
    %v306 = vld [vmem:[#allocation2 + $0x618] sm:$0xff]
    %v307 = vld [vmem:[#allocation2 + $0x620] sm:$0xff]
    %v308 = vld [vmem:[#allocation2 + $0x628] sm:$0xff]
    %v309 = vld [vmem:[#allocation2 + $0x630] sm:$0xff]
    %v310 = vld [vmem:[#allocation2 + $0x638] sm:$0xff]
    %v311 = vld [vmem:[#allocation2 + $0x640] sm:$0xff]
    %v312 = vld [vmem:[#allocation2 + $0x648] sm:$0xff]
    %v313 = vld [vmem:[#allocation2 + $0x650] sm:$0xff]
    %v314 = vld [vmem:[#allocation2 + $0x658] sm:$0xff]
    %v315 = vld [vmem:[#allocation2 + $0x660] sm:$0xff]
    %v316 = vld [vmem:[#allocation2 + $0x668] sm:$0xff]
    %v317 = vld [vmem:[#allocation2 + $0x670] sm:$0xff]
    %v318 = vld [vmem:[#allocation2 + $0x678] sm:$0xff]
    %v319 = vld [vmem:[#allocation2 + $0x680] sm:$0xff]
    %v320 = vld [vmem:[#allocation2 + $0x688] sm:$0xff]
    %v321 = vld [vmem:[#allocation2 + $0x690] sm:$0xff]
    %v322 = vld [vmem:[#allocation2 + $0x698] sm:$0xff]
    %v323 = vld [vmem:[#allocation2 + $0x6a0] sm:$0xff]
    %v324 = vld [vmem:[#allocation2 + $0x6a8] sm:$0xff]
    %v325 = vld [vmem:[#allocation2 + $0x6b0] sm:$0xff]
    %v326 = vld [vmem:[#allocation2 + $0x6b8] sm:$0xff]
    %v327 = vld [vmem:[#allocation2 + $0x6c0] sm:$0xff]
    %v328 = vld [vmem:[#allocation2 + $0x6c8] sm:$0xff]
    %v329 = vld [vmem:[#allocation2 + $0x6d0] sm:$0xff]
    %v330 = vld [vmem:[#allocation2 + $0x6d8] sm:$0xff]
    %v331 = vld [vmem:[#allocation2 + $0x6e0] sm:$0xff]
    %v332 = vld [vmem:[#allocation2 + $0x6e8] sm:$0xff]
    %v333 = vld [vmem:[#allocation2 + $0x6f0] sm:$0xff]
    %v334 = vld [vmem:[#allocation2 + $0x6f8] sm:$0xff]
    %v335 = vld [vmem:[#allocation2 + $0x700] sm:$0xff]
    %v336 = vld [vmem:[#allocation2 + $0x708] sm:$0xff]
    %v337 = vld [vmem:[#allocation2 + $0x710] sm:$0xff]
    %v338 = vld [vmem:[#allocation2 + $0x718] sm:$0xff]
    %v339 = vld [vmem:[#allocation2 + $0x720] sm:$0xff]
    %v340 = vld [vmem:[#allocation2 + $0x728] sm:$0xff]
    %v341 = vld [vmem:[#allocation2 + $0x730] sm:$0xff]
    %v342 = vld [vmem:[#allocation2 + $0x738] sm:$0xff]
    %v343 = vld [vmem:[#allocation2 + $0x740] sm:$0xff]
    %v344 = vld [vmem:[#allocation2 + $0x748] sm:$0xff]
    %v345 = vld [vmem:[#allocation2 + $0x750] sm:$0xff]
    %v346 = vld [vmem:[#allocation2 + $0x758] sm:$0xff]
    %v347 = vld [vmem:[#allocation2 + $0x760] sm:$0xff]
    %v348 = vld [vmem:[#allocation2 + $0x768] sm:$0xff]
    %v349 = vld [vmem:[#allocation2 + $0x770] sm:$0xff]
    %v350 = vld [vmem:[#allocation2 + $0x778] sm:$0xff]
    %v351 = vld [vmem:[#allocation2 + $0x780] sm:$0xff]
    %v352 = vld [vmem:[#allocation2 + $0x788] sm:$0xff]
    %v353 = vld [vmem:[#allocation2 + $0x790] sm:$0xff]
    %v354 = vld [vmem:[#allocation2 + $0x798] sm:$0xff]
    %v355 = vld [vmem:[#allocation2 + $0x7a0] sm:$0xff]
    %v356 = vld [vmem:[#allocation2 + $0x7a8] sm:$0xff]
    %v357 = vld [vmem:[#allocation2 + $0x7b0] sm:$0xff]
    %v358 = vld [vmem:[#allocation2 + $0x7b8] sm:$0xff]
    %v359 = vld [vmem:[#allocation2 + $0x7c0] sm:$0xff]
    %v360 = vld [vmem:[#allocation2 + $0x7c8] sm:$0xff]
    %v361 = vld [vmem:[#allocation2 + $0x7d0] sm:$0xff]
    %v362 = vld [vmem:[#allocation2 + $0x7d8] sm:$0xff]
    %v363 = vld [vmem:[#allocation2 + $0x7e0] sm:$0xff]
    %v364 = vld [vmem:[#allocation2 + $0x7e8] sm:$0xff]
    %v365 = vld [vmem:[#allocation2 + $0x7f0] sm:$0xff]
    %v366 = vld [vmem:[#allocation2 + $0x7f8] sm:$0xff]
    %v367 = vld [vmem:[#allocation2 + $0x800] sm:$0xff]
    %v368 = vld [vmem:[#allocation2 + $0x808] sm:$0xff]
    %v369 = vld [vmem:[#allocation2 + $0x810] sm:$0xff]
    %v370 = vld [vmem:[#allocation2 + $0x818] sm:$0xff]
    %v371 = vld [vmem:[#allocation2 + $0x820] sm:$0xff]
    %v372 = vld [vmem:[#allocation2 + $0x828] sm:$0xff]
    %v373 = vld [vmem:[#allocation2 + $0x830] sm:$0xff]
    %v374 = vld [vmem:[#allocation2 + $0x838] sm:$0xff]
    %v375 = vld [vmem:[#allocation2 + $0x840] sm:$0xff]
    %v376 = vld [vmem:[#allocation2 + $0x848] sm:$0xff]
    %v377 = vld [vmem:[#allocation2 + $0x850] sm:$0xff]
    %v378 = vld [vmem:[#allocation2 + $0x858] sm:$0xff]
    %v379 = vld [vmem:[#allocation2 + $0x860] sm:$0xff]
    %v380 = vld [vmem:[#allocation2 + $0x868] sm:$0xff]
    %v381 = vld [vmem:[#allocation2 + $0x870] sm:$0xff]
    %v382 = vld [vmem:[#allocation2 + $0x878] sm:$0xff]
    %v383 = vld [vmem:[#allocation2 + $0x880] sm:$0xff]
    %v384 = vld [vmem:[#allocation2 + $0x888] sm:$0xff]
    %v385 = vld [vmem:[#allocation2 + $0x890] sm:$0xff]
    %v386 = vld [vmem:[#allocation2 + $0x898] sm:$0xff]
    %v387 = vld [vmem:[#allocation2 + $0x8a0] sm:$0xff]
    %v388 = vld [vmem:[#allocation2 + $0x8a8] sm:$0xff]
    %v389 = vld [vmem:[#allocation2 + $0x8b0] sm:$0xff]
    %v390 = vld [vmem:[#allocation2 + $0x8b8] sm:$0xff]
    %v391 = vld [vmem:[#allocation2 + $0x8c0] sm:$0xff]
    %v392 = vld [vmem:[#allocation2 + $0x8c8] sm:$0xff]
    %v393 = vld [vmem:[#allocation2 + $0x8d0] sm:$0xff]
    %v394 = vld [vmem:[#allocation2 + $0x8d8] sm:$0xff]
    %v395 = vld [vmem:[#allocation2 + $0x8e0] sm:$0xff]
    %v396 = vld [vmem:[#allocation2 + $0x8e8] sm:$0xff]
    %v397 = vld [vmem:[#allocation2 + $0x8f0] sm:$0xff]
    %v398 = vld [vmem:[#allocation2 + $0x8f8] sm:$0xff]
    %v399 = vld [vmem:[#allocation2 + $0x900] sm:$0xff]
    %v400 = vld [vmem:[#allocation2 + $0x908] sm:$0xff]
    %v401 = vld [vmem:[#allocation2 + $0x910] sm:$0xff]
    %v402 = vld [vmem:[#allocation2 + $0x918] sm:$0xff]
    %v403 = vld [vmem:[#allocation2 + $0x920] sm:$0xff]
    %v404 = vld [vmem:[#allocation2 + $0x928] sm:$0xff]
    %v405 = vld [vmem:[#allocation2 + $0x930] sm:$0xff]
    %v406 = vld [vmem:[#allocation2 + $0x938] sm:$0xff]
    %v407 = vld [vmem:[#allocation2 + $0x940] sm:$0xff]
    %v408 = vld [vmem:[#allocation2 + $0x948] sm:$0xff]
    %v409 = vld [vmem:[#allocation2 + $0x950] sm:$0xff]
    %v410 = vld [vmem:[#allocation2 + $0x958] sm:$0xff]
    %v411 = vld [vmem:[#allocation2 + $0x960] sm:$0xff]
    %v412 = vld [vmem:[#allocation2 + $0x968] sm:$0xff]
    %v413 = vld [vmem:[#allocation2 + $0x970] sm:$0xff]
    %v414 = vld [vmem:[#allocation2 + $0x978] sm:$0xff]
    %v415 = vld [vmem:[#allocation2 + $0x980] sm:$0xff]
    %v416 = vld [vmem:[#allocation2 + $0x988] sm:$0xff]
    %v417 = vld [vmem:[#allocation2 + $0x990] sm:$0xff]
    %v418 = vld [vmem:[#allocation2 + $0x998] sm:$0xff]
    %v419 = vld [vmem:[#allocation2 + $0x9a0] sm:$0xff]
    %v420 = vld [vmem:[#allocation2 + $0x9a8] sm:$0xff]
    %v421 = vld [vmem:[#allocation2 + $0x9b0] sm:$0xff]
    %v422 = vld [vmem:[#allocation2 + $0x9b8] sm:$0xff]
    %v423 = vld [vmem:[#allocation2 + $0x9c0] sm:$0xff]
    %v424 = vld [vmem:[#allocation2 + $0x9c8] sm:$0xff]
    %v425 = vld [vmem:[#allocation2 + $0x9d0] sm:$0xff]
    %v426 = vld [vmem:[#allocation2 + $0x9d8] sm:$0xff]
    %v427 = vld [vmem:[#allocation2 + $0x9e0] sm:$0xff]
    %v428 = vld [vmem:[#allocation2 + $0x9e8] sm:$0xff]
    %v429 = vld [vmem:[#allocation2 + $0x9f0] sm:$0xff]
    %v430 = vld [vmem:[#allocation2 + $0x9f8] sm:$0xff]
    %v431 = vld [vmem:[#allocation2 + $0xa00] sm:$0xff]
    %v432 = vld [vmem:[#allocation2 + $0xa08] sm:$0xff]
    %v433 = vld [vmem:[#allocation2 + $0xa10] sm:$0xff]
    %v434 = vld [vmem:[#allocation2 + $0xa18] sm:$0xff]
    %v435 = vld [vmem:[#allocation2 + $0xa20] sm:$0xff]
    %v436 = vld [vmem:[#allocation2 + $0xa28] sm:$0xff]
    %v437 = vld [vmem:[#allocation2 + $0xa30] sm:$0xff]
    %v438 = vld [vmem:[#allocation2 + $0xa38] sm:$0xff]
    %v439 = vld [vmem:[#allocation2 + $0xa40] sm:$0xff]
    %v440 = vld [vmem:[#allocation2 + $0xa48] sm:$0xff]
    %v441 = vld [vmem:[#allocation2 + $0xa50] sm:$0xff]
    %v442 = vld [vmem:[#allocation2 + $0xa58] sm:$0xff]
    %v443 = vld [vmem:[#allocation2 + $0xa60] sm:$0xff]
    %v444 = vld [vmem:[#allocation2 + $0xa68] sm:$0xff]
    %v445 = vld [vmem:[#allocation2 + $0xa70] sm:$0xff]
    %v446 = vld [vmem:[#allocation2 + $0xa78] sm:$0xff]
    %v447 = vld [vmem:[#allocation2 + $0xa80] sm:$0xff]
    %v448 = vld [vmem:[#allocation2 + $0xa88] sm:$0xff]
    %v449 = vld [vmem:[#allocation2 + $0xa90] sm:$0xff]
    %v450 = vld [vmem:[#allocation2 + $0xa98] sm:$0xff]
    %v451 = vld [vmem:[#allocation2 + $0xaa0] sm:$0xff]
    %v452 = vld [vmem:[#allocation2 + $0xaa8] sm:$0xff]
    %v453 = vld [vmem:[#allocation2 + $0xab0] sm:$0xff]
    %v454 = vld [vmem:[#allocation2 + $0xab8] sm:$0xff]
    %v455 = vld [vmem:[#allocation2 + $0xac0] sm:$0xff]
    %v456 = vld [vmem:[#allocation2 + $0xac8] sm:$0xff]
    %v457 = vld [vmem:[#allocation2 + $0xad0] sm:$0xff]
    %v458 = vld [vmem:[#allocation2 + $0xad8] sm:$0xff]
    %v459 = vld [vmem:[#allocation2 + $0xae0] sm:$0xff]
    %v460 = vld [vmem:[#allocation2 + $0xae8] sm:$0xff]
    %v461 = vld [vmem:[#allocation2 + $0xaf0] sm:$0xff]
    %v462 = vld [vmem:[#allocation2 + $0xaf8] sm:$0xff]
    %v463 = vld [vmem:[#allocation2 + $0xb00] sm:$0xff]
    %v464 = vld [vmem:[#allocation2 + $0xb08] sm:$0xff]
    %v465 = vld [vmem:[#allocation2 + $0xb10] sm:$0xff]
    %v466 = vld [vmem:[#allocation2 + $0xb18] sm:$0xff]
    %v467 = vld [vmem:[#allocation2 + $0xb20] sm:$0xff]
    %v468 = vld [vmem:[#allocation2 + $0xb28] sm:$0xff]
    %v469 = vld [vmem:[#allocation2 + $0xb30] sm:$0xff]
    %v470 = vld [vmem:[#allocation2 + $0xb38] sm:$0xff]
    %v471 = vld [vmem:[#allocation2 + $0xb40] sm:$0xff]
    %v472 = vld [vmem:[#allocation2 + $0xb48] sm:$0xff]
    %v473 = vld [vmem:[#allocation2 + $0xb50] sm:$0xff]
    %v474 = vld [vmem:[#allocation2 + $0xb58] sm:$0xff]
    %v475 = vld [vmem:[#allocation2 + $0xb60] sm:$0xff]
    %v476 = vld [vmem:[#allocation2 + $0xb68] sm:$0xff]
    %v477 = vld [vmem:[#allocation2 + $0xb70] sm:$0xff]
    %v478 = vld [vmem:[#allocation2 + $0xb78] sm:$0xff]
    %v479 = vld [vmem:[#allocation2 + $0xb80] sm:$0xff]
    %v480 = vld [vmem:[#allocation2 + $0xb88] sm:$0xff]
    %v481 = vld [vmem:[#allocation2 + $0xb90] sm:$0xff]
    %v482 = vld [vmem:[#allocation2 + $0xb98] sm:$0xff]
    %v483 = vld [vmem:[#allocation2 + $0xba0] sm:$0xff]
    %v484 = vld [vmem:[#allocation2 + $0xba8] sm:$0xff]
    %v485 = vld [vmem:[#allocation2 + $0xbb0] sm:$0xff]
    %v486 = vld [vmem:[#allocation2 + $0xbb8] sm:$0xff]
    %v487 = vld [vmem:[#allocation2 + $0xbc0] sm:$0xff]
    %v488 = vld [vmem:[#allocation2 + $0xbc8] sm:$0xff]
    %v489 = vld [vmem:[#allocation2 + $0xbd0] sm:$0xff]
    %v490 = vld [vmem:[#allocation2 + $0xbd8] sm:$0xff]
    %v491 = vld [vmem:[#allocation2 + $0xbe0] sm:$0xff]
    %v492 = vld [vmem:[#allocation2 + $0xbe8] sm:$0xff]
    %v493 = vld [vmem:[#allocation2 + $0xbf0] sm:$0xff]
    %v494 = vld [vmem:[#allocation2 + $0xbf8] sm:$0xff]
    %v879 = vunpack.c.l.b16 %v111
    %v880 = vunpack.c.h.b16 %v111
    %v881 = vunpack.c.l.b16 %v112
    %v882 = vunpack.c.h.b16 %v112
    %v883 = vunpack.c.l.b16 %v113
    %v884 = vunpack.c.h.b16 %v113
    %v885 = vunpack.c.l.b16 %v114
    %v886 = vunpack.c.h.b16 %v114
    %v887 = vunpack.c.l.b16 %v115
    %v888 = vunpack.c.h.b16 %v115
    %v889 = vunpack.c.l.b16 %v116
    %v890 = vunpack.c.h.b16 %v116
    %v891 = vunpack.c.l.b16 %v117
    %v892 = vunpack.c.h.b16 %v117
    %v893 = vunpack.c.l.b16 %v118
    %v894 = vunpack.c.h.b16 %v118
    %v895 = vunpack.c.l.b16 %v119
    %v896 = vunpack.c.h.b16 %v119
    %v897 = vunpack.c.l.b16 %v120
    %v898 = vunpack.c.h.b16 %v120
    %v899 = vunpack.c.l.b16 %v121
    %v900 = vunpack.c.h.b16 %v121
    %v901 = vunpack.c.l.b16 %v122
    %v902 = vunpack.c.h.b16 %v122
    %v903 = vunpack.c.l.b16 %v123
    %v904 = vunpack.c.h.b16 %v123
    %v905 = vunpack.c.l.b16 %v124
    %v906 = vunpack.c.h.b16 %v124
    %v907 = vunpack.c.l.b16 %v125
    %v908 = vunpack.c.h.b16 %v125
    %v909 = vunpack.c.l.b16 %v126
    %v910 = vunpack.c.h.b16 %v126
    %v911 = vunpack.c.l.b16 %v127
    %v912 = vunpack.c.h.b16 %v127
    %v913 = vunpack.c.l.b16 %v128
    %v914 = vunpack.c.h.b16 %v128
    %v915 = vunpack.c.l.b16 %v129
    %v916 = vunpack.c.h.b16 %v129
    %v917 = vunpack.c.l.b16 %v130
    %v918 = vunpack.c.h.b16 %v130
    %v919 = vunpack.c.l.b16 %v131
    %v920 = vunpack.c.h.b16 %v131
    %v921 = vunpack.c.l.b16 %v132
    %v922 = vunpack.c.h.b16 %v132
    %v923 = vunpack.c.l.b16 %v133
    %v924 = vunpack.c.h.b16 %v133
    %v925 = vunpack.c.l.b16 %v134
    %v926 = vunpack.c.h.b16 %v134
    %v927 = vunpack.c.l.b16 %v135
    %v928 = vunpack.c.h.b16 %v135
    %v929 = vunpack.c.l.b16 %v136
    %v930 = vunpack.c.h.b16 %v136
    %v931 = vunpack.c.l.b16 %v137
    %v932 = vunpack.c.h.b16 %v137
    %v933 = vunpack.c.l.b16 %v138
    %v934 = vunpack.c.h.b16 %v138
    %v935 = vunpack.c.l.b16 %v139
    %v936 = vunpack.c.h.b16 %v139
    %v937 = vunpack.c.l.b16 %v140
    %v938 = vunpack.c.h.b16 %v140
    %v939 = vunpack.c.l.b16 %v141
    %v940 = vunpack.c.h.b16 %v141
    %v941 = vunpack.c.l.b16 %v142
    %v942 = vunpack.c.h.b16 %v142
    %v943 = vunpack.c.l.b16 %v143
    %v944 = vunpack.c.h.b16 %v143
    %v945 = vunpack.c.l.b16 %v144
    %v946 = vunpack.c.h.b16 %v144
    %v947 = vunpack.c.l.b16 %v145
    %v948 = vunpack.c.h.b16 %v145
    %v949 = vunpack.c.l.b16 %v146
    %v950 = vunpack.c.h.b16 %v146
    %v951 = vunpack.c.l.b16 %v147
    %v952 = vunpack.c.h.b16 %v147
    %v953 = vunpack.c.l.b16 %v148
    %v954 = vunpack.c.h.b16 %v148
    %v955 = vunpack.c.l.b16 %v149
    %v956 = vunpack.c.h.b16 %v149
    %v957 = vunpack.c.l.b16 %v150
    %v958 = vunpack.c.h.b16 %v150
    %v959 = vunpack.c.l.b16 %v151
    %v960 = vunpack.c.h.b16 %v151
    %v961 = vunpack.c.l.b16 %v152
    %v962 = vunpack.c.h.b16 %v152
    %v963 = vunpack.c.l.b16 %v153
    %v964 = vunpack.c.h.b16 %v153
    %v965 = vunpack.c.l.b16 %v154
    %v966 = vunpack.c.h.b16 %v154
    %v967 = vunpack.c.l.b16 %v155
    %v968 = vunpack.c.h.b16 %v155
    %v969 = vunpack.c.l.b16 %v156
    %v970 = vunpack.c.h.b16 %v156
    %v971 = vunpack.c.l.b16 %v157
    %v972 = vunpack.c.h.b16 %v157
    %v973 = vunpack.c.l.b16 %v158
    %v974 = vunpack.c.h.b16 %v158
    %v975 = vunpack.c.l.b16 %v159
    %v976 = vunpack.c.h.b16 %v159
    %v977 = vunpack.c.l.b16 %v160
    %v978 = vunpack.c.h.b16 %v160
    %v979 = vunpack.c.l.b16 %v161
    %v980 = vunpack.c.h.b16 %v161
    %v981 = vunpack.c.l.b16 %v162
    %v982 = vunpack.c.h.b16 %v162
    %v983 = vunpack.c.l.b16 %v163
    %v984 = vunpack.c.h.b16 %v163
    %v985 = vunpack.c.l.b16 %v164
    %v986 = vunpack.c.h.b16 %v164
    %v987 = vunpack.c.l.b16 %v165
    %v988 = vunpack.c.h.b16 %v165
    %v989 = vunpack.c.l.b16 %v166
    %v990 = vunpack.c.h.b16 %v166
    %v991 = vunpack.c.l.b16 %v167
    %v992 = vunpack.c.h.b16 %v167
    %v993 = vunpack.c.l.b16 %v168
    %v994 = vunpack.c.h.b16 %v168
    %v995 = vunpack.c.l.b16 %v169
    %v996 = vunpack.c.h.b16 %v169
    %v997 = vunpack.c.l.b16 %v170
    %v998 = vunpack.c.h.b16 %v170
    %v999 = vunpack.c.l.b16 %v171
    %v1000 = vunpack.c.h.b16 %v171
    %v1001 = vunpack.c.l.b16 %v172
    %v1002 = vunpack.c.h.b16 %v172
    %v1003 = vunpack.c.l.b16 %v173
    %v1004 = vunpack.c.h.b16 %v173
    %v1005 = vunpack.c.l.b16 %v174
    %v1006 = vunpack.c.h.b16 %v174
    %v1007 = vunpack.c.l.b16 %v175
    %v1008 = vunpack.c.h.b16 %v175
    %v1009 = vunpack.c.l.b16 %v176
    %v1010 = vunpack.c.h.b16 %v176
    %v1011 = vunpack.c.l.b16 %v177
    %v1012 = vunpack.c.h.b16 %v177
    %v1013 = vunpack.c.l.b16 %v178
    %v1014 = vunpack.c.h.b16 %v178
    %v1015 = vunpack.c.l.b16 %v179
    %v1016 = vunpack.c.h.b16 %v179
    %v1017 = vunpack.c.l.b16 %v180
    %v1018 = vunpack.c.h.b16 %v180
    %v1019 = vunpack.c.l.b16 %v181
    %v1020 = vunpack.c.h.b16 %v181
    %v1021 = vunpack.c.l.b16 %v182
    %v1022 = vunpack.c.h.b16 %v182
    %v1023 = vunpack.c.l.b16 %v183
    %v1024 = vunpack.c.h.b16 %v183
    %v1025 = vunpack.c.l.b16 %v184
    %v1026 = vunpack.c.h.b16 %v184
    %v1027 = vunpack.c.l.b16 %v185
    %v1028 = vunpack.c.h.b16 %v185
    %v1029 = vunpack.c.l.b16 %v186
    %v1030 = vunpack.c.h.b16 %v186
    %v1031 = vunpack.c.l.b16 %v187
    %v1032 = vunpack.c.h.b16 %v187
    %v1033 = vunpack.c.l.b16 %v188
    %v1034 = vunpack.c.h.b16 %v188
    %v1035 = vunpack.c.l.b16 %v189
    %v1036 = vunpack.c.h.b16 %v189
    %v1037 = vunpack.c.l.b16 %v190
    %v1038 = vunpack.c.h.b16 %v190
    %v1039 = vunpack.c.l.b16 %v191
    %v1040 = vunpack.c.h.b16 %v191
    %v1041 = vunpack.c.l.b16 %v192
    %v1042 = vunpack.c.h.b16 %v192
    %v1043 = vunpack.c.l.b16 %v193
    %v1044 = vunpack.c.h.b16 %v193
    %v1045 = vunpack.c.l.b16 %v194
    %v1046 = vunpack.c.h.b16 %v194
    %v1047 = vunpack.c.l.b16 %v195
    %v1048 = vunpack.c.h.b16 %v195
    %v1049 = vunpack.c.l.b16 %v196
    %v1050 = vunpack.c.h.b16 %v196
    %v1051 = vunpack.c.l.b16 %v197
    %v1052 = vunpack.c.h.b16 %v197
    %v1053 = vunpack.c.l.b16 %v198
    %v1054 = vunpack.c.h.b16 %v198
    %v1055 = vunpack.c.l.b16 %v199
    %v1056 = vunpack.c.h.b16 %v199
    %v1057 = vunpack.c.l.b16 %v200
    %v1058 = vunpack.c.h.b16 %v200
    %v1059 = vunpack.c.l.b16 %v201
    %v1060 = vunpack.c.h.b16 %v201
    %v1061 = vunpack.c.l.b16 %v202
    %v1062 = vunpack.c.h.b16 %v202
    %v1063 = vunpack.c.l.b16 %v203
    %v1064 = vunpack.c.h.b16 %v203
    %v1065 = vunpack.c.l.b16 %v204
    %v1066 = vunpack.c.h.b16 %v204
    %v1067 = vunpack.c.l.b16 %v205
    %v1068 = vunpack.c.h.b16 %v205
    %v1069 = vunpack.c.l.b16 %v206
    %v1070 = vunpack.c.h.b16 %v206
    %v1071 = vunpack.c.l.b16 %v207
    %v1072 = vunpack.c.h.b16 %v207
    %v1073 = vunpack.c.l.b16 %v208
    %v1074 = vunpack.c.h.b16 %v208
    %v1075 = vunpack.c.l.b16 %v209
    %v1076 = vunpack.c.h.b16 %v209
    %v1077 = vunpack.c.l.b16 %v210
    %v1078 = vunpack.c.h.b16 %v210
    %v1079 = vunpack.c.l.b16 %v211
    %v1080 = vunpack.c.h.b16 %v211
    %v1081 = vunpack.c.l.b16 %v212
    %v1082 = vunpack.c.h.b16 %v212
    %v1083 = vunpack.c.l.b16 %v213
    %v1084 = vunpack.c.h.b16 %v213
    %v1085 = vunpack.c.l.b16 %v214
    %v1086 = vunpack.c.h.b16 %v214
    %v1087 = vunpack.c.l.b16 %v215
    %v1088 = vunpack.c.h.b16 %v215
    %v1089 = vunpack.c.l.b16 %v216
    %v1090 = vunpack.c.h.b16 %v216
    %v1091 = vunpack.c.l.b16 %v217
    %v1092 = vunpack.c.h.b16 %v217
    %v1093 = vunpack.c.l.b16 %v218
    %v1094 = vunpack.c.h.b16 %v218
    %v1095 = vunpack.c.l.b16 %v219
    %v1096 = vunpack.c.h.b16 %v219
    %v1097 = vunpack.c.l.b16 %v220
    %v1098 = vunpack.c.h.b16 %v220
    %v1099 = vunpack.c.l.b16 %v221
    %v1100 = vunpack.c.h.b16 %v221
    %v1101 = vunpack.c.l.b16 %v222
    %v1102 = vunpack.c.h.b16 %v222
    %v1103 = vunpack.c.l.b16 %v223
    %v1104 = vunpack.c.h.b16 %v223
    %v1105 = vunpack.c.l.b16 %v224
    %v1106 = vunpack.c.h.b16 %v224
    %v1107 = vunpack.c.l.b16 %v225
    %v1108 = vunpack.c.h.b16 %v225
    %v1109 = vunpack.c.l.b16 %v226
    %v1110 = vunpack.c.h.b16 %v226
    %v1111 = vunpack.c.l.b16 %v227
    %v1112 = vunpack.c.h.b16 %v227
    %v1113 = vunpack.c.l.b16 %v228
    %v1114 = vunpack.c.h.b16 %v228
    %v1115 = vunpack.c.l.b16 %v229
    %v1116 = vunpack.c.h.b16 %v229
    %v1117 = vunpack.c.l.b16 %v230
    %v1118 = vunpack.c.h.b16 %v230
    %v1119 = vunpack.c.l.b16 %v231
    %v1120 = vunpack.c.h.b16 %v231
    %v1121 = vunpack.c.l.b16 %v232
    %v1122 = vunpack.c.h.b16 %v232
    %v1123 = vunpack.c.l.b16 %v233
    %v1124 = vunpack.c.h.b16 %v233
    %v1125 = vunpack.c.l.b16 %v234
    %v1126 = vunpack.c.h.b16 %v234
    %v1127 = vunpack.c.l.b16 %v235
    %v1128 = vunpack.c.h.b16 %v235
    %v1129 = vunpack.c.l.b16 %v236
    %v1130 = vunpack.c.h.b16 %v236
    %v1131 = vunpack.c.l.b16 %v237
    %v1132 = vunpack.c.h.b16 %v237
    %v1133 = vunpack.c.l.b16 %v238
    %v1134 = vunpack.c.h.b16 %v238
    %v1135 = vunpack.c.l.b16 %v239
    %v1136 = vunpack.c.h.b16 %v239
    %v1137 = vunpack.c.l.b16 %v240
    %v1138 = vunpack.c.h.b16 %v240
    %v1139 = vunpack.c.l.b16 %v241
    %v1140 = vunpack.c.h.b16 %v241
    %v1141 = vunpack.c.l.b16 %v242
    %v1142 = vunpack.c.h.b16 %v242
    %v1143 = vunpack.c.l.b16 %v243
    %v1144 = vunpack.c.h.b16 %v243
    %v1145 = vunpack.c.l.b16 %v244
    %v1146 = vunpack.c.h.b16 %v244
    %v1147 = vunpack.c.l.b16 %v245
    %v1148 = vunpack.c.h.b16 %v245
    %v1149 = vunpack.c.l.b16 %v246
    %v1150 = vunpack.c.h.b16 %v246
    %v1151 = vunpack.c.l.b16 %v247
    %v1152 = vunpack.c.h.b16 %v247
    %v1153 = vunpack.c.l.b16 %v248
    %v1154 = vunpack.c.h.b16 %v248
    %v1155 = vunpack.c.l.b16 %v249
    %v1156 = vunpack.c.h.b16 %v249
    %v1157 = vunpack.c.l.b16 %v250
    %v1158 = vunpack.c.h.b16 %v250
    %v1159 = vunpack.c.l.b16 %v251
    %v1160 = vunpack.c.h.b16 %v251
    %v1161 = vunpack.c.l.b16 %v252
    %v1162 = vunpack.c.h.b16 %v252
    %v1163 = vunpack.c.l.b16 %v253
    %v1164 = vunpack.c.h.b16 %v253
    %v1165 = vunpack.c.l.b16 %v254
    %v1166 = vunpack.c.h.b16 %v254
    %v1167 = vunpack.c.l.b16 %v255
    %v1168 = vunpack.c.h.b16 %v255
    %v1169 = vunpack.c.l.b16 %v256
    %v1170 = vunpack.c.h.b16 %v256
    %v1171 = vunpack.c.l.b16 %v257
    %v1172 = vunpack.c.h.b16 %v257
    %v1173 = vunpack.c.l.b16 %v258
    %v1174 = vunpack.c.h.b16 %v258
    %v1175 = vunpack.c.l.b16 %v259
    %v1176 = vunpack.c.h.b16 %v259
    %v1177 = vunpack.c.l.b16 %v260
    %v1178 = vunpack.c.h.b16 %v260
    %v1179 = vunpack.c.l.b16 %v261
    %v1180 = vunpack.c.h.b16 %v261
    %v1181 = vunpack.c.l.b16 %v262
    %v1182 = vunpack.c.h.b16 %v262
    %v1183 = vunpack.c.l.b16 %v263
    %v1184 = vunpack.c.h.b16 %v263
    %v1185 = vunpack.c.l.b16 %v264
    %v1186 = vunpack.c.h.b16 %v264
    %v1187 = vunpack.c.l.b16 %v265
    %v1188 = vunpack.c.h.b16 %v265
    %v1189 = vunpack.c.l.b16 %v266
    %v1190 = vunpack.c.h.b16 %v266
    %v1191 = vunpack.c.l.b16 %v267
    %v1192 = vunpack.c.h.b16 %v267
    %v1193 = vunpack.c.l.b16 %v268
    %v1194 = vunpack.c.h.b16 %v268
    %v1195 = vunpack.c.l.b16 %v269
    %v1196 = vunpack.c.h.b16 %v269
    %v1197 = vunpack.c.l.b16 %v270
    %v1198 = vunpack.c.h.b16 %v270
    %v1199 = vunpack.c.l.b16 %v271
    %v1200 = vunpack.c.h.b16 %v271
    %v1201 = vunpack.c.l.b16 %v272
    %v1202 = vunpack.c.h.b16 %v272
    %v1203 = vunpack.c.l.b16 %v273
    %v1204 = vunpack.c.h.b16 %v273
    %v1205 = vunpack.c.l.b16 %v274
    %v1206 = vunpack.c.h.b16 %v274
    %v1207 = vunpack.c.l.b16 %v275
    %v1208 = vunpack.c.h.b16 %v275
    %v1209 = vunpack.c.l.b16 %v276
    %v1210 = vunpack.c.h.b16 %v276
    %v1211 = vunpack.c.l.b16 %v277
    %v1212 = vunpack.c.h.b16 %v277
    %v1213 = vunpack.c.l.b16 %v278
    %v1214 = vunpack.c.h.b16 %v278
    %v1215 = vunpack.c.l.b16 %v279
    %v1216 = vunpack.c.h.b16 %v279
    %v1217 = vunpack.c.l.b16 %v280
    %v1218 = vunpack.c.h.b16 %v280
    %v1219 = vunpack.c.l.b16 %v281
    %v1220 = vunpack.c.h.b16 %v281
    %v1221 = vunpack.c.l.b16 %v282
    %v1222 = vunpack.c.h.b16 %v282
    %v1223 = vunpack.c.l.b16 %v283
    %v1224 = vunpack.c.h.b16 %v283
    %v1225 = vunpack.c.l.b16 %v284
    %v1226 = vunpack.c.h.b16 %v284
    %v1227 = vunpack.c.l.b16 %v285
    %v1228 = vunpack.c.h.b16 %v285
    %v1229 = vunpack.c.l.b16 %v286
    %v1230 = vunpack.c.h.b16 %v286
    %v1231 = vunpack.c.l.b16 %v287
    %v1232 = vunpack.c.h.b16 %v287
    %v1233 = vunpack.c.l.b16 %v288
    %v1234 = vunpack.c.h.b16 %v288
    %v1235 = vunpack.c.l.b16 %v289
    %v1236 = vunpack.c.h.b16 %v289
    %v1237 = vunpack.c.l.b16 %v290
    %v1238 = vunpack.c.h.b16 %v290
    %v1239 = vunpack.c.l.b16 %v291
    %v1240 = vunpack.c.h.b16 %v291
    %v1241 = vunpack.c.l.b16 %v292
    %v1242 = vunpack.c.h.b16 %v292
    %v1243 = vunpack.c.l.b16 %v293
    %v1244 = vunpack.c.h.b16 %v293
    %v1245 = vunpack.c.l.b16 %v294
    %v1246 = vunpack.c.h.b16 %v294
    %v1247 = vunpack.c.l.b16 %v295
    %v1248 = vunpack.c.h.b16 %v295
    %v1249 = vunpack.c.l.b16 %v296
    %v1250 = vunpack.c.h.b16 %v296
    %v1251 = vunpack.c.l.b16 %v297
    %v1252 = vunpack.c.h.b16 %v297
    %v1253 = vunpack.c.l.b16 %v298
    %v1254 = vunpack.c.h.b16 %v298
    %v1255 = vunpack.c.l.b16 %v299
    %v1256 = vunpack.c.h.b16 %v299
    %v1257 = vunpack.c.l.b16 %v300
    %v1258 = vunpack.c.h.b16 %v300
    %v1259 = vunpack.c.l.b16 %v301
    %v1260 = vunpack.c.h.b16 %v301
    %v1261 = vunpack.c.l.b16 %v302
    %v1262 = vunpack.c.h.b16 %v302
    %v1263 = vunpack.c.l.b16 %v303
    %v1264 = vunpack.c.h.b16 %v303
    %v1265 = vunpack.c.l.b16 %v304
    %v1266 = vunpack.c.h.b16 %v304
    %v1267 = vunpack.c.l.b16 %v305
    %v1268 = vunpack.c.h.b16 %v305
    %v1269 = vunpack.c.l.b16 %v306
    %v1270 = vunpack.c.h.b16 %v306
    %v1271 = vunpack.c.l.b16 %v307
    %v1272 = vunpack.c.h.b16 %v307
    %v1273 = vunpack.c.l.b16 %v308
    %v1274 = vunpack.c.h.b16 %v308
    %v1275 = vunpack.c.l.b16 %v309
    %v1276 = vunpack.c.h.b16 %v309
    %v1277 = vunpack.c.l.b16 %v310
    %v1278 = vunpack.c.h.b16 %v310
    %v1279 = vunpack.c.l.b16 %v311
    %v1280 = vunpack.c.h.b16 %v311
    %v1281 = vunpack.c.l.b16 %v312
    %v1282 = vunpack.c.h.b16 %v312
    %v1283 = vunpack.c.l.b16 %v313
    %v1284 = vunpack.c.h.b16 %v313
    %v1285 = vunpack.c.l.b16 %v314
    %v1286 = vunpack.c.h.b16 %v314
    %v1287 = vunpack.c.l.b16 %v315
    %v1288 = vunpack.c.h.b16 %v315
    %v1289 = vunpack.c.l.b16 %v316
    %v1290 = vunpack.c.h.b16 %v316
    %v1291 = vunpack.c.l.b16 %v317
    %v1292 = vunpack.c.h.b16 %v317
    %v1293 = vunpack.c.l.b16 %v318
    %v1294 = vunpack.c.h.b16 %v318
    %v1295 = vunpack.c.l.b16 %v319
    %v1296 = vunpack.c.h.b16 %v319
    %v1297 = vunpack.c.l.b16 %v320
    %v1298 = vunpack.c.h.b16 %v320
    %v1299 = vunpack.c.l.b16 %v321
    %v1300 = vunpack.c.h.b16 %v321
    %v1301 = vunpack.c.l.b16 %v322
    %v1302 = vunpack.c.h.b16 %v322
    %v1303 = vunpack.c.l.b16 %v323
    %v1304 = vunpack.c.h.b16 %v323
    %v1305 = vunpack.c.l.b16 %v324
    %v1306 = vunpack.c.h.b16 %v324
    %v1307 = vunpack.c.l.b16 %v325
    %v1308 = vunpack.c.h.b16 %v325
    %v1309 = vunpack.c.l.b16 %v326
    %v1310 = vunpack.c.h.b16 %v326
    %v1311 = vunpack.c.l.b16 %v327
    %v1312 = vunpack.c.h.b16 %v327
    %v1313 = vunpack.c.l.b16 %v328
    %v1314 = vunpack.c.h.b16 %v328
    %v1315 = vunpack.c.l.b16 %v329
    %v1316 = vunpack.c.h.b16 %v329
    %v1317 = vunpack.c.l.b16 %v330
    %v1318 = vunpack.c.h.b16 %v330
    %v1319 = vunpack.c.l.b16 %v331
    %v1320 = vunpack.c.h.b16 %v331
    %v1321 = vunpack.c.l.b16 %v332
    %v1322 = vunpack.c.h.b16 %v332
    %v1323 = vunpack.c.l.b16 %v333
    %v1324 = vunpack.c.h.b16 %v333
    %v1325 = vunpack.c.l.b16 %v334
    %v1326 = vunpack.c.h.b16 %v334
    %v1327 = vunpack.c.l.b16 %v335
    %v1328 = vunpack.c.h.b16 %v335
    %v1329 = vunpack.c.l.b16 %v336
    %v1330 = vunpack.c.h.b16 %v336
    %v1331 = vunpack.c.l.b16 %v337
    %v1332 = vunpack.c.h.b16 %v337
    %v1333 = vunpack.c.l.b16 %v338
    %v1334 = vunpack.c.h.b16 %v338
    %v1335 = vunpack.c.l.b16 %v339
    %v1336 = vunpack.c.h.b16 %v339
    %v1337 = vunpack.c.l.b16 %v340
    %v1338 = vunpack.c.h.b16 %v340
    %v1339 = vunpack.c.l.b16 %v341
    %v1340 = vunpack.c.h.b16 %v341
    %v1341 = vunpack.c.l.b16 %v342
    %v1342 = vunpack.c.h.b16 %v342
    %v1343 = vunpack.c.l.b16 %v343
    %v1344 = vunpack.c.h.b16 %v343
    %v1345 = vunpack.c.l.b16 %v344
    %v1346 = vunpack.c.h.b16 %v344
    %v1347 = vunpack.c.l.b16 %v345
    %v1348 = vunpack.c.h.b16 %v345
    %v1349 = vunpack.c.l.b16 %v346
    %v1350 = vunpack.c.h.b16 %v346
    %v1351 = vunpack.c.l.b16 %v347
    %v1352 = vunpack.c.h.b16 %v347
    %v1353 = vunpack.c.l.b16 %v348
    %v1354 = vunpack.c.h.b16 %v348
    %v1355 = vunpack.c.l.b16 %v349
    %v1356 = vunpack.c.h.b16 %v349
    %v1357 = vunpack.c.l.b16 %v350
    %v1358 = vunpack.c.h.b16 %v350
    %v1359 = vunpack.c.l.b16 %v351
    %v1360 = vunpack.c.h.b16 %v351
    %v1361 = vunpack.c.l.b16 %v352
    %v1362 = vunpack.c.h.b16 %v352
    %v1363 = vunpack.c.l.b16 %v353
    %v1364 = vunpack.c.h.b16 %v353
    %v1365 = vunpack.c.l.b16 %v354
    %v1366 = vunpack.c.h.b16 %v354
    %v1367 = vunpack.c.l.b16 %v355
    %v1368 = vunpack.c.h.b16 %v355
    %v1369 = vunpack.c.l.b16 %v356
    %v1370 = vunpack.c.h.b16 %v356
    %v1371 = vunpack.c.l.b16 %v357
    %v1372 = vunpack.c.h.b16 %v357
    %v1373 = vunpack.c.l.b16 %v358
    %v1374 = vunpack.c.h.b16 %v358
    %v1375 = vunpack.c.l.b16 %v359
    %v1376 = vunpack.c.h.b16 %v359
    %v1377 = vunpack.c.l.b16 %v360
    %v1378 = vunpack.c.h.b16 %v360
    %v1379 = vunpack.c.l.b16 %v361
    %v1380 = vunpack.c.h.b16 %v361
    %v1381 = vunpack.c.l.b16 %v362
    %v1382 = vunpack.c.h.b16 %v362
    %v1383 = vunpack.c.l.b16 %v363
    %v1384 = vunpack.c.h.b16 %v363
    %v1385 = vunpack.c.l.b16 %v364
    %v1386 = vunpack.c.h.b16 %v364
    %v1387 = vunpack.c.l.b16 %v365
    %v1388 = vunpack.c.h.b16 %v365
    %v1389 = vunpack.c.l.b16 %v366
    %v1390 = vunpack.c.h.b16 %v366
    %v1391 = vunpack.c.l.b16 %v367
    %v1392 = vunpack.c.h.b16 %v367
    %v1393 = vunpack.c.l.b16 %v368
    %v1394 = vunpack.c.h.b16 %v368
    %v1395 = vunpack.c.l.b16 %v369
    %v1396 = vunpack.c.h.b16 %v369
    %v1397 = vunpack.c.l.b16 %v370
    %v1398 = vunpack.c.h.b16 %v370
    %v1399 = vunpack.c.l.b16 %v371
    %v1400 = vunpack.c.h.b16 %v371
    %v1401 = vunpack.c.l.b16 %v372
    %v1402 = vunpack.c.h.b16 %v372
    %v1403 = vunpack.c.l.b16 %v373
    %v1404 = vunpack.c.h.b16 %v373
    %v1405 = vunpack.c.l.b16 %v374
    %v1406 = vunpack.c.h.b16 %v374
    %v1407 = vunpack.c.l.b16 %v375
    %v1408 = vunpack.c.h.b16 %v375
    %v1409 = vunpack.c.l.b16 %v376
    %v1410 = vunpack.c.h.b16 %v376
    %v1411 = vunpack.c.l.b16 %v377
    %v1412 = vunpack.c.h.b16 %v377
    %v1413 = vunpack.c.l.b16 %v378
    %v1414 = vunpack.c.h.b16 %v378
    %v1415 = vunpack.c.l.b16 %v379
    %v1416 = vunpack.c.h.b16 %v379
    %v1417 = vunpack.c.l.b16 %v380
    %v1418 = vunpack.c.h.b16 %v380
    %v1419 = vunpack.c.l.b16 %v381
    %v1420 = vunpack.c.h.b16 %v381
    %v1421 = vunpack.c.l.b16 %v382
    %v1422 = vunpack.c.h.b16 %v382
    %v1423 = vunpack.c.l.b16 %v383
    %v1424 = vunpack.c.h.b16 %v383
    %v1425 = vunpack.c.l.b16 %v384
    %v1426 = vunpack.c.h.b16 %v384
    %v1427 = vunpack.c.l.b16 %v385
    %v1428 = vunpack.c.h.b16 %v385
    %v1429 = vunpack.c.l.b16 %v386
    %v1430 = vunpack.c.h.b16 %v386
    %v1431 = vunpack.c.l.b16 %v387
    %v1432 = vunpack.c.h.b16 %v387
    %v1433 = vunpack.c.l.b16 %v388
    %v1434 = vunpack.c.h.b16 %v388
    %v1435 = vunpack.c.l.b16 %v389
    %v1436 = vunpack.c.h.b16 %v389
    %v1437 = vunpack.c.l.b16 %v390
    %v1438 = vunpack.c.h.b16 %v390
    %v1439 = vunpack.c.l.b16 %v391
    %v1440 = vunpack.c.h.b16 %v391
    %v1441 = vunpack.c.l.b16 %v392
    %v1442 = vunpack.c.h.b16 %v392
    %v1443 = vunpack.c.l.b16 %v393
    %v1444 = vunpack.c.h.b16 %v393
    %v1445 = vunpack.c.l.b16 %v394
    %v1446 = vunpack.c.h.b16 %v394
    %v1447 = vunpack.c.l.b16 %v395
    %v1448 = vunpack.c.h.b16 %v395
    %v1449 = vunpack.c.l.b16 %v396
    %v1450 = vunpack.c.h.b16 %v396
    %v1451 = vunpack.c.l.b16 %v397
    %v1452 = vunpack.c.h.b16 %v397
    %v1453 = vunpack.c.l.b16 %v398
    %v1454 = vunpack.c.h.b16 %v398
    %v1455 = vunpack.c.l.b16 %v399
    %v1456 = vunpack.c.h.b16 %v399
    %v1457 = vunpack.c.l.b16 %v400
    %v1458 = vunpack.c.h.b16 %v400
    %v1459 = vunpack.c.l.b16 %v401
    %v1460 = vunpack.c.h.b16 %v401
    %v1461 = vunpack.c.l.b16 %v402
    %v1462 = vunpack.c.h.b16 %v402
    %v1463 = vunpack.c.l.b16 %v403
    %v1464 = vunpack.c.h.b16 %v403
    %v1465 = vunpack.c.l.b16 %v404
    %v1466 = vunpack.c.h.b16 %v404
    %v1467 = vunpack.c.l.b16 %v405
    %v1468 = vunpack.c.h.b16 %v405
    %v1469 = vunpack.c.l.b16 %v406
    %v1470 = vunpack.c.h.b16 %v406
    %v1471 = vunpack.c.l.b16 %v407
    %v1472 = vunpack.c.h.b16 %v407
    %v1473 = vunpack.c.l.b16 %v408
    %v1474 = vunpack.c.h.b16 %v408
    %v1475 = vunpack.c.l.b16 %v409
    %v1476 = vunpack.c.h.b16 %v409
    %v1477 = vunpack.c.l.b16 %v410
    %v1478 = vunpack.c.h.b16 %v410
    %v1479 = vunpack.c.l.b16 %v411
    %v1480 = vunpack.c.h.b16 %v411
    %v1481 = vunpack.c.l.b16 %v412
    %v1482 = vunpack.c.h.b16 %v412
    %v1483 = vunpack.c.l.b16 %v413
    %v1484 = vunpack.c.h.b16 %v413
    %v1485 = vunpack.c.l.b16 %v414
    %v1486 = vunpack.c.h.b16 %v414
    %v1487 = vunpack.c.l.b16 %v415
    %v1488 = vunpack.c.h.b16 %v415
    %v1489 = vunpack.c.l.b16 %v416
    %v1490 = vunpack.c.h.b16 %v416
    %v1491 = vunpack.c.l.b16 %v417
    %v1492 = vunpack.c.h.b16 %v417
    %v1493 = vunpack.c.l.b16 %v418
    %v1494 = vunpack.c.h.b16 %v418
    %v1495 = vunpack.c.l.b16 %v419
    %v1496 = vunpack.c.h.b16 %v419
    %v1497 = vunpack.c.l.b16 %v420
    %v1498 = vunpack.c.h.b16 %v420
    %v1499 = vunpack.c.l.b16 %v421
    %v1500 = vunpack.c.h.b16 %v421
    %v1501 = vunpack.c.l.b16 %v422
    %v1502 = vunpack.c.h.b16 %v422
    %v1503 = vunpack.c.l.b16 %v423
    %v1504 = vunpack.c.h.b16 %v423
    %v1505 = vunpack.c.l.b16 %v424
    %v1506 = vunpack.c.h.b16 %v424
    %v1507 = vunpack.c.l.b16 %v425
    %v1508 = vunpack.c.h.b16 %v425
    %v1509 = vunpack.c.l.b16 %v426
    %v1510 = vunpack.c.h.b16 %v426
    %v1511 = vunpack.c.l.b16 %v427
    %v1512 = vunpack.c.h.b16 %v427
    %v1513 = vunpack.c.l.b16 %v428
    %v1514 = vunpack.c.h.b16 %v428
    %v1515 = vunpack.c.l.b16 %v429
    %v1516 = vunpack.c.h.b16 %v429
    %v1517 = vunpack.c.l.b16 %v430
    %v1518 = vunpack.c.h.b16 %v430
    %v1519 = vunpack.c.l.b16 %v431
    %v1520 = vunpack.c.h.b16 %v431
    %v1521 = vunpack.c.l.b16 %v432
    %v1522 = vunpack.c.h.b16 %v432
    %v1523 = vunpack.c.l.b16 %v433
    %v1524 = vunpack.c.h.b16 %v433
    %v1525 = vunpack.c.l.b16 %v434
    %v1526 = vunpack.c.h.b16 %v434
    %v1527 = vunpack.c.l.b16 %v435
    %v1528 = vunpack.c.h.b16 %v435
    %v1529 = vunpack.c.l.b16 %v436
    %v1530 = vunpack.c.h.b16 %v436
    %v1531 = vunpack.c.l.b16 %v437
    %v1532 = vunpack.c.h.b16 %v437
    %v1533 = vunpack.c.l.b16 %v438
    %v1534 = vunpack.c.h.b16 %v438
    %v1535 = vunpack.c.l.b16 %v439
    %v1536 = vunpack.c.h.b16 %v439
    %v1537 = vunpack.c.l.b16 %v440
    %v1538 = vunpack.c.h.b16 %v440
    %v1539 = vunpack.c.l.b16 %v441
    %v1540 = vunpack.c.h.b16 %v441
    %v1541 = vunpack.c.l.b16 %v442
    %v1542 = vunpack.c.h.b16 %v442
    %v1543 = vunpack.c.l.b16 %v443
    %v1544 = vunpack.c.h.b16 %v443
    %v1545 = vunpack.c.l.b16 %v444
    %v1546 = vunpack.c.h.b16 %v444
    %v1547 = vunpack.c.l.b16 %v445
    %v1548 = vunpack.c.h.b16 %v445
    %v1549 = vunpack.c.l.b16 %v446
    %v1550 = vunpack.c.h.b16 %v446
    %v1551 = vunpack.c.l.b16 %v447
    %v1552 = vunpack.c.h.b16 %v447
    %v1553 = vunpack.c.l.b16 %v448
    %v1554 = vunpack.c.h.b16 %v448
    %v1555 = vunpack.c.l.b16 %v449
    %v1556 = vunpack.c.h.b16 %v449
    %v1557 = vunpack.c.l.b16 %v450
    %v1558 = vunpack.c.h.b16 %v450
    %v1559 = vunpack.c.l.b16 %v451
    %v1560 = vunpack.c.h.b16 %v451
    %v1561 = vunpack.c.l.b16 %v452
    %v1562 = vunpack.c.h.b16 %v452
    %v1563 = vunpack.c.l.b16 %v453
    %v1564 = vunpack.c.h.b16 %v453
    %v1565 = vunpack.c.l.b16 %v454
    %v1566 = vunpack.c.h.b16 %v454
    %v1567 = vunpack.c.l.b16 %v455
    %v1568 = vunpack.c.h.b16 %v455
    %v1569 = vunpack.c.l.b16 %v456
    %v1570 = vunpack.c.h.b16 %v456
    %v1571 = vunpack.c.l.b16 %v457
    %v1572 = vunpack.c.h.b16 %v457
    %v1573 = vunpack.c.l.b16 %v458
    %v1574 = vunpack.c.h.b16 %v458
    %v1575 = vunpack.c.l.b16 %v459
    %v1576 = vunpack.c.h.b16 %v459
    %v1577 = vunpack.c.l.b16 %v460
    %v1578 = vunpack.c.h.b16 %v460
    %v1579 = vunpack.c.l.b16 %v461
    %v1580 = vunpack.c.h.b16 %v461
    %v1581 = vunpack.c.l.b16 %v462
    %v1582 = vunpack.c.h.b16 %v462
    %v1583 = vunpack.c.l.b16 %v463
    %v1584 = vunpack.c.h.b16 %v463
    %v1585 = vunpack.c.l.b16 %v464
    %v1586 = vunpack.c.h.b16 %v464
    %v1587 = vunpack.c.l.b16 %v465
    %v1588 = vunpack.c.h.b16 %v465
    %v1589 = vunpack.c.l.b16 %v466
    %v1590 = vunpack.c.h.b16 %v466
    %v1591 = vunpack.c.l.b16 %v467
    %v1592 = vunpack.c.h.b16 %v467
    %v1593 = vunpack.c.l.b16 %v468
    %v1594 = vunpack.c.h.b16 %v468
    %v1595 = vunpack.c.l.b16 %v469
    %v1596 = vunpack.c.h.b16 %v469
    %v1597 = vunpack.c.l.b16 %v470
    %v1598 = vunpack.c.h.b16 %v470
    %v1599 = vunpack.c.l.b16 %v471
    %v1600 = vunpack.c.h.b16 %v471
    %v1601 = vunpack.c.l.b16 %v472
    %v1602 = vunpack.c.h.b16 %v472
    %v1603 = vunpack.c.l.b16 %v473
    %v1604 = vunpack.c.h.b16 %v473
    %v1605 = vunpack.c.l.b16 %v474
    %v1606 = vunpack.c.h.b16 %v474
    %v1607 = vunpack.c.l.b16 %v475
    %v1608 = vunpack.c.h.b16 %v475
    %v1609 = vunpack.c.l.b16 %v476
    %v1610 = vunpack.c.h.b16 %v476
    %v1611 = vunpack.c.l.b16 %v477
    %v1612 = vunpack.c.h.b16 %v477
    %v1613 = vunpack.c.l.b16 %v478
    %v1614 = vunpack.c.h.b16 %v478
    %v1615 = vunpack.c.l.b16 %v479
    %v1616 = vunpack.c.h.b16 %v479
    %v1617 = vunpack.c.l.b16 %v480
    %v1618 = vunpack.c.h.b16 %v480
    %v1619 = vunpack.c.l.b16 %v481
    %v1620 = vunpack.c.h.b16 %v481
    %v1621 = vunpack.c.l.b16 %v482
    %v1622 = vunpack.c.h.b16 %v482
    %v1623 = vunpack.c.l.b16 %v483
    %v1624 = vunpack.c.h.b16 %v483
    %v1625 = vunpack.c.l.b16 %v484
    %v1626 = vunpack.c.h.b16 %v484
    %v1627 = vunpack.c.l.b16 %v485
    %v1628 = vunpack.c.h.b16 %v485
    %v1629 = vunpack.c.l.b16 %v486
    %v1630 = vunpack.c.h.b16 %v486
    %v1631 = vunpack.c.l.b16 %v487
    %v1632 = vunpack.c.h.b16 %v487
    %v1633 = vunpack.c.l.b16 %v488
    %v1634 = vunpack.c.h.b16 %v488
    %v1635 = vunpack.c.l.b16 %v489
    %v1636 = vunpack.c.h.b16 %v489
    %v1637 = vunpack.c.l.b16 %v490
    %v1638 = vunpack.c.h.b16 %v490
    %v1639 = vunpack.c.l.b16 %v491
    %v1640 = vunpack.c.h.b16 %v491
    %v1641 = vunpack.c.l.b16 %v492
    %v1642 = vunpack.c.h.b16 %v492
    %v1643 = vunpack.c.l.b16 %v493
    %v1644 = vunpack.c.h.b16 %v493
    %v1645 = vunpack.c.l.b16 %v494
    %v1646 = vunpack.c.h.b16 %v494
    %v1647 = vpack.c.b16 %v891, %v879
    %v1648 = vpack.c.b16 %v892, %v880
    %v1649 = vpack.c.b16 %v893, %v881
    %v1650 = vpack.c.b16 %v894, %v882
    %v1651 = vpack.c.b16 %v895, %v883
    %v1652 = vpack.c.b16 %v896, %v884
    %v1653 = vpack.c.b16 %v897, %v885
    %v1654 = vpack.c.b16 %v898, %v886
    %v1655 = vpack.c.b16 %v899, %v887
    %v1656 = vpack.c.b16 %v900, %v888
    %v1657 = vpack.c.b16 %v901, %v889
    %v1658 = vpack.c.b16 %v902, %v890
    %v1659 = vpack.c.b16 %v915, %v903
    %v1660 = vpack.c.b16 %v916, %v904
    %v1661 = vpack.c.b16 %v917, %v905
    %v1662 = vpack.c.b16 %v918, %v906
    %v1663 = vpack.c.b16 %v919, %v907
    %v1664 = vpack.c.b16 %v920, %v908
    %v1665 = vpack.c.b16 %v921, %v909
    %v1666 = vpack.c.b16 %v922, %v910
    %v1667 = vpack.c.b16 %v923, %v911
    %v1668 = vpack.c.b16 %v924, %v912
    %v1669 = vpack.c.b16 %v925, %v913
    %v1670 = vpack.c.b16 %v926, %v914
    %v1671 = vpack.c.b16 %v939, %v927
    %v1672 = vpack.c.b16 %v940, %v928
    %v1673 = vpack.c.b16 %v941, %v929
    %v1674 = vpack.c.b16 %v942, %v930
    %v1675 = vpack.c.b16 %v943, %v931
    %v1676 = vpack.c.b16 %v944, %v932
    %v1677 = vpack.c.b16 %v945, %v933
    %v1678 = vpack.c.b16 %v946, %v934
    %v1679 = vpack.c.b16 %v947, %v935
    %v1680 = vpack.c.b16 %v948, %v936
    %v1681 = vpack.c.b16 %v949, %v937
    %v1682 = vpack.c.b16 %v950, %v938
    %v1683 = vpack.c.b16 %v963, %v951
    %v1684 = vpack.c.b16 %v964, %v952
    %v1685 = vpack.c.b16 %v965, %v953
    %v1686 = vpack.c.b16 %v966, %v954
    %v1687 = vpack.c.b16 %v967, %v955
    %v1688 = vpack.c.b16 %v968, %v956
    %v1689 = vpack.c.b16 %v969, %v957
    %v1690 = vpack.c.b16 %v970, %v958
    %v1691 = vpack.c.b16 %v971, %v959
    %v1692 = vpack.c.b16 %v972, %v960
    %v1693 = vpack.c.b16 %v973, %v961
    %v1694 = vpack.c.b16 %v974, %v962
    %v1695 = vpack.c.b16 %v987, %v975
    %v1696 = vpack.c.b16 %v988, %v976
    %v1697 = vpack.c.b16 %v989, %v977
    %v1698 = vpack.c.b16 %v990, %v978
    %v1699 = vpack.c.b16 %v991, %v979
    %v1700 = vpack.c.b16 %v992, %v980
    %v1701 = vpack.c.b16 %v993, %v981
    %v1702 = vpack.c.b16 %v994, %v982
    %v1703 = vpack.c.b16 %v995, %v983
    %v1704 = vpack.c.b16 %v996, %v984
    %v1705 = vpack.c.b16 %v997, %v985
    %v1706 = vpack.c.b16 %v998, %v986
    %v1707 = vpack.c.b16 %v1011, %v999
    %v1708 = vpack.c.b16 %v1012, %v1000
    %v1709 = vpack.c.b16 %v1013, %v1001
    %v1710 = vpack.c.b16 %v1014, %v1002
    %v1711 = vpack.c.b16 %v1015, %v1003
    %v1712 = vpack.c.b16 %v1016, %v1004
    %v1713 = vpack.c.b16 %v1017, %v1005
    %v1714 = vpack.c.b16 %v1018, %v1006
    %v1715 = vpack.c.b16 %v1019, %v1007
    %v1716 = vpack.c.b16 %v1020, %v1008
    %v1717 = vpack.c.b16 %v1021, %v1009
    %v1718 = vpack.c.b16 %v1022, %v1010
    %v1719 = vpack.c.b16 %v1035, %v1023
    %v1720 = vpack.c.b16 %v1036, %v1024
    %v1721 = vpack.c.b16 %v1037, %v1025
    %v1722 = vpack.c.b16 %v1038, %v1026
    %v1723 = vpack.c.b16 %v1039, %v1027
    %v1724 = vpack.c.b16 %v1040, %v1028
    %v1725 = vpack.c.b16 %v1041, %v1029
    %v1726 = vpack.c.b16 %v1042, %v1030
    %v1727 = vpack.c.b16 %v1043, %v1031
    %v1728 = vpack.c.b16 %v1044, %v1032
    %v1729 = vpack.c.b16 %v1045, %v1033
    %v1730 = vpack.c.b16 %v1046, %v1034
    %v1731 = vpack.c.b16 %v1059, %v1047
    %v1732 = vpack.c.b16 %v1060, %v1048
    %v1733 = vpack.c.b16 %v1061, %v1049
    %v1734 = vpack.c.b16 %v1062, %v1050
    %v1735 = vpack.c.b16 %v1063, %v1051
    %v1736 = vpack.c.b16 %v1064, %v1052
    %v1737 = vpack.c.b16 %v1065, %v1053
    %v1738 = vpack.c.b16 %v1066, %v1054
    %v1739 = vpack.c.b16 %v1067, %v1055
    %v1740 = vpack.c.b16 %v1068, %v1056
    %v1741 = vpack.c.b16 %v1069, %v1057
    %v1742 = vpack.c.b16 %v1070, %v1058
    %v1743 = vpack.c.b16 %v1083, %v1071
    %v1744 = vpack.c.b16 %v1084, %v1072
    %v1745 = vpack.c.b16 %v1085, %v1073
    %v1746 = vpack.c.b16 %v1086, %v1074
    %v1747 = vpack.c.b16 %v1087, %v1075
    %v1748 = vpack.c.b16 %v1088, %v1076
    %v1749 = vpack.c.b16 %v1089, %v1077
    %v1750 = vpack.c.b16 %v1090, %v1078
    %v1751 = vpack.c.b16 %v1091, %v1079
    %v1752 = vpack.c.b16 %v1092, %v1080
    %v1753 = vpack.c.b16 %v1093, %v1081
    %v1754 = vpack.c.b16 %v1094, %v1082
    %v1755 = vpack.c.b16 %v1107, %v1095
    %v1756 = vpack.c.b16 %v1108, %v1096
    %v1757 = vpack.c.b16 %v1109, %v1097
    %v1758 = vpack.c.b16 %v1110, %v1098
    %v1759 = vpack.c.b16 %v1111, %v1099
    %v1760 = vpack.c.b16 %v1112, %v1100
    %v1761 = vpack.c.b16 %v1113, %v1101
    %v1762 = vpack.c.b16 %v1114, %v1102
    %v1763 = vpack.c.b16 %v1115, %v1103
    %v1764 = vpack.c.b16 %v1116, %v1104
    %v1765 = vpack.c.b16 %v1117, %v1105
    %v1766 = vpack.c.b16 %v1118, %v1106
    %v1767 = vpack.c.b16 %v1131, %v1119
    %v1768 = vpack.c.b16 %v1132, %v1120
    %v1769 = vpack.c.b16 %v1133, %v1121
    %v1770 = vpack.c.b16 %v1134, %v1122
    %v1771 = vpack.c.b16 %v1135, %v1123
    %v1772 = vpack.c.b16 %v1136, %v1124
    %v1773 = vpack.c.b16 %v1137, %v1125
    %v1774 = vpack.c.b16 %v1138, %v1126
    %v1775 = vpack.c.b16 %v1139, %v1127
    %v1776 = vpack.c.b16 %v1140, %v1128
    %v1777 = vpack.c.b16 %v1141, %v1129
    %v1778 = vpack.c.b16 %v1142, %v1130
    %v1779 = vpack.c.b16 %v1155, %v1143
    %v1780 = vpack.c.b16 %v1156, %v1144
    %v1781 = vpack.c.b16 %v1157, %v1145
    %v1782 = vpack.c.b16 %v1158, %v1146
    %v1783 = vpack.c.b16 %v1159, %v1147
    %v1784 = vpack.c.b16 %v1160, %v1148
    %v1785 = vpack.c.b16 %v1161, %v1149
    %v1786 = vpack.c.b16 %v1162, %v1150
    %v1787 = vpack.c.b16 %v1163, %v1151
    %v1788 = vpack.c.b16 %v1164, %v1152
    %v1789 = vpack.c.b16 %v1165, %v1153
    %v1790 = vpack.c.b16 %v1166, %v1154
    %v1791 = vpack.c.b16 %v1179, %v1167
    %v1792 = vpack.c.b16 %v1180, %v1168
    %v1793 = vpack.c.b16 %v1181, %v1169
    %v1794 = vpack.c.b16 %v1182, %v1170
    %v1795 = vpack.c.b16 %v1183, %v1171
    %v1796 = vpack.c.b16 %v1184, %v1172
    %v1797 = vpack.c.b16 %v1185, %v1173
    %v1798 = vpack.c.b16 %v1186, %v1174
    %v1799 = vpack.c.b16 %v1187, %v1175
    %v1800 = vpack.c.b16 %v1188, %v1176
    %v1801 = vpack.c.b16 %v1189, %v1177
    %v1802 = vpack.c.b16 %v1190, %v1178
    %v1803 = vpack.c.b16 %v1203, %v1191
    %v1804 = vpack.c.b16 %v1204, %v1192
    %v1805 = vpack.c.b16 %v1205, %v1193
    %v1806 = vpack.c.b16 %v1206, %v1194
    %v1807 = vpack.c.b16 %v1207, %v1195
    %v1808 = vpack.c.b16 %v1208, %v1196
    %v1809 = vpack.c.b16 %v1209, %v1197
    %v1810 = vpack.c.b16 %v1210, %v1198
    %v1811 = vpack.c.b16 %v1211, %v1199
    %v1812 = vpack.c.b16 %v1212, %v1200
    %v1813 = vpack.c.b16 %v1213, %v1201
    %v1814 = vpack.c.b16 %v1214, %v1202
    %v1815 = vpack.c.b16 %v1227, %v1215
    %v1816 = vpack.c.b16 %v1228, %v1216
    %v1817 = vpack.c.b16 %v1229, %v1217
    %v1818 = vpack.c.b16 %v1230, %v1218
    %v1819 = vpack.c.b16 %v1231, %v1219
    %v1820 = vpack.c.b16 %v1232, %v1220
    %v1821 = vpack.c.b16 %v1233, %v1221
    %v1822 = vpack.c.b16 %v1234, %v1222
    %v1823 = vpack.c.b16 %v1235, %v1223
    %v1824 = vpack.c.b16 %v1236, %v1224
    %v1825 = vpack.c.b16 %v1237, %v1225
    %v1826 = vpack.c.b16 %v1238, %v1226
    %v1827 = vpack.c.b16 %v1251, %v1239
    %v1828 = vpack.c.b16 %v1252, %v1240
    %v1829 = vpack.c.b16 %v1253, %v1241
    %v1830 = vpack.c.b16 %v1254, %v1242
    %v1831 = vpack.c.b16 %v1255, %v1243
    %v1832 = vpack.c.b16 %v1256, %v1244
    %v1833 = vpack.c.b16 %v1257, %v1245
    %v1834 = vpack.c.b16 %v1258, %v1246
    %v1835 = vpack.c.b16 %v1259, %v1247
    %v1836 = vpack.c.b16 %v1260, %v1248
    %v1837 = vpack.c.b16 %v1261, %v1249
    %v1838 = vpack.c.b16 %v1262, %v1250
    %v1839 = vpack.c.b16 %v1275, %v1263
    %v1840 = vpack.c.b16 %v1276, %v1264
    %v1841 = vpack.c.b16 %v1277, %v1265
    %v1842 = vpack.c.b16 %v1278, %v1266
    %v1843 = vpack.c.b16 %v1279, %v1267
    %v1844 = vpack.c.b16 %v1280, %v1268
    %v1845 = vpack.c.b16 %v1281, %v1269
    %v1846 = vpack.c.b16 %v1282, %v1270
    %v1847 = vpack.c.b16 %v1283, %v1271
    %v1848 = vpack.c.b16 %v1284, %v1272
    %v1849 = vpack.c.b16 %v1285, %v1273
    %v1850 = vpack.c.b16 %v1286, %v1274
    %v1851 = vpack.c.b16 %v1299, %v1287
    %v1852 = vpack.c.b16 %v1300, %v1288
    %v1853 = vpack.c.b16 %v1301, %v1289
    %v1854 = vpack.c.b16 %v1302, %v1290
    %v1855 = vpack.c.b16 %v1303, %v1291
    %v1856 = vpack.c.b16 %v1304, %v1292
    %v1857 = vpack.c.b16 %v1305, %v1293
    %v1858 = vpack.c.b16 %v1306, %v1294
    %v1859 = vpack.c.b16 %v1307, %v1295
    %v1860 = vpack.c.b16 %v1308, %v1296
    %v1861 = vpack.c.b16 %v1309, %v1297
    %v1862 = vpack.c.b16 %v1310, %v1298
    %v1863 = vpack.c.b16 %v1323, %v1311
    %v1864 = vpack.c.b16 %v1324, %v1312
    %v1865 = vpack.c.b16 %v1325, %v1313
    %v1866 = vpack.c.b16 %v1326, %v1314
    %v1867 = vpack.c.b16 %v1327, %v1315
    %v1868 = vpack.c.b16 %v1328, %v1316
    %v1869 = vpack.c.b16 %v1329, %v1317
    %v1870 = vpack.c.b16 %v1330, %v1318
    %v1871 = vpack.c.b16 %v1331, %v1319
    %v1872 = vpack.c.b16 %v1332, %v1320
    %v1873 = vpack.c.b16 %v1333, %v1321
    %v1874 = vpack.c.b16 %v1334, %v1322
    %v1875 = vpack.c.b16 %v1347, %v1335
    %v1876 = vpack.c.b16 %v1348, %v1336
    %v1877 = vpack.c.b16 %v1349, %v1337
    %v1878 = vpack.c.b16 %v1350, %v1338
    %v1879 = vpack.c.b16 %v1351, %v1339
    %v1880 = vpack.c.b16 %v1352, %v1340
    %v1881 = vpack.c.b16 %v1353, %v1341
    %v1882 = vpack.c.b16 %v1354, %v1342
    %v1883 = vpack.c.b16 %v1355, %v1343
    %v1884 = vpack.c.b16 %v1356, %v1344
    %v1885 = vpack.c.b16 %v1357, %v1345
    %v1886 = vpack.c.b16 %v1358, %v1346
    %v1887 = vpack.c.b16 %v1371, %v1359
    %v1888 = vpack.c.b16 %v1372, %v1360
    %v1889 = vpack.c.b16 %v1373, %v1361
    %v1890 = vpack.c.b16 %v1374, %v1362
    %v1891 = vpack.c.b16 %v1375, %v1363
    %v1892 = vpack.c.b16 %v1376, %v1364
    %v1893 = vpack.c.b16 %v1377, %v1365
    %v1894 = vpack.c.b16 %v1378, %v1366
    %v1895 = vpack.c.b16 %v1379, %v1367
    %v1896 = vpack.c.b16 %v1380, %v1368
    %v1897 = vpack.c.b16 %v1381, %v1369
    %v1898 = vpack.c.b16 %v1382, %v1370
    %v1899 = vpack.c.b16 %v1395, %v1383
    %v1900 = vpack.c.b16 %v1396, %v1384
    %v1901 = vpack.c.b16 %v1397, %v1385
    %v1902 = vpack.c.b16 %v1398, %v1386
    %v1903 = vpack.c.b16 %v1399, %v1387
    %v1904 = vpack.c.b16 %v1400, %v1388
    %v1905 = vpack.c.b16 %v1401, %v1389
    %v1906 = vpack.c.b16 %v1402, %v1390
    %v1907 = vpack.c.b16 %v1403, %v1391
    %v1908 = vpack.c.b16 %v1404, %v1392
    %v1909 = vpack.c.b16 %v1405, %v1393
    %v1910 = vpack.c.b16 %v1406, %v1394
    %v1911 = vpack.c.b16 %v1419, %v1407
    %v1912 = vpack.c.b16 %v1420, %v1408
    %v1913 = vpack.c.b16 %v1421, %v1409
    %v1914 = vpack.c.b16 %v1422, %v1410
    %v1915 = vpack.c.b16 %v1423, %v1411
    %v1916 = vpack.c.b16 %v1424, %v1412
    %v1917 = vpack.c.b16 %v1425, %v1413
    %v1918 = vpack.c.b16 %v1426, %v1414
    %v1919 = vpack.c.b16 %v1427, %v1415
    %v1920 = vpack.c.b16 %v1428, %v1416
    %v1921 = vpack.c.b16 %v1429, %v1417
    %v1922 = vpack.c.b16 %v1430, %v1418
    %v1923 = vpack.c.b16 %v1443, %v1431
    %v1924 = vpack.c.b16 %v1444, %v1432
    %v1925 = vpack.c.b16 %v1445, %v1433
    %v1926 = vpack.c.b16 %v1446, %v1434
    %v1927 = vpack.c.b16 %v1447, %v1435
    %v1928 = vpack.c.b16 %v1448, %v1436
    %v1929 = vpack.c.b16 %v1449, %v1437
    %v1930 = vpack.c.b16 %v1450, %v1438
    %v1931 = vpack.c.b16 %v1451, %v1439
    %v1932 = vpack.c.b16 %v1452, %v1440
    %v1933 = vpack.c.b16 %v1453, %v1441
    %v1934 = vpack.c.b16 %v1454, %v1442
    %v1935 = vpack.c.b16 %v1467, %v1455
    %v1936 = vpack.c.b16 %v1468, %v1456
    %v1937 = vpack.c.b16 %v1469, %v1457
    %v1938 = vpack.c.b16 %v1470, %v1458
    %v1939 = vpack.c.b16 %v1471, %v1459
    %v1940 = vpack.c.b16 %v1472, %v1460
    %v1941 = vpack.c.b16 %v1473, %v1461
    %v1942 = vpack.c.b16 %v1474, %v1462
    %v1943 = vpack.c.b16 %v1475, %v1463
    %v1944 = vpack.c.b16 %v1476, %v1464
    %v1945 = vpack.c.b16 %v1477, %v1465
    %v1946 = vpack.c.b16 %v1478, %v1466
    %v1947 = vpack.c.b16 %v1491, %v1479
    %v1948 = vpack.c.b16 %v1492, %v1480
    %v1949 = vpack.c.b16 %v1493, %v1481
    %v1950 = vpack.c.b16 %v1494, %v1482
    %v1951 = vpack.c.b16 %v1495, %v1483
    %v1952 = vpack.c.b16 %v1496, %v1484
    %v1953 = vpack.c.b16 %v1497, %v1485
    %v1954 = vpack.c.b16 %v1498, %v1486
    %v1955 = vpack.c.b16 %v1499, %v1487
    %v1956 = vpack.c.b16 %v1500, %v1488
    %v1957 = vpack.c.b16 %v1501, %v1489
    %v1958 = vpack.c.b16 %v1502, %v1490
    %v1959 = vpack.c.b16 %v1515, %v1503
    %v1960 = vpack.c.b16 %v1516, %v1504
    %v1961 = vpack.c.b16 %v1517, %v1505
    %v1962 = vpack.c.b16 %v1518, %v1506
    %v1963 = vpack.c.b16 %v1519, %v1507
    %v1964 = vpack.c.b16 %v1520, %v1508
    %v1965 = vpack.c.b16 %v1521, %v1509
    %v1966 = vpack.c.b16 %v1522, %v1510
    %v1967 = vpack.c.b16 %v1523, %v1511
    %v1968 = vpack.c.b16 %v1524, %v1512
    %v1969 = vpack.c.b16 %v1525, %v1513
    %v1970 = vpack.c.b16 %v1526, %v1514
    %v1971 = vpack.c.b16 %v1539, %v1527
    %v1972 = vpack.c.b16 %v1540, %v1528
    %v1973 = vpack.c.b16 %v1541, %v1529
    %v1974 = vpack.c.b16 %v1542, %v1530
    %v1975 = vpack.c.b16 %v1543, %v1531
    %v1976 = vpack.c.b16 %v1544, %v1532
    %v1977 = vpack.c.b16 %v1545, %v1533
    %v1978 = vpack.c.b16 %v1546, %v1534
    %v1979 = vpack.c.b16 %v1547, %v1535
    %v1980 = vpack.c.b16 %v1548, %v1536
    %v1981 = vpack.c.b16 %v1549, %v1537
    %v1982 = vpack.c.b16 %v1550, %v1538
    %v1983 = vpack.c.b16 %v1563, %v1551
    %v1984 = vpack.c.b16 %v1564, %v1552
    %v1985 = vpack.c.b16 %v1565, %v1553
    %v1986 = vpack.c.b16 %v1566, %v1554
    %v1987 = vpack.c.b16 %v1567, %v1555
    %v1988 = vpack.c.b16 %v1568, %v1556
    %v1989 = vpack.c.b16 %v1569, %v1557
    %v1990 = vpack.c.b16 %v1570, %v1558
    %v1991 = vpack.c.b16 %v1571, %v1559
    %v1992 = vpack.c.b16 %v1572, %v1560
    %v1993 = vpack.c.b16 %v1573, %v1561
    %v1994 = vpack.c.b16 %v1574, %v1562
    %v1995 = vpack.c.b16 %v1587, %v1575
    %v1996 = vpack.c.b16 %v1588, %v1576
    %v1997 = vpack.c.b16 %v1589, %v1577
    %v1998 = vpack.c.b16 %v1590, %v1578
    %v1999 = vpack.c.b16 %v1591, %v1579
    %v2000 = vpack.c.b16 %v1592, %v1580
    %v2001 = vpack.c.b16 %v1593, %v1581
    %v2002 = vpack.c.b16 %v1594, %v1582
    %v2003 = vpack.c.b16 %v1595, %v1583
    %v2004 = vpack.c.b16 %v1596, %v1584
    %v2005 = vpack.c.b16 %v1597, %v1585
    %v2006 = vpack.c.b16 %v1598, %v1586
    %v2007 = vpack.c.b16 %v1611, %v1599
    %v2008 = vpack.c.b16 %v1612, %v1600
    %v2009 = vpack.c.b16 %v1613, %v1601
    %v2010 = vpack.c.b16 %v1614, %v1602
    %v2011 = vpack.c.b16 %v1615, %v1603
    %v2012 = vpack.c.b16 %v1616, %v1604
    %v2013 = vpack.c.b16 %v1617, %v1605
    %v2014 = vpack.c.b16 %v1618, %v1606
    %v2015 = vpack.c.b16 %v1619, %v1607
    %v2016 = vpack.c.b16 %v1620, %v1608
    %v2017 = vpack.c.b16 %v1621, %v1609
    %v2018 = vpack.c.b16 %v1622, %v1610
    %v2019 = vpack.c.b16 %v1635, %v1623
    %v2020 = vpack.c.b16 %v1636, %v1624
    %v2021 = vpack.c.b16 %v1637, %v1625
    %v2022 = vpack.c.b16 %v1638, %v1626
    %v2023 = vpack.c.b16 %v1639, %v1627
    %v2024 = vpack.c.b16 %v1640, %v1628
    %v2025 = vpack.c.b16 %v1641, %v1629
    %v2026 = vpack.c.b16 %v1642, %v1630
    %v2027 = vpack.c.b16 %v1643, %v1631
    %v2028 = vpack.c.b16 %v1644, %v1632
    %v2029 = vpack.c.b16 %v1645, %v1633
    %v2030 = vpack.c.b16 %v1646, %v1634
    %2415 = vmatprep.subr.bf16.mxu0 %v1732
    %2416 = vmatpush1.bf16.msra.mxu0 %v1731
    %2417 = vmatprep.subr.bf16.mxu0 %v1720
    %2418 = vmatpush1.bf16.msra.mxu0 %v1719
    %2419 = vmatprep.subr.bf16.mxu0 %v1708
    %2420 = vmatpush1.bf16.msra.mxu0 %v1707
    %2421 = vmatprep.subr.bf16.mxu0 %v1696
    %2422 = vmatpush1.bf16.msra.mxu0 %v1695
    %2423 = vmatprep.subr.bf16.mxu0 %v1684
    %2424 = vmatpush1.bf16.msra.mxu0 %v1683
    %2425 = vmatprep.subr.bf16.mxu0 %v1672
    %2426 = vmatpush1.bf16.msra.mxu0 %v1671
    %2427 = vmatprep.subr.bf16.mxu0 %v1660
    %2428 = vmatpush1.bf16.msra.mxu0 %v1659
    %2429 = vmatprep.subr.bf16.mxu0 %v1648
    %2430 = vmatpush1.bf16.msra.mxu0 %v1647
    %2431 = vmatprep.subr.bf16.mxu0 %v1828
    %2432 = vmatpush2.bf16.msra.mxu0 %v1827
    %2433 = vmatprep.subr.bf16.mxu0 %v1816
    %2434 = vmatpush2.bf16.msra.mxu0 %v1815
    %2435 = vmatprep.subr.bf16.mxu0 %v1804
    %2436 = vmatpush2.bf16.msra.mxu0 %v1803
    %2437 = vmatprep.subr.bf16.mxu0 %v1792
    %2438 = vmatpush2.bf16.msra.mxu0 %v1791
    %2439 = vmatprep.subr.bf16.mxu0 %v1780
    %2440 = vmatpush2.bf16.msra.mxu0 %v1779
    %2441 = vmatprep.subr.bf16.mxu0 %v1768
    %2442 = vmatpush2.bf16.msra.mxu0 %v1767
    %2443 = vmatprep.subr.bf16.mxu0 %v1756
    %2444 = vmatpush2.bf16.msra.mxu0 %v1755
    %2445 = vmatprep.subr.bf16.mxu0 %v1744
    %2446 = vmatpush2.bf16.msra.mxu0 %v1743
    %2447 = vmatprep.mubr.bf16.mxu0 %v100
    %2448 = vmatmul.mubr.bf16.gmra.mxu0 %v99
    %v2449 = vpop.f32.mrf.mxu0
    %v2450 = vadd.f32 0.0, %v2449
    %v2451 = vpop.f32.mrf.mxu0
    %v2452 = vadd.f32 0.0, %v2451
    %v2453 = vpop.f32.mrf.mxu0
    %v2454 = vadd.f32 0.0, %v2453
    %v2455 = vpop.f32.mrf.mxu0
    %v2456 = vadd.f32 0.0, %v2455
    %2457 = vmatprep.mubr.bf16.mxu0 %v104
    %2458 = vmatmul.mubr.bf16.gmra.mxu0 %v103
    %v2459 = vpop.f32.mrf.mxu0
    %v2460 = vadd.f32 0.0, %v2459
    %v2461 = vpop.f32.mrf.mxu0
    %v2462 = vadd.f32 0.0, %v2461
    %v2463 = vpop.f32.mrf.mxu0
    %v2464 = vadd.f32 0.0, %v2463
    %v2465 = vpop.f32.mrf.mxu0
    %v2466 = vadd.f32 0.0, %v2465
    %2467 = vmatprep.mubr.bf16.mxu0 %v108
    %2468 = vmatmul.mubr.bf16.gmra.mxu0 %v107
    %v2469 = vpop.f32.mrf.mxu0
    %v2470 = vadd.f32 0.0, %v2469
    %v2471 = vpop.f32.mrf.mxu0
    %v2472 = vadd.f32 0.0, %v2471
    %v2473 = vpop.f32.mrf.mxu0
    %v2474 = vpop.f32.mrf.mxu0
    %2475 = vdwg.mxu0
    %2476 = vmatprep.subr.bf16.mxu0 %v1924
    %2477 = vmatpush1.bf16.msra.mxu0 %v1923
    %2478 = vmatprep.subr.bf16.mxu0 %v1912
    %2479 = vmatpush1.bf16.msra.mxu0 %v1911
    %2480 = vmatprep.subr.bf16.mxu0 %v1900
    %2481 = vmatpush1.bf16.msra.mxu0 %v1899
    %2482 = vmatprep.subr.bf16.mxu0 %v1888
    %2483 = vmatpush1.bf16.msra.mxu0 %v1887
    %2484 = vmatprep.subr.bf16.mxu0 %v1876
    %2485 = vmatpush1.bf16.msra.mxu0 %v1875
    %2486 = vmatprep.subr.bf16.mxu0 %v1864
    %2487 = vmatpush1.bf16.msra.mxu0 %v1863
    %2488 = vmatprep.subr.bf16.mxu0 %v1852
    %2489 = vmatpush1.bf16.msra.mxu0 %v1851
    %2490 = vmatprep.subr.bf16.mxu0 %v1840
    %2491 = vmatpush1.bf16.msra.mxu0 %v1839
    %2492 = vmatprep.subr.bf16.mxu0 %v2020
    %2493 = vmatpush2.bf16.msra.mxu0 %v2019
    %2494 = vmatprep.subr.bf16.mxu0 %v2008
    %2495 = vmatpush2.bf16.msra.mxu0 %v2007
    %2496 = vmatprep.subr.bf16.mxu0 %v1996
    %2497 = vmatpush2.bf16.msra.mxu0 %v1995
    %2498 = vmatprep.subr.bf16.mxu0 %v1984
    %2499 = vmatpush2.bf16.msra.mxu0 %v1983
    %2500 = vmatprep.subr.bf16.mxu0 %v1972
    %2501 = vmatpush2.bf16.msra.mxu0 %v1971
    %2502 = vmatprep.subr.bf16.mxu0 %v1960
    %2503 = vmatpush2.bf16.msra.mxu0 %v1959
    %2504 = vmatprep.subr.bf16.mxu0 %v1948
    %2505 = vmatpush2.bf16.msra.mxu0 %v1947
    %2506 = vmatprep.subr.bf16.mxu0 %v1936
    %2507 = vmatpush2.bf16.msra.mxu0 %v1935
    %2508 = vmatprep.mubr.bf16.mxu0 %v102
    %2509 = vmatmul.mubr.bf16.gmra.mxu0 %v101
    %v2510 = vpop.f32.mrf.mxu0
    %v2511 = vadd.f32 %v2450, %v2510
    %v2512 = vpop.f32.mrf.mxu0
    %v2513 = vadd.f32 %v2452, %v2512
    %v2514 = vpop.f32.mrf.mxu0
    %v2515 = vadd.f32 %v2454, %v2514
    %v2516 = vpop.f32.mrf.mxu0
    %v2517 = vadd.f32 %v2456, %v2516
    %2518 = vmatprep.mubr.bf16.mxu0 %v106
    %2519 = vmatmul.mubr.bf16.gmra.mxu0 %v105
    %v2520 = vpop.f32.mrf.mxu0
    %v2521 = vadd.f32 %v2460, %v2520
    %v2522 = vpop.f32.mrf.mxu0
    %v2523 = vadd.f32 %v2462, %v2522
    %v2524 = vpop.f32.mrf.mxu0
    %v2525 = vadd.f32 %v2464, %v2524
    %v2526 = vpop.f32.mrf.mxu0
    %v2527 = vadd.f32 %v2466, %v2526
    %2528 = vmatprep.mubr.bf16.mxu0 %v110
    %2529 = vmatmul.mubr.bf16.gmra.mxu0 %v109
    %v2530 = vpop.f32.mrf.mxu0
    %v2531 = vadd.f32 %v2470, %v2530
    %v2532 = vpop.f32.mrf.mxu0
    %v2533 = vadd.f32 %v2472, %v2532
    %v2534 = vpop.f32.mrf.mxu0
    %v2535 = vpop.f32.mrf.mxu0
    %2536 = vdwg.mxu0
    %2537 = vmatprep.subr.bf16.mxu0 %v1734
    %2538 = vmatpush1.bf16.msra.mxu0 %v1733
    %2539 = vmatprep.subr.bf16.mxu0 %v1722
    %2540 = vmatpush1.bf16.msra.mxu0 %v1721
    %2541 = vmatprep.subr.bf16.mxu0 %v1710
    %2542 = vmatpush1.bf16.msra.mxu0 %v1709
    %2543 = vmatprep.subr.bf16.mxu0 %v1698
    %2544 = vmatpush1.bf16.msra.mxu0 %v1697
    %2545 = vmatprep.subr.bf16.mxu0 %v1686
    %2546 = vmatpush1.bf16.msra.mxu0 %v1685
    %2547 = vmatprep.subr.bf16.mxu0 %v1674
    %2548 = vmatpush1.bf16.msra.mxu0 %v1673
    %2549 = vmatprep.subr.bf16.mxu0 %v1662
    %2550 = vmatpush1.bf16.msra.mxu0 %v1661
    %2551 = vmatprep.subr.bf16.mxu0 %v1650
    %2552 = vmatpush1.bf16.msra.mxu0 %v1649
    %2553 = vmatprep.subr.bf16.mxu0 %v1830
    %2554 = vmatpush2.bf16.msra.mxu0 %v1829
    %2555 = vmatprep.subr.bf16.mxu0 %v1818
    %2556 = vmatpush2.bf16.msra.mxu0 %v1817
    %2557 = vmatprep.subr.bf16.mxu0 %v1806
    %2558 = vmatpush2.bf16.msra.mxu0 %v1805
    %2559 = vmatprep.subr.bf16.mxu0 %v1794
    %2560 = vmatpush2.bf16.msra.mxu0 %v1793
    %2561 = vmatprep.subr.bf16.mxu0 %v1782
    %2562 = vmatpush2.bf16.msra.mxu0 %v1781
    %2563 = vmatprep.subr.bf16.mxu0 %v1770
    %2564 = vmatpush2.bf16.msra.mxu0 %v1769
    %2565 = vmatprep.subr.bf16.mxu0 %v1758
    %2566 = vmatpush2.bf16.msra.mxu0 %v1757
    %2567 = vmatprep.subr.bf16.mxu0 %v1746
    %2568 = vmatpush2.bf16.msra.mxu0 %v1745
    %2569 = vmatprep.mubr.bf16.mxu0 %v100
    %2570 = vmatmul.mubr.bf16.gmra.mxu0 %v99
    %v2571 = vpop.f32.mrf.mxu0
    %v2572 = vadd.f32 0.0, %v2571
    %v2573 = vpop.f32.mrf.mxu0
    %v2574 = vadd.f32 0.0, %v2573
    %v2575 = vpop.f32.mrf.mxu0
    %v2576 = vadd.f32 0.0, %v2575
    %v2577 = vpop.f32.mrf.mxu0
    %v2578 = vadd.f32 0.0, %v2577
    %2579 = vmatprep.mubr.bf16.mxu0 %v104
    %2580 = vmatmul.mubr.bf16.gmra.mxu0 %v103
    %v2581 = vpop.f32.mrf.mxu0
    %v2582 = vadd.f32 0.0, %v2581
    %v2583 = vpop.f32.mrf.mxu0
    %v2584 = vadd.f32 0.0, %v2583
    %v2585 = vpop.f32.mrf.mxu0
    %v2586 = vadd.f32 0.0, %v2585
    %v2587 = vpop.f32.mrf.mxu0
    %v2588 = vadd.f32 0.0, %v2587
    %2589 = vmatprep.mubr.bf16.mxu0 %v108
    %2590 = vmatmul.mubr.bf16.gmra.mxu0 %v107
    %v2591 = vpop.f32.mrf.mxu0
    %v2592 = vadd.f32 0.0, %v2591
    %v2593 = vpop.f32.mrf.mxu0
    %v2594 = vadd.f32 0.0, %v2593
    %v2595 = vpop.f32.mrf.mxu0
    %v2596 = vpop.f32.mrf.mxu0
    %2597 = vdwg.mxu0
    %2598 = vmatprep.subr.bf16.mxu0 %v1926
    %2599 = vmatpush1.bf16.msra.mxu0 %v1925
    %2600 = vmatprep.subr.bf16.mxu0 %v1914
    %2601 = vmatpush1.bf16.msra.mxu0 %v1913
    %2602 = vmatprep.subr.bf16.mxu0 %v1902
    %2603 = vmatpush1.bf16.msra.mxu0 %v1901
    %2604 = vmatprep.subr.bf16.mxu0 %v1890
    %2605 = vmatpush1.bf16.msra.mxu0 %v1889
    %2606 = vmatprep.subr.bf16.mxu0 %v1878
    %2607 = vmatpush1.bf16.msra.mxu0 %v1877
    %2608 = vmatprep.subr.bf16.mxu0 %v1866
    %2609 = vmatpush1.bf16.msra.mxu0 %v1865
    %2610 = vmatprep.subr.bf16.mxu0 %v1854
    %2611 = vmatpush1.bf16.msra.mxu0 %v1853
    %2612 = vmatprep.subr.bf16.mxu0 %v1842
    %2613 = vmatpush1.bf16.msra.mxu0 %v1841
    %2614 = vmatprep.subr.bf16.mxu0 %v2022
    %2615 = vmatpush2.bf16.msra.mxu0 %v2021
    %2616 = vmatprep.subr.bf16.mxu0 %v2010
    %2617 = vmatpush2.bf16.msra.mxu0 %v2009
    %2618 = vmatprep.subr.bf16.mxu0 %v1998
    %2619 = vmatpush2.bf16.msra.mxu0 %v1997
    %2620 = vmatprep.subr.bf16.mxu0 %v1986
    %2621 = vmatpush2.bf16.msra.mxu0 %v1985
    %2622 = vmatprep.subr.bf16.mxu0 %v1974
    %2623 = vmatpush2.bf16.msra.mxu0 %v1973
    %2624 = vmatprep.subr.bf16.mxu0 %v1962
    %2625 = vmatpush2.bf16.msra.mxu0 %v1961
    %2626 = vmatprep.subr.bf16.mxu0 %v1950
    %2627 = vmatpush2.bf16.msra.mxu0 %v1949
    %2628 = vmatprep.subr.bf16.mxu0 %v1938
    %2629 = vmatpush2.bf16.msra.mxu0 %v1937
    %2630 = vmatprep.mubr.bf16.mxu0 %v102
    %2631 = vmatmul.mubr.bf16.gmra.mxu0 %v101
    %v2632 = vpop.f32.mrf.mxu0
    %v2633 = vadd.f32 %v2572, %v2632
    %v2634 = vpop.f32.mrf.mxu0
    %v2635 = vadd.f32 %v2574, %v2634
    %v2636 = vpop.f32.mrf.mxu0
    %v2637 = vadd.f32 %v2576, %v2636
    %v2638 = vpop.f32.mrf.mxu0
    %v2639 = vadd.f32 %v2578, %v2638
    %2640 = vmatprep.mubr.bf16.mxu0 %v106
    %2641 = vmatmul.mubr.bf16.gmra.mxu0 %v105
    %v2642 = vpop.f32.mrf.mxu0
    %v2643 = vadd.f32 %v2582, %v2642
    %v2644 = vpop.f32.mrf.mxu0
    %v2645 = vadd.f32 %v2584, %v2644
    %v2646 = vpop.f32.mrf.mxu0
    %v2647 = vadd.f32 %v2586, %v2646
    %v2648 = vpop.f32.mrf.mxu0
    %v2649 = vadd.f32 %v2588, %v2648
    %2650 = vmatprep.mubr.bf16.mxu0 %v110
    %2651 = vmatmul.mubr.bf16.gmra.mxu0 %v109
    %v2652 = vpop.f32.mrf.mxu0
    %v2653 = vadd.f32 %v2592, %v2652
    %v2654 = vpop.f32.mrf.mxu0
    %v2655 = vadd.f32 %v2594, %v2654
    %v2656 = vpop.f32.mrf.mxu0
    %v2657 = vpop.f32.mrf.mxu0
    %2658 = vdwg.mxu0
    %2659 = vmatprep.subr.bf16.mxu0 %v1736
    %2660 = vmatpush1.bf16.msra.mxu0 %v1735
    %2661 = vmatprep.subr.bf16.mxu0 %v1724
    %2662 = vmatpush1.bf16.msra.mxu0 %v1723
    %2663 = vmatprep.subr.bf16.mxu0 %v1712
    %2664 = vmatpush1.bf16.msra.mxu0 %v1711
    %2665 = vmatprep.subr.bf16.mxu0 %v1700
    %2666 = vmatpush1.bf16.msra.mxu0 %v1699
    %2667 = vmatprep.subr.bf16.mxu0 %v1688
    %2668 = vmatpush1.bf16.msra.mxu0 %v1687
    %2669 = vmatprep.subr.bf16.mxu0 %v1676
    %2670 = vmatpush1.bf16.msra.mxu0 %v1675
    %2671 = vmatprep.subr.bf16.mxu0 %v1664
    %2672 = vmatpush1.bf16.msra.mxu0 %v1663
    %2673 = vmatprep.subr.bf16.mxu0 %v1652
    %2674 = vmatpush1.bf16.msra.mxu0 %v1651
    %2675 = vmatprep.subr.bf16.mxu0 %v1832
    %2676 = vmatpush2.bf16.msra.mxu0 %v1831
    %2677 = vmatprep.subr.bf16.mxu0 %v1820
    %2678 = vmatpush2.bf16.msra.mxu0 %v1819
    %2679 = vmatprep.subr.bf16.mxu0 %v1808
    %2680 = vmatpush2.bf16.msra.mxu0 %v1807
    %2681 = vmatprep.subr.bf16.mxu0 %v1796
    %2682 = vmatpush2.bf16.msra.mxu0 %v1795
    %2683 = vmatprep.subr.bf16.mxu0 %v1784
    %2684 = vmatpush2.bf16.msra.mxu0 %v1783
    %2685 = vmatprep.subr.bf16.mxu0 %v1772
    %2686 = vmatpush2.bf16.msra.mxu0 %v1771
    %2687 = vmatprep.subr.bf16.mxu0 %v1760
    %2688 = vmatpush2.bf16.msra.mxu0 %v1759
    %2689 = vmatprep.subr.bf16.mxu0 %v1748
    %2690 = vmatpush2.bf16.msra.mxu0 %v1747
    %2691 = vmatprep.mubr.bf16.mxu0 %v100
    %2692 = vmatmul.mubr.bf16.gmra.mxu0 %v99
    %v2693 = vpop.f32.mrf.mxu0
    %v2694 = vadd.f32 0.0, %v2693
    %v2695 = vpop.f32.mrf.mxu0
    %v2696 = vadd.f32 0.0, %v2695
    %v2697 = vpop.f32.mrf.mxu0
    %v2698 = vadd.f32 0.0, %v2697
    %v2699 = vpop.f32.mrf.mxu0
    %v2700 = vadd.f32 0.0, %v2699
    %2701 = vmatprep.mubr.bf16.mxu0 %v104
    %2702 = vmatmul.mubr.bf16.gmra.mxu0 %v103
    %v2703 = vpop.f32.mrf.mxu0
    %v2704 = vadd.f32 0.0, %v2703
    %v2705 = vpop.f32.mrf.mxu0
    %v2706 = vadd.f32 0.0, %v2705
    %v2707 = vpop.f32.mrf.mxu0
    %v2708 = vadd.f32 0.0, %v2707
    %v2709 = vpop.f32.mrf.mxu0
    %v2710 = vadd.f32 0.0, %v2709
    %2711 = vmatprep.mubr.bf16.mxu0 %v108
    %2712 = vmatmul.mubr.bf16.gmra.mxu0 %v107
    %v2713 = vpop.f32.mrf.mxu0
    %v2714 = vadd.f32 0.0, %v2713
    %v2715 = vpop.f32.mrf.mxu0
    %v2716 = vadd.f32 0.0, %v2715
    %v2717 = vpop.f32.mrf.mxu0
    %v2718 = vpop.f32.mrf.mxu0
    %2719 = vdwg.mxu0
    %2720 = vmatprep.subr.bf16.mxu0 %v1928
    %2721 = vmatpush1.bf16.msra.mxu0 %v1927
    %2722 = vmatprep.subr.bf16.mxu0 %v1916
    %2723 = vmatpush1.bf16.msra.mxu0 %v1915
    %2724 = vmatprep.subr.bf16.mxu0 %v1904
    %2725 = vmatpush1.bf16.msra.mxu0 %v1903
    %2726 = vmatprep.subr.bf16.mxu0 %v1892
    %2727 = vmatpush1.bf16.msra.mxu0 %v1891
    %2728 = vmatprep.subr.bf16.mxu0 %v1880
    %2729 = vmatpush1.bf16.msra.mxu0 %v1879
    %2730 = vmatprep.subr.bf16.mxu0 %v1868
    %2731 = vmatpush1.bf16.msra.mxu0 %v1867
    %2732 = vmatprep.subr.bf16.mxu0 %v1856
    %2733 = vmatpush1.bf16.msra.mxu0 %v1855
    %2734 = vmatprep.subr.bf16.mxu0 %v1844
    %2735 = vmatpush1.bf16.msra.mxu0 %v1843
    %2736 = vmatprep.subr.bf16.mxu0 %v2024
    %2737 = vmatpush2.bf16.msra.mxu0 %v2023
    %2738 = vmatprep.subr.bf16.mxu0 %v2012
    %2739 = vmatpush2.bf16.msra.mxu0 %v2011
    %2740 = vmatprep.subr.bf16.mxu0 %v2000
    %2741 = vmatpush2.bf16.msra.mxu0 %v1999
    %2742 = vmatprep.subr.bf16.mxu0 %v1988
    %2743 = vmatpush2.bf16.msra.mxu0 %v1987
    %2744 = vmatprep.subr.bf16.mxu0 %v1976
    %2745 = vmatpush2.bf16.msra.mxu0 %v1975
    %2746 = vmatprep.subr.bf16.mxu0 %v1964
    %2747 = vmatpush2.bf16.msra.mxu0 %v1963
    %2748 = vmatprep.subr.bf16.mxu0 %v1952
    %2749 = vmatpush2.bf16.msra.mxu0 %v1951
    %2750 = vmatprep.subr.bf16.mxu0 %v1940
    %2751 = vmatpush2.bf16.msra.mxu0 %v1939
    %2752 = vmatprep.mubr.bf16.mxu0 %v102
    %2753 = vmatmul.mubr.bf16.gmra.mxu0 %v101
    %v2754 = vpop.f32.mrf.mxu0
    %v2755 = vadd.f32 %v2694, %v2754
    %v2756 = vpop.f32.mrf.mxu0
    %v2757 = vadd.f32 %v2696, %v2756
    %v2758 = vpop.f32.mrf.mxu0
    %v2759 = vadd.f32 %v2698, %v2758
    %v2760 = vpop.f32.mrf.mxu0
    %v2761 = vadd.f32 %v2700, %v2760
    %2762 = vmatprep.mubr.bf16.mxu0 %v106
    %2763 = vmatmul.mubr.bf16.gmra.mxu0 %v105
    %v2764 = vpop.f32.mrf.mxu0
    %v2765 = vadd.f32 %v2704, %v2764
    %v2766 = vpop.f32.mrf.mxu0
    %v2767 = vadd.f32 %v2706, %v2766
    %v2768 = vpop.f32.mrf.mxu0
    %v2769 = vadd.f32 %v2708, %v2768
    %v2770 = vpop.f32.mrf.mxu0
    %v2771 = vadd.f32 %v2710, %v2770
    %2772 = vmatprep.mubr.bf16.mxu0 %v110
    %2773 = vmatmul.mubr.bf16.gmra.mxu0 %v109
    %v2774 = vpop.f32.mrf.mxu0
    %v2775 = vadd.f32 %v2714, %v2774
    %v2776 = vpop.f32.mrf.mxu0
    %v2777 = vadd.f32 %v2716, %v2776
    %v2778 = vpop.f32.mrf.mxu0
    %v2779 = vpop.f32.mrf.mxu0
    %2780 = vdwg.mxu0
    %2781 = vmatprep.subr.bf16.mxu0 %v1738
    %2782 = vmatpush1.bf16.msra.mxu0 %v1737
    %2783 = vmatprep.subr.bf16.mxu0 %v1726
    %2784 = vmatpush1.bf16.msra.mxu0 %v1725
    %2785 = vmatprep.subr.bf16.mxu0 %v1714
    %2786 = vmatpush1.bf16.msra.mxu0 %v1713
    %2787 = vmatprep.subr.bf16.mxu0 %v1702
    %2788 = vmatpush1.bf16.msra.mxu0 %v1701
    %2789 = vmatprep.subr.bf16.mxu0 %v1690
    %2790 = vmatpush1.bf16.msra.mxu0 %v1689
    %2791 = vmatprep.subr.bf16.mxu0 %v1678
    %2792 = vmatpush1.bf16.msra.mxu0 %v1677
    %2793 = vmatprep.subr.bf16.mxu0 %v1666
    %2794 = vmatpush1.bf16.msra.mxu0 %v1665
    %2795 = vmatprep.subr.bf16.mxu0 %v1654
    %2796 = vmatpush1.bf16.msra.mxu0 %v1653
    %2797 = vmatprep.subr.bf16.mxu0 %v1834
    %2798 = vmatpush2.bf16.msra.mxu0 %v1833
    %2799 = vmatprep.subr.bf16.mxu0 %v1822
    %2800 = vmatpush2.bf16.msra.mxu0 %v1821
    %2801 = vmatprep.subr.bf16.mxu0 %v1810
    %2802 = vmatpush2.bf16.msra.mxu0 %v1809
    %2803 = vmatprep.subr.bf16.mxu0 %v1798
    %2804 = vmatpush2.bf16.msra.mxu0 %v1797
    %2805 = vmatprep.subr.bf16.mxu0 %v1786
    %2806 = vmatpush2.bf16.msra.mxu0 %v1785
    %2807 = vmatprep.subr.bf16.mxu0 %v1774
    %2808 = vmatpush2.bf16.msra.mxu0 %v1773
    %2809 = vmatprep.subr.bf16.mxu0 %v1762
    %2810 = vmatpush2.bf16.msra.mxu0 %v1761
    %2811 = vmatprep.subr.bf16.mxu0 %v1750
    %2812 = vmatpush2.bf16.msra.mxu0 %v1749
    %2813 = vmatprep.mubr.bf16.mxu0 %v100
    %2814 = vmatmul.mubr.bf16.gmra.mxu0 %v99
    %v2815 = vpop.f32.mrf.mxu0
    %v2816 = vadd.f32 0.0, %v2815
    %v2817 = vpop.f32.mrf.mxu0
    %v2818 = vadd.f32 0.0, %v2817
    %v2819 = vpop.f32.mrf.mxu0
    %v2820 = vadd.f32 0.0, %v2819
    %v2821 = vpop.f32.mrf.mxu0
    %v2822 = vadd.f32 0.0, %v2821
    %2823 = vmatprep.mubr.bf16.mxu0 %v104
    %2824 = vmatmul.mubr.bf16.gmra.mxu0 %v103
    %v2825 = vpop.f32.mrf.mxu0
    %v2826 = vadd.f32 0.0, %v2825
    %v2827 = vpop.f32.mrf.mxu0
    %v2828 = vadd.f32 0.0, %v2827
    %v2829 = vpop.f32.mrf.mxu0
    %v2830 = vadd.f32 0.0, %v2829
    %v2831 = vpop.f32.mrf.mxu0
    %v2832 = vadd.f32 0.0, %v2831
    %2833 = vmatprep.mubr.bf16.mxu0 %v108
    %2834 = vmatmul.mubr.bf16.gmra.mxu0 %v107
    %v2835 = vpop.f32.mrf.mxu0
    %v2836 = vadd.f32 0.0, %v2835
    %v2837 = vpop.f32.mrf.mxu0
    %v2838 = vadd.f32 0.0, %v2837
    %v2839 = vpop.f32.mrf.mxu0
    %v2840 = vpop.f32.mrf.mxu0
    %2841 = vdwg.mxu0
    %2842 = vmatprep.subr.bf16.mxu0 %v1930
    %2843 = vmatpush1.bf16.msra.mxu0 %v1929
    %2844 = vmatprep.subr.bf16.mxu0 %v1918
    %2845 = vmatpush1.bf16.msra.mxu0 %v1917
    %2846 = vmatprep.subr.bf16.mxu0 %v1906
    %2847 = vmatpush1.bf16.msra.mxu0 %v1905
    %2848 = vmatprep.subr.bf16.mxu0 %v1894
    %2849 = vmatpush1.bf16.msra.mxu0 %v1893
    %2850 = vmatprep.subr.bf16.mxu0 %v1882
    %2851 = vmatpush1.bf16.msra.mxu0 %v1881
    %2852 = vmatprep.subr.bf16.mxu0 %v1870
    %2853 = vmatpush1.bf16.msra.mxu0 %v1869
    %2854 = vmatprep.subr.bf16.mxu0 %v1858
    %2855 = vmatpush1.bf16.msra.mxu0 %v1857
    %2856 = vmatprep.subr.bf16.mxu0 %v1846
    %2857 = vmatpush1.bf16.msra.mxu0 %v1845
    %2858 = vmatprep.subr.bf16.mxu0 %v2026
    %2859 = vmatpush2.bf16.msra.mxu0 %v2025
    %2860 = vmatprep.subr.bf16.mxu0 %v2014
    %2861 = vmatpush2.bf16.msra.mxu0 %v2013
    %2862 = vmatprep.subr.bf16.mxu0 %v2002
    %2863 = vmatpush2.bf16.msra.mxu0 %v2001
    %2864 = vmatprep.subr.bf16.mxu0 %v1990
    %2865 = vmatpush2.bf16.msra.mxu0 %v1989
    %2866 = vmatprep.subr.bf16.mxu0 %v1978
    %2867 = vmatpush2.bf16.msra.mxu0 %v1977
    %2868 = vmatprep.subr.bf16.mxu0 %v1966
    %2869 = vmatpush2.bf16.msra.mxu0 %v1965
    %2870 = vmatprep.subr.bf16.mxu0 %v1954
    %2871 = vmatpush2.bf16.msra.mxu0 %v1953
    %2872 = vmatprep.subr.bf16.mxu0 %v1942
    %2873 = vmatpush2.bf16.msra.mxu0 %v1941
    %2874 = vmatprep.mubr.bf16.mxu0 %v102
    %2875 = vmatmul.mubr.bf16.gmra.mxu0 %v101
    %v2876 = vpop.f32.mrf.mxu0
    %v2877 = vadd.f32 %v2816, %v2876
    %v2878 = vpop.f32.mrf.mxu0
    %v2879 = vadd.f32 %v2818, %v2878
    %v2880 = vpop.f32.mrf.mxu0
    %v2881 = vadd.f32 %v2820, %v2880
    %v2882 = vpop.f32.mrf.mxu0
    %v2883 = vadd.f32 %v2822, %v2882
    %2884 = vmatprep.mubr.bf16.mxu0 %v106
    %2885 = vmatmul.mubr.bf16.gmra.mxu0 %v105
    %v2886 = vpop.f32.mrf.mxu0
    %v2887 = vadd.f32 %v2826, %v2886
    %v2888 = vpop.f32.mrf.mxu0
    %v2889 = vadd.f32 %v2828, %v2888
    %v2890 = vpop.f32.mrf.mxu0
    %v2891 = vadd.f32 %v2830, %v2890
    %v2892 = vpop.f32.mrf.mxu0
    %v2893 = vadd.f32 %v2832, %v2892
    %2894 = vmatprep.mubr.bf16.mxu0 %v110
    %2895 = vmatmul.mubr.bf16.gmra.mxu0 %v109
    %v2896 = vpop.f32.mrf.mxu0
    %v2897 = vadd.f32 %v2836, %v2896
    %v2898 = vpop.f32.mrf.mxu0
    %v2899 = vadd.f32 %v2838, %v2898
    %v2900 = vpop.f32.mrf.mxu0
    %v2901 = vpop.f32.mrf.mxu0
    %2902 = vdwg.mxu0
    %2903 = vmatprep.subr.bf16.mxu0 %v1740
    %2904 = vmatpush1.bf16.msra.mxu0 %v1739
    %2905 = vmatprep.subr.bf16.mxu0 %v1728
    %2906 = vmatpush1.bf16.msra.mxu0 %v1727
    %2907 = vmatprep.subr.bf16.mxu0 %v1716
    %2908 = vmatpush1.bf16.msra.mxu0 %v1715
    %2909 = vmatprep.subr.bf16.mxu0 %v1704
    %2910 = vmatpush1.bf16.msra.mxu0 %v1703
    %2911 = vmatprep.subr.bf16.mxu0 %v1692
    %2912 = vmatpush1.bf16.msra.mxu0 %v1691
    %2913 = vmatprep.subr.bf16.mxu0 %v1680
    %2914 = vmatpush1.bf16.msra.mxu0 %v1679
    %2915 = vmatprep.subr.bf16.mxu0 %v1668
    %2916 = vmatpush1.bf16.msra.mxu0 %v1667
    %2917 = vmatprep.subr.bf16.mxu0 %v1656
    %2918 = vmatpush1.bf16.msra.mxu0 %v1655
    %2919 = vmatprep.subr.bf16.mxu0 %v1836
    %2920 = vmatpush2.bf16.msra.mxu0 %v1835
    %2921 = vmatprep.subr.bf16.mxu0 %v1824
    %2922 = vmatpush2.bf16.msra.mxu0 %v1823
    %2923 = vmatprep.subr.bf16.mxu0 %v1812
    %2924 = vmatpush2.bf16.msra.mxu0 %v1811
    %2925 = vmatprep.subr.bf16.mxu0 %v1800
    %2926 = vmatpush2.bf16.msra.mxu0 %v1799
    %2927 = vmatprep.subr.bf16.mxu0 %v1788
    %2928 = vmatpush2.bf16.msra.mxu0 %v1787
    %2929 = vmatprep.subr.bf16.mxu0 %v1776
    %2930 = vmatpush2.bf16.msra.mxu0 %v1775
    %2931 = vmatprep.subr.bf16.mxu0 %v1764
    %2932 = vmatpush2.bf16.msra.mxu0 %v1763
    %2933 = vmatprep.subr.bf16.mxu0 %v1752
    %2934 = vmatpush2.bf16.msra.mxu0 %v1751
    %2935 = vmatprep.mubr.bf16.mxu0 %v100
    %2936 = vmatmul.mubr.bf16.gmra.mxu0 %v99
    %v2937 = vpop.f32.mrf.mxu0
    %v2938 = vadd.f32 0.0, %v2937
    %v2939 = vpop.f32.mrf.mxu0
    %v2940 = vadd.f32 0.0, %v2939
    %v2941 = vpop.f32.mrf.mxu0
    %v2942 = vadd.f32 0.0, %v2941
    %v2943 = vpop.f32.mrf.mxu0
    %v2944 = vadd.f32 0.0, %v2943
    %2945 = vmatprep.mubr.bf16.mxu0 %v104
    %2946 = vmatmul.mubr.bf16.gmra.mxu0 %v103
    %v2947 = vpop.f32.mrf.mxu0
    %v2948 = vadd.f32 0.0, %v2947
    %v2949 = vpop.f32.mrf.mxu0
    %v2950 = vadd.f32 0.0, %v2949
    %v2951 = vpop.f32.mrf.mxu0
    %v2952 = vadd.f32 0.0, %v2951
    %v2953 = vpop.f32.mrf.mxu0
    %v2954 = vadd.f32 0.0, %v2953
    %2955 = vmatprep.mubr.bf16.mxu0 %v108
    %2956 = vmatmul.mubr.bf16.gmra.mxu0 %v107
    %v2957 = vpop.f32.mrf.mxu0
    %v2958 = vadd.f32 0.0, %v2957
    %v2959 = vpop.f32.mrf.mxu0
    %v2960 = vadd.f32 0.0, %v2959
    %v2961 = vpop.f32.mrf.mxu0
    %v2962 = vpop.f32.mrf.mxu0
    %2963 = vdwg.mxu0
    %2964 = vmatprep.subr.bf16.mxu0 %v1932
    %2965 = vmatpush1.bf16.msra.mxu0 %v1931
    %2966 = vmatprep.subr.bf16.mxu0 %v1920
    %2967 = vmatpush1.bf16.msra.mxu0 %v1919
    %2968 = vmatprep.subr.bf16.mxu0 %v1908
    %2969 = vmatpush1.bf16.msra.mxu0 %v1907
    %2970 = vmatprep.subr.bf16.mxu0 %v1896
    %2971 = vmatpush1.bf16.msra.mxu0 %v1895
    %2972 = vmatprep.subr.bf16.mxu0 %v1884
    %2973 = vmatpush1.bf16.msra.mxu0 %v1883
    %2974 = vmatprep.subr.bf16.mxu0 %v1872
    %2975 = vmatpush1.bf16.msra.mxu0 %v1871
    %2976 = vmatprep.subr.bf16.mxu0 %v1860
    %2977 = vmatpush1.bf16.msra.mxu0 %v1859
    %2978 = vmatprep.subr.bf16.mxu0 %v1848
    %2979 = vmatpush1.bf16.msra.mxu0 %v1847
    %2980 = vmatprep.subr.bf16.mxu0 %v2028
    %2981 = vmatpush2.bf16.msra.mxu0 %v2027
    %2982 = vmatprep.subr.bf16.mxu0 %v2016
    %2983 = vmatpush2.bf16.msra.mxu0 %v2015
    %2984 = vmatprep.subr.bf16.mxu0 %v2004
    %2985 = vmatpush2.bf16.msra.mxu0 %v2003
    %2986 = vmatprep.subr.bf16.mxu0 %v1992
    %2987 = vmatpush2.bf16.msra.mxu0 %v1991
    %2988 = vmatprep.subr.bf16.mxu0 %v1980
    %2989 = vmatpush2.bf16.msra.mxu0 %v1979
    %2990 = vmatprep.subr.bf16.mxu0 %v1968
    %2991 = vmatpush2.bf16.msra.mxu0 %v1967
    %2992 = vmatprep.subr.bf16.mxu0 %v1956
    %2993 = vmatpush2.bf16.msra.mxu0 %v1955
    %2994 = vmatprep.subr.bf16.mxu0 %v1944
    %2995 = vmatpush2.bf16.msra.mxu0 %v1943
    %2996 = vmatprep.mubr.bf16.mxu0 %v102
    %2997 = vmatmul.mubr.bf16.gmra.mxu0 %v101
    %v2998 = vpop.f32.mrf.mxu0
    %v2999 = vadd.f32 %v2938, %v2998
    %v3000 = vpop.f32.mrf.mxu0
    %v3001 = vadd.f32 %v2940, %v3000
    %v3002 = vpop.f32.mrf.mxu0
    %v3003 = vadd.f32 %v2942, %v3002
    %v3004 = vpop.f32.mrf.mxu0
    %v3005 = vadd.f32 %v2944, %v3004
    %3006 = vmatprep.mubr.bf16.mxu0 %v106
    %3007 = vmatmul.mubr.bf16.gmra.mxu0 %v105
    %v3008 = vpop.f32.mrf.mxu0
    %v3009 = vadd.f32 %v2948, %v3008
    %v3010 = vpop.f32.mrf.mxu0
    %v3011 = vadd.f32 %v2950, %v3010
    %v3012 = vpop.f32.mrf.mxu0
    %v3013 = vadd.f32 %v2952, %v3012
    %v3014 = vpop.f32.mrf.mxu0
    %v3015 = vadd.f32 %v2954, %v3014
    %3016 = vmatprep.mubr.bf16.mxu0 %v110
    %3017 = vmatmul.mubr.bf16.gmra.mxu0 %v109
    %v3018 = vpop.f32.mrf.mxu0
    %v3019 = vadd.f32 %v2958, %v3018
    %v3020 = vpop.f32.mrf.mxu0
    %v3021 = vadd.f32 %v2960, %v3020
    %v3022 = vpop.f32.mrf.mxu0
    %v3023 = vpop.f32.mrf.mxu0
    %3024 = vdwg.mxu0
    %3025 = vmatprep.subr.bf16.mxu0 %v1742
    %3026 = vmatpush1.bf16.msra.mxu0 %v1741
    %3027 = vmatprep.subr.bf16.mxu0 %v1730
    %3028 = vmatpush1.bf16.msra.mxu0 %v1729
    %3029 = vmatprep.subr.bf16.mxu0 %v1718
    %3030 = vmatpush1.bf16.msra.mxu0 %v1717
    %3031 = vmatprep.subr.bf16.mxu0 %v1706
    %3032 = vmatpush1.bf16.msra.mxu0 %v1705
    %3033 = vmatprep.subr.bf16.mxu0 %v1694
    %3034 = vmatpush1.bf16.msra.mxu0 %v1693
    %3035 = vmatprep.subr.bf16.mxu0 %v1682
    %3036 = vmatpush1.bf16.msra.mxu0 %v1681
    %3037 = vmatprep.subr.bf16.mxu0 %v1670
    %3038 = vmatpush1.bf16.msra.mxu0 %v1669
    %3039 = vmatprep.subr.bf16.mxu0 %v1658
    %3040 = vmatpush1.bf16.msra.mxu0 %v1657
    %3041 = vmatprep.subr.bf16.mxu0 %v1838
    %3042 = vmatpush2.bf16.msra.mxu0 %v1837
    %3043 = vmatprep.subr.bf16.mxu0 %v1826
    %3044 = vmatpush2.bf16.msra.mxu0 %v1825
    %3045 = vmatprep.subr.bf16.mxu0 %v1814
    %3046 = vmatpush2.bf16.msra.mxu0 %v1813
    %3047 = vmatprep.subr.bf16.mxu0 %v1802
    %3048 = vmatpush2.bf16.msra.mxu0 %v1801
    %3049 = vmatprep.subr.bf16.mxu0 %v1790
    %3050 = vmatpush2.bf16.msra.mxu0 %v1789
    %3051 = vmatprep.subr.bf16.mxu0 %v1778
    %3052 = vmatpush2.bf16.msra.mxu0 %v1777
    %3053 = vmatprep.subr.bf16.mxu0 %v1766
    %3054 = vmatpush2.bf16.msra.mxu0 %v1765
    %3055 = vmatprep.subr.bf16.mxu0 %v1754
    %3056 = vmatpush2.bf16.msra.mxu0 %v1753
    %3057 = vmatprep.mubr.bf16.mxu0 %v100
    %3058 = vmatmul.mubr.bf16.gmra.mxu0 %v99
    %v3059 = vpop.f32.mrf.mxu0
    %v3060 = vadd.f32 0.0, %v3059
    %v3061 = vpop.f32.mrf.mxu0
    %v3062 = vadd.f32 0.0, %v3061
    %v3063 = vpop.f32.mrf.mxu0
    %v3064 = vadd.f32 0.0, %v3063
    %v3065 = vpop.f32.mrf.mxu0
    %v3066 = vadd.f32 0.0, %v3065
    %3067 = vmatprep.mubr.bf16.mxu0 %v104
    %3068 = vmatmul.mubr.bf16.gmra.mxu0 %v103
    %v3069 = vpop.f32.mrf.mxu0
    %v3070 = vadd.f32 0.0, %v3069
    %v3071 = vpop.f32.mrf.mxu0
    %v3072 = vadd.f32 0.0, %v3071
    %v3073 = vpop.f32.mrf.mxu0
    %v3074 = vadd.f32 0.0, %v3073
    %v3075 = vpop.f32.mrf.mxu0
    %v3076 = vadd.f32 0.0, %v3075
    %3077 = vmatprep.mubr.bf16.mxu0 %v108
    %3078 = vmatmul.mubr.bf16.gmra.mxu0 %v107
    %v3079 = vpop.f32.mrf.mxu0
    %v3080 = vadd.f32 0.0, %v3079
    %v3081 = vpop.f32.mrf.mxu0
    %v3082 = vadd.f32 0.0, %v3081
    %v3083 = vpop.f32.mrf.mxu0
    %v3084 = vpop.f32.mrf.mxu0
    %3085 = vdwg.mxu0
    %3086 = vmatprep.subr.bf16.mxu0 %v1934
    %3087 = vmatpush1.bf16.msra.mxu0 %v1933
    %3088 = vmatprep.subr.bf16.mxu0 %v1922
    %3089 = vmatpush1.bf16.msra.mxu0 %v1921
    %3090 = vmatprep.subr.bf16.mxu0 %v1910
    %3091 = vmatpush1.bf16.msra.mxu0 %v1909
    %3092 = vmatprep.subr.bf16.mxu0 %v1898
    %3093 = vmatpush1.bf16.msra.mxu0 %v1897
    %3094 = vmatprep.subr.bf16.mxu0 %v1886
    %3095 = vmatpush1.bf16.msra.mxu0 %v1885
    %3096 = vmatprep.subr.bf16.mxu0 %v1874
    %3097 = vmatpush1.bf16.msra.mxu0 %v1873
    %3098 = vmatprep.subr.bf16.mxu0 %v1862
    %3099 = vmatpush1.bf16.msra.mxu0 %v1861
    %3100 = vmatprep.subr.bf16.mxu0 %v1850
    %3101 = vmatpush1.bf16.msra.mxu0 %v1849
    %3102 = vmatprep.subr.bf16.mxu0 %v2030
    %3103 = vmatpush2.bf16.msra.mxu0 %v2029
    %3104 = vmatprep.subr.bf16.mxu0 %v2018
    %3105 = vmatpush2.bf16.msra.mxu0 %v2017
    %3106 = vmatprep.subr.bf16.mxu0 %v2006
    %3107 = vmatpush2.bf16.msra.mxu0 %v2005
    %3108 = vmatprep.subr.bf16.mxu0 %v1994
    %3109 = vmatpush2.bf16.msra.mxu0 %v1993
    %3110 = vmatprep.subr.bf16.mxu0 %v1982
    %3111 = vmatpush2.bf16.msra.mxu0 %v1981
    %3112 = vmatprep.subr.bf16.mxu0 %v1970
    %3113 = vmatpush2.bf16.msra.mxu0 %v1969
    %3114 = vmatprep.subr.bf16.mxu0 %v1958
    %3115 = vmatpush2.bf16.msra.mxu0 %v1957
    %3116 = vmatprep.subr.bf16.mxu0 %v1946
    %3117 = vmatpush2.bf16.msra.mxu0 %v1945
    %3118 = vmatprep.mubr.bf16.mxu0 %v102
    %3119 = vmatmul.mubr.bf16.gmra.mxu0 %v101
    %v3120 = vpop.f32.mrf.mxu0
    %v3121 = vadd.f32 %v3060, %v3120
    %v3122 = vpop.f32.mrf.mxu0
    %v3123 = vadd.f32 %v3062, %v3122
    %v3124 = vpop.f32.mrf.mxu0
    %v3125 = vadd.f32 %v3064, %v3124
    %v3126 = vpop.f32.mrf.mxu0
    %v3127 = vadd.f32 %v3066, %v3126
    %3128 = vmatprep.mubr.bf16.mxu0 %v106
    %3129 = vmatmul.mubr.bf16.gmra.mxu0 %v105
    %v3130 = vpop.f32.mrf.mxu0
    %v3131 = vadd.f32 %v3070, %v3130
    %v3132 = vpop.f32.mrf.mxu0
    %v3133 = vadd.f32 %v3072, %v3132
    %v3134 = vpop.f32.mrf.mxu0
    %v3135 = vadd.f32 %v3074, %v3134
    %v3136 = vpop.f32.mrf.mxu0
    %v3137 = vadd.f32 %v3076, %v3136
    %3138 = vmatprep.mubr.bf16.mxu0 %v110
    %3139 = vmatmul.mubr.bf16.gmra.mxu0 %v109
    %v3140 = vpop.f32.mrf.mxu0
    %v3141 = vadd.f32 %v3080, %v3140
    %v3142 = vpop.f32.mrf.mxu0
    %v3143 = vadd.f32 %v3082, %v3142
    %v3144 = vpop.f32.mrf.mxu0
    %v3145 = vpop.f32.mrf.mxu0
    %3146 = vdwg.mxu0
    %vm3167 = vcmask 1040384
    %v3168 = vrot.slane %v2511, 7
    %v3169 = vrot.slane %v2513, 7
    %v3170 = vrot.slane %v2633, 7
    %v3171 = vrot.slane %v2635, 7
    %v3172 = vrot.slane %v2515, 7
    %v3173 = vsel %vm3167, %v3168, %v3172
    %v3174 = vrot.slane %v2517, 7
    %v3175 = vsel %vm3167, %v3169, %v3174
    %v3176 = vrot.slane %v2637, 7
    %v3177 = vsel %vm3167, %v3170, %v3176
    %v3178 = vrot.slane %v2639, 7
    %v3179 = vsel %vm3167, %v3171, %v3178
    %v3180 = vrot.slane %v2521, 7
    %v3181 = vsel %vm3167, %v3172, %v3180
    %v3182 = vrot.slane %v2523, 7
    %v3183 = vsel %vm3167, %v3174, %v3182
    %v3184 = vrot.slane %v2643, 7
    %v3185 = vsel %vm3167, %v3176, %v3184
    %v3186 = vrot.slane %v2645, 7
    %v3187 = vsel %vm3167, %v3178, %v3186
    %v3188 = vrot.slane %v2525, 7
    %v3189 = vsel %vm3167, %v3180, %v3188
    %v3190 = vrot.slane %v2527, 7
    %v3191 = vsel %vm3167, %v3182, %v3190
    %v3192 = vrot.slane %v2647, 7
    %v3193 = vsel %vm3167, %v3184, %v3192
    %v3194 = vrot.slane %v2649, 7
    %v3195 = vsel %vm3167, %v3186, %v3194
    %v3196 = vrot.slane %v2531, 7
    %v3197 = vsel %vm3167, %v3188, %v3196
    %v3198 = vrot.slane %v2533, 7
    %v3199 = vsel %vm3167, %v3190, %v3198
    %v3200 = vrot.slane %v2653, 7
    %v3201 = vsel %vm3167, %v3192, %v3200
    %v3202 = vrot.slane %v2655, 7
    %v3203 = vsel %vm3167, %v3194, %v3202
    %v3224 = vsel %vm3167, 0.0, %v3168
    %v3225 = vsel %vm3167, 0.0, %v3169
    %v3226 = vsel %vm3167, 0.0, %v3170
    %v3227 = vsel %vm3167, 0.0, %v3171
    %v3228 = vadd.f32 %v2755, %v3224
    %v3229 = vadd.f32 %v2757, %v3225
    %v3230 = vadd.f32 %v2877, %v3226
    %v3231 = vadd.f32 %v2879, %v3227
    %v3232 = vadd.f32 %v2759, %v3173
    %v3233 = vadd.f32 %v2761, %v3175
    %v3234 = vadd.f32 %v2881, %v3177
    %v3235 = vadd.f32 %v2883, %v3179
    %v3236 = vadd.f32 %v2765, %v3181
    %v3237 = vadd.f32 %v2767, %v3183
    %v3238 = vadd.f32 %v2887, %v3185
    %v3239 = vadd.f32 %v2889, %v3187
    %v3240 = vadd.f32 %v2769, %v3189
    %v3241 = vadd.f32 %v2771, %v3191
    %v3242 = vadd.f32 %v2891, %v3193
    %v3243 = vadd.f32 %v2893, %v3195
    %v3244 = vadd.f32 %v2775, %v3197
    %v3245 = vadd.f32 %v2777, %v3199
    %v3246 = vadd.f32 %v2897, %v3201
    %v3247 = vadd.f32 %v2899, %v3203
    %vm3268 = vcmask 1046528
    %v3269 = vrot.slane %v2999, 1
    %v3270 = vrot.slane %v3003, 1
    %v3271 = vsel %vm3268, %v3269, %v3270
    %v3272 = vrot.slane %v3001, 1
    %v3273 = vrot.slane %v3005, 1
    %v3274 = vsel %vm3268, %v3272, %v3273
    %v3275 = vrot.slane %v3121, 1
    %v3276 = vrot.slane %v3125, 1
    %v3277 = vsel %vm3268, %v3275, %v3276
    %v3278 = vrot.slane %v3123, 1
    %v3279 = vrot.slane %v3127, 1
    %v3280 = vsel %vm3268, %v3278, %v3279
    %v3281 = vrot.slane %v3009, 1
    %v3282 = vsel %vm3268, %v3270, %v3281
    %v3283 = vrot.slane %v3011, 1
    %v3284 = vsel %vm3268, %v3273, %v3283
    %v3285 = vrot.slane %v3131, 1
    %v3286 = vsel %vm3268, %v3276, %v3285
    %v3287 = vrot.slane %v3133, 1
    %v3288 = vsel %vm3268, %v3279, %v3287
    %v3289 = vrot.slane %v3013, 1
    %v3290 = vsel %vm3268, %v3281, %v3289
    %v3291 = vrot.slane %v3015, 1
    %v3292 = vsel %vm3268, %v3283, %v3291
    %v3293 = vrot.slane %v3135, 1
    %v3294 = vsel %vm3268, %v3285, %v3293
    %v3295 = vrot.slane %v3137, 1
    %v3296 = vsel %vm3268, %v3287, %v3295
    %v3297 = vrot.slane %v3019, 1
    %v3298 = vsel %vm3268, %v3289, %v3297
    %v3299 = vrot.slane %v3021, 1
    %v3300 = vsel %vm3268, %v3291, %v3299
    %v3301 = vrot.slane %v3141, 1
    %v3302 = vsel %vm3268, %v3293, %v3301
    %v3303 = vrot.slane %v3143, 1
    %v3304 = vsel %vm3268, %v3295, %v3303
    %vm3325 = vcmask 1042432
    %v3326 = vsel %vm3325, %v3297, 0.0
    %v3327 = vsel %vm3325, %v3299, 0.0
    %v3328 = vsel %vm3325, %v3301, 0.0
    %v3329 = vsel %vm3325, %v3303, 0.0
    %v3330 = vadd.f32 %v3228, %v3271
    %v3331 = vadd.f32 %v3229, %v3274
    %v3332 = vadd.f32 %v3230, %v3277
    %v3333 = vadd.f32 %v3231, %v3280
    %v3334 = vadd.f32 %v3232, %v3282
    %v3335 = vadd.f32 %v3233, %v3284
    %v3336 = vadd.f32 %v3234, %v3286
    %v3337 = vadd.f32 %v3235, %v3288
    %v3338 = vadd.f32 %v3236, %v3290
    %v3339 = vadd.f32 %v3237, %v3292
    %v3340 = vadd.f32 %v3238, %v3294
    %v3341 = vadd.f32 %v3239, %v3296
    %v3342 = vadd.f32 %v3240, %v3298
    %v3343 = vadd.f32 %v3241, %v3300
    %v3344 = vadd.f32 %v3242, %v3302
    %v3345 = vadd.f32 %v3243, %v3304
    %v3346 = vadd.f32 %v3244, %v3326
    %v3347 = vadd.f32 %v3245, %v3327
    %v3348 = vadd.f32 %v3246, %v3328
    %v3349 = vadd.f32 %v3247, %v3329
    %v3350 = vld [vmem:[#allocation6] sm:$0xf]
    %v3352 = vlaneseq
    %v3353 = vshrl.u32 %v3352, 7
    %v3354 = vsub.s32 0, %v3353
    %v3355 = vrot.slane %v3350, %v3354
    %v3356 = vlaneseq
    %v3357 = vshrl.u32 %v3356, 7
    %v3358 = vsub.s32 1, %v3357
    %v3359 = vrot.slane %v3350, %v3358
    %v3360 = vlaneseq
    %v3361 = vshrl.u32 %v3360, 7
    %v3362 = vsub.s32 2, %v3361
    %v3363 = vrot.slane %v3350, %v3362
    %v3364 = vlaneseq
    %v3365 = vshrl.u32 %v3364, 7
    %v3366 = vsub.s32 3, %v3365
    %v3367 = vrot.slane %v3350, %v3366
    %v3372 = vadd.f32 %v3330, %v3355
    %v3373 = vadd.f32 %v3331, %v3359
    %v3374 = vadd.f32 %v3332, %v3363
    %v3375 = vadd.f32 %v3333, %v3367
    %v3376 = vadd.f32 %v3334, %v3355
    %v3377 = vadd.f32 %v3335, %v3359
    %v3378 = vadd.f32 %v3336, %v3363
    %v3379 = vadd.f32 %v3337, %v3367
    %v3380 = vadd.f32 %v3338, %v3355
    %v3381 = vadd.f32 %v3339, %v3359
    %v3382 = vadd.f32 %v3340, %v3363
    %v3383 = vadd.f32 %v3341, %v3367
    %v3384 = vadd.f32 %v3342, %v3355
    %v3385 = vadd.f32 %v3343, %v3359
    %v3386 = vadd.f32 %v3344, %v3363
    %v3387 = vadd.f32 %v3345, %v3367
    %v3388 = vadd.f32 %v3346, %v3355
    %v3389 = vadd.f32 %v3347, %v3359
    %v3390 = vadd.f32 %v3348, %v3363
    %v3391 = vadd.f32 %v3349, %v3367
    %v3392 = vmax.f32 %v3372, 0.0
    %v3393 = vmax.f32 %v3373, 0.0
    %v3394 = vmax.f32 %v3374, 0.0
    %v3395 = vmax.f32 %v3375, 0.0
    %v3396 = vmax.f32 %v3376, 0.0
    %v3397 = vmax.f32 %v3377, 0.0
    %v3398 = vmax.f32 %v3378, 0.0
    %v3399 = vmax.f32 %v3379, 0.0
    %v3400 = vmax.f32 %v3380, 0.0
    %v3401 = vmax.f32 %v3381, 0.0
    %v3402 = vmax.f32 %v3382, 0.0
    %v3403 = vmax.f32 %v3383, 0.0
    %v3404 = vmax.f32 %v3384, 0.0
    %v3405 = vmax.f32 %v3385, 0.0
    %v3406 = vmax.f32 %v3386, 0.0
    %v3407 = vmax.f32 %v3387, 0.0
    %v3408 = vmax.f32 %v3388, 0.0
    %v3409 = vmax.f32 %v3389, 0.0
    %v3410 = vmax.f32 %v3390, 0.0
    %v3411 = vmax.f32 %v3391, 0.0
    %3413 = vset.pattern.permute.xlu0 0
    %3414 = vperm.xlu0 %3413, %v94
    %v3415 = vpop.permute.xlu0 %3414
    %3418 = vset.pattern.permute.xlu0 0
    %3419 = vperm.xlu0 %3418, %v95
    %v3420 = vpop.permute.xlu0 %3419
    %3423 = vset.pattern.permute.xlu0 0
    %3424 = vperm.xlu0 %3423, %v96
    %v3425 = vpop.permute.xlu0 %3424
    %3428 = vset.pattern.permute.xlu0 0
    %3429 = vperm.xlu0 %3428, %v97
    %v3430 = vpop.permute.xlu0 %3429
    %3433 = vset.pattern.permute.xlu0 0
    %3434 = vperm.xlu0 %3433, %v98
    %v3435 = vpop.permute.xlu0 %3434
    %v3437 = vmul.f32 %v3415, %v3392
    %v3438 = vmul.f32 %v3415, %v3393
    %v3439 = vmul.f32 %v3415, %v3394
    %v3440 = vmul.f32 %v3415, %v3395
    %v3441 = vmul.f32 %v3420, %v3396
    %v3442 = vmul.f32 %v3420, %v3397
    %v3443 = vmul.f32 %v3420, %v3398
    %v3444 = vmul.f32 %v3420, %v3399
    %v3445 = vmul.f32 %v3425, %v3400
    %v3446 = vmul.f32 %v3425, %v3401
    %v3447 = vmul.f32 %v3425, %v3402
    %v3448 = vmul.f32 %v3425, %v3403
    %v3449 = vmul.f32 %v3430, %v3404
    %v3450 = vmul.f32 %v3430, %v3405
    %v3451 = vmul.f32 %v3430, %v3406
    %v3452 = vmul.f32 %v3430, %v3407
    %v3453 = vmul.f32 %v3435, %v3408
    %v3454 = vmul.f32 %v3435, %v3409
    %v3455 = vmul.f32 %v3435, %v3410
    %v3456 = vmul.f32 %v3435, %v3411
    %v3457 = vpack.c.bf16 %v3441, %v3437
    %v3458 = vpack.c.bf16 %v3442, %v3438
    %v3459 = vpack.c.bf16 %v3443, %v3439
    %v3460 = vpack.c.bf16 %v3444, %v3440
    %v3461 = vpack.c.bf16 %v3449, %v3445
    %v3462 = vpack.c.bf16 %v3450, %v3446
    %v3463 = vpack.c.bf16 %v3451, %v3447
    %v3464 = vpack.c.bf16 %v3452, %v3448
    %v3465 = vpack.c.bf16 %v3453, %v3453
    %v3466 = vpack.c.bf16 %v3454, %v3454
    %v3467 = vpack.c.bf16 %v3455, %v3455
    %v3468 = vpack.c.bf16 %v3456, %v3456
    %v3469 = vld [vmem:[#allocation4] sm:$0xff]
    %v3470 = vld [vmem:[#allocation4 + $0x8] sm:$0xff]
    %v3471 = vld [vmem:[#allocation4 + $0x10] sm:$0xff]
    %v3472 = vld [vmem:[#allocation4 + $0x18] sm:$0xff]
    %v3473 = vld [vmem:[#allocation4 + $0x20] sm:$0xff]
    %v3474 = vld [vmem:[#allocation4 + $0x28] sm:$0xff]
    %v3475 = vld [vmem:[#allocation4 + $0x30] sm:$0xff]
    %v3476 = vld [vmem:[#allocation4 + $0x38] sm:$0xff]
    %v3477 = vld [vmem:[#allocation4 + $0x40] sm:$0xff]
    %v3478 = vld [vmem:[#allocation4 + $0x48] sm:$0xff]
    %v3479 = vld [vmem:[#allocation4 + $0x50] sm:$0xff]
    %v3480 = vld [vmem:[#allocation4 + $0x58] sm:$0xff]
    %v3481 = vld [vmem:[#allocation4 + $0x60] sm:$0xff]
    %v3482 = vld [vmem:[#allocation4 + $0x68] sm:$0xff]
    %v3483 = vld [vmem:[#allocation4 + $0x70] sm:$0xff]
    %v3484 = vld [vmem:[#allocation4 + $0x78] sm:$0xff]
    %v3485 = vld [vmem:[#allocation4 + $0x80] sm:$0xff]
    %v3486 = vld [vmem:[#allocation4 + $0x88] sm:$0xff]
    %v3487 = vld [vmem:[#allocation4 + $0x90] sm:$0xff]
    %v3488 = vld [vmem:[#allocation4 + $0x98] sm:$0xff]
    %v3489 = vld [vmem:[#allocation4 + $0xa0] sm:$0xff]
    %v3490 = vld [vmem:[#allocation4 + $0xa8] sm:$0xff]
    %v3491 = vld [vmem:[#allocation4 + $0xb0] sm:$0xff]
    %v3492 = vld [vmem:[#allocation4 + $0xb8] sm:$0xff]
    %v3493 = vld [vmem:[#allocation4 + $0xc0] sm:$0xff]
    %v3494 = vld [vmem:[#allocation4 + $0xc8] sm:$0xff]
    %v3495 = vld [vmem:[#allocation4 + $0xd0] sm:$0xff]
    %v3496 = vld [vmem:[#allocation4 + $0xd8] sm:$0xff]
    %v3497 = vld [vmem:[#allocation4 + $0xe0] sm:$0xff]
    %v3498 = vld [vmem:[#allocation4 + $0xe8] sm:$0xff]
    %v3499 = vld [vmem:[#allocation4 + $0xf0] sm:$0xff]
    %v3500 = vld [vmem:[#allocation4 + $0xf8] sm:$0xff]
    %v3501 = vld [vmem:[#allocation4 + $0x100] sm:$0xff]
    %v3502 = vld [vmem:[#allocation4 + $0x108] sm:$0xff]
    %v3503 = vld [vmem:[#allocation4 + $0x110] sm:$0xff]
    %v3504 = vld [vmem:[#allocation4 + $0x118] sm:$0xff]
    %v3505 = vld [vmem:[#allocation4 + $0x120] sm:$0xff]
    %v3506 = vld [vmem:[#allocation4 + $0x128] sm:$0xff]
    %v3507 = vld [vmem:[#allocation4 + $0x130] sm:$0xff]
    %v3508 = vld [vmem:[#allocation4 + $0x138] sm:$0xff]
    %v3509 = vld [vmem:[#allocation4 + $0x140] sm:$0xff]
    %v3510 = vld [vmem:[#allocation4 + $0x148] sm:$0xff]
    %v3511 = vld [vmem:[#allocation4 + $0x150] sm:$0xff]
    %v3512 = vld [vmem:[#allocation4 + $0x158] sm:$0xff]
    %v3513 = vld [vmem:[#allocation4 + $0x160] sm:$0xff]
    %v3514 = vld [vmem:[#allocation4 + $0x168] sm:$0xff]
    %v3515 = vld [vmem:[#allocation4 + $0x170] sm:$0xff]
    %v3516 = vld [vmem:[#allocation4 + $0x178] sm:$0xff]
    %v3517 = vld [vmem:[#allocation4 + $0x180] sm:$0xff]
    %v3518 = vld [vmem:[#allocation4 + $0x188] sm:$0xff]
    %v3519 = vld [vmem:[#allocation4 + $0x190] sm:$0xff]
    %v3520 = vld [vmem:[#allocation4 + $0x198] sm:$0xff]
    %v3521 = vld [vmem:[#allocation4 + $0x1a0] sm:$0xff]
    %v3522 = vld [vmem:[#allocation4 + $0x1a8] sm:$0xff]
    %v3523 = vld [vmem:[#allocation4 + $0x1b0] sm:$0xff]
    %v3524 = vld [vmem:[#allocation4 + $0x1b8] sm:$0xff]
    %v3525 = vld [vmem:[#allocation4 + $0x1c0] sm:$0xff]
    %v3526 = vld [vmem:[#allocation4 + $0x1c8] sm:$0xff]
    %v3527 = vld [vmem:[#allocation4 + $0x1d0] sm:$0xff]
    %v3528 = vld [vmem:[#allocation4 + $0x1d8] sm:$0xff]
    %v3529 = vld [vmem:[#allocation4 + $0x1e0] sm:$0xff]
    %v3530 = vld [vmem:[#allocation4 + $0x1e8] sm:$0xff]
    %v3531 = vld [vmem:[#allocation4 + $0x1f0] sm:$0xff]
    %v3532 = vld [vmem:[#allocation4 + $0x1f8] sm:$0xff]
    %v3533 = vld [vmem:[#allocation4 + $0x200] sm:$0xff]
    %v3534 = vld [vmem:[#allocation4 + $0x208] sm:$0xff]
    %v3535 = vld [vmem:[#allocation4 + $0x210] sm:$0xff]
    %v3536 = vld [vmem:[#allocation4 + $0x218] sm:$0xff]
    %v3537 = vld [vmem:[#allocation4 + $0x220] sm:$0xff]
    %v3538 = vld [vmem:[#allocation4 + $0x228] sm:$0xff]
    %v3539 = vld [vmem:[#allocation4 + $0x230] sm:$0xff]
    %v3540 = vld [vmem:[#allocation4 + $0x238] sm:$0xff]
    %v3541 = vld [vmem:[#allocation4 + $0x240] sm:$0xff]
    %v3542 = vld [vmem:[#allocation4 + $0x248] sm:$0xff]
    %v3543 = vld [vmem:[#allocation4 + $0x250] sm:$0xff]
    %v3544 = vld [vmem:[#allocation4 + $0x258] sm:$0xff]
    %v3545 = vld [vmem:[#allocation4 + $0x260] sm:$0xff]
    %v3546 = vld [vmem:[#allocation4 + $0x268] sm:$0xff]
    %v3547 = vld [vmem:[#allocation4 + $0x270] sm:$0xff]
    %v3548 = vld [vmem:[#allocation4 + $0x278] sm:$0xff]
    %v3549 = vld [vmem:[#allocation4 + $0x280] sm:$0xff]
    %v3550 = vld [vmem:[#allocation4 + $0x288] sm:$0xff]
    %v3551 = vld [vmem:[#allocation4 + $0x290] sm:$0xff]
    %v3552 = vld [vmem:[#allocation4 + $0x298] sm:$0xff]
    %v3553 = vld [vmem:[#allocation4 + $0x2a0] sm:$0xff]
    %v3554 = vld [vmem:[#allocation4 + $0x2a8] sm:$0xff]
    %v3555 = vld [vmem:[#allocation4 + $0x2b0] sm:$0xff]
    %v3556 = vld [vmem:[#allocation4 + $0x2b8] sm:$0xff]
    %v3557 = vld [vmem:[#allocation4 + $0x2c0] sm:$0xff]
    %v3558 = vld [vmem:[#allocation4 + $0x2c8] sm:$0xff]
    %v3559 = vld [vmem:[#allocation4 + $0x2d0] sm:$0xff]
    %v3560 = vld [vmem:[#allocation4 + $0x2d8] sm:$0xff]
    %v3561 = vld [vmem:[#allocation4 + $0x2e0] sm:$0xff]
    %v3562 = vld [vmem:[#allocation4 + $0x2e8] sm:$0xff]
    %v3563 = vld [vmem:[#allocation4 + $0x2f0] sm:$0xff]
    %v3564 = vld [vmem:[#allocation4 + $0x2f8] sm:$0xff]
    %v3565 = vld [vmem:[#allocation4 + $0x300] sm:$0xff]
    %v3566 = vld [vmem:[#allocation4 + $0x308] sm:$0xff]
    %v3567 = vld [vmem:[#allocation4 + $0x310] sm:$0xff]
    %v3568 = vld [vmem:[#allocation4 + $0x318] sm:$0xff]
    %v3569 = vld [vmem:[#allocation4 + $0x320] sm:$0xff]
    %v3570 = vld [vmem:[#allocation4 + $0x328] sm:$0xff]
    %v3571 = vld [vmem:[#allocation4 + $0x330] sm:$0xff]
    %v3572 = vld [vmem:[#allocation4 + $0x338] sm:$0xff]
    %v3573 = vld [vmem:[#allocation4 + $0x340] sm:$0xff]
    %v3574 = vld [vmem:[#allocation4 + $0x348] sm:$0xff]
    %v3575 = vld [vmem:[#allocation4 + $0x350] sm:$0xff]
    %v3576 = vld [vmem:[#allocation4 + $0x358] sm:$0xff]
    %v3577 = vld [vmem:[#allocation4 + $0x360] sm:$0xff]
    %v3578 = vld [vmem:[#allocation4 + $0x368] sm:$0xff]
    %v3579 = vld [vmem:[#allocation4 + $0x370] sm:$0xff]
    %v3580 = vld [vmem:[#allocation4 + $0x378] sm:$0xff]
    %v3581 = vld [vmem:[#allocation4 + $0x380] sm:$0xff]
    %v3582 = vld [vmem:[#allocation4 + $0x388] sm:$0xff]
    %v3583 = vld [vmem:[#allocation4 + $0x390] sm:$0xff]
    %v3584 = vld [vmem:[#allocation4 + $0x398] sm:$0xff]
    %v3585 = vld [vmem:[#allocation4 + $0x3a0] sm:$0xff]
    %v3586 = vld [vmem:[#allocation4 + $0x3a8] sm:$0xff]
    %v3587 = vld [vmem:[#allocation4 + $0x3b0] sm:$0xff]
    %v3588 = vld [vmem:[#allocation4 + $0x3b8] sm:$0xff]
    %v3589 = vld [vmem:[#allocation4 + $0x3c0] sm:$0xff]
    %v3590 = vld [vmem:[#allocation4 + $0x3c8] sm:$0xff]
    %v3591 = vld [vmem:[#allocation4 + $0x3d0] sm:$0xff]
    %v3592 = vld [vmem:[#allocation4 + $0x3d8] sm:$0xff]
    %v3593 = vld [vmem:[#allocation4 + $0x3e0] sm:$0xff]
    %v3594 = vld [vmem:[#allocation4 + $0x3e8] sm:$0xff]
    %v3595 = vld [vmem:[#allocation4 + $0x3f0] sm:$0xff]
    %v3596 = vld [vmem:[#allocation4 + $0x3f8] sm:$0xff]
    %v3597 = vld [vmem:[#allocation4 + $0x400] sm:$0xff]
    %v3598 = vld [vmem:[#allocation4 + $0x408] sm:$0xff]
    %v3599 = vld [vmem:[#allocation4 + $0x410] sm:$0xff]
    %v3600 = vld [vmem:[#allocation4 + $0x418] sm:$0xff]
    %v3601 = vld [vmem:[#allocation4 + $0x420] sm:$0xff]
    %v3602 = vld [vmem:[#allocation4 + $0x428] sm:$0xff]
    %v3603 = vld [vmem:[#allocation4 + $0x430] sm:$0xff]
    %v3604 = vld [vmem:[#allocation4 + $0x438] sm:$0xff]
    %v3605 = vld [vmem:[#allocation4 + $0x440] sm:$0xff]
    %v3606 = vld [vmem:[#allocation4 + $0x448] sm:$0xff]
    %v3607 = vld [vmem:[#allocation4 + $0x450] sm:$0xff]
    %v3608 = vld [vmem:[#allocation4 + $0x458] sm:$0xff]
    %v3609 = vld [vmem:[#allocation4 + $0x460] sm:$0xff]
    %v3610 = vld [vmem:[#allocation4 + $0x468] sm:$0xff]
    %v3611 = vld [vmem:[#allocation4 + $0x470] sm:$0xff]
    %v3612 = vld [vmem:[#allocation4 + $0x478] sm:$0xff]
    %v3613 = vld [vmem:[#allocation4 + $0x480] sm:$0xff]
    %v3614 = vld [vmem:[#allocation4 + $0x488] sm:$0xff]
    %v3615 = vld [vmem:[#allocation4 + $0x490] sm:$0xff]
    %v3616 = vld [vmem:[#allocation4 + $0x498] sm:$0xff]
    %v3617 = vld [vmem:[#allocation4 + $0x4a0] sm:$0xff]
    %v3618 = vld [vmem:[#allocation4 + $0x4a8] sm:$0xff]
    %v3619 = vld [vmem:[#allocation4 + $0x4b0] sm:$0xff]
    %v3620 = vld [vmem:[#allocation4 + $0x4b8] sm:$0xff]
    %v3621 = vld [vmem:[#allocation4 + $0x4c0] sm:$0xff]
    %v3622 = vld [vmem:[#allocation4 + $0x4c8] sm:$0xff]
    %v3623 = vld [vmem:[#allocation4 + $0x4d0] sm:$0xff]
    %v3624 = vld [vmem:[#allocation4 + $0x4d8] sm:$0xff]
    %v3625 = vld [vmem:[#allocation4 + $0x4e0] sm:$0xff]
    %v3626 = vld [vmem:[#allocation4 + $0x4e8] sm:$0xff]
    %v3627 = vld [vmem:[#allocation4 + $0x4f0] sm:$0xff]
    %v3628 = vld [vmem:[#allocation4 + $0x4f8] sm:$0xff]
    %v3629 = vld [vmem:[#allocation4 + $0x500] sm:$0xff]
    %v3630 = vld [vmem:[#allocation4 + $0x508] sm:$0xff]
    %v3631 = vld [vmem:[#allocation4 + $0x510] sm:$0xff]
    %v3632 = vld [vmem:[#allocation4 + $0x518] sm:$0xff]
    %v3633 = vld [vmem:[#allocation4 + $0x520] sm:$0xff]
    %v3634 = vld [vmem:[#allocation4 + $0x528] sm:$0xff]
    %v3635 = vld [vmem:[#allocation4 + $0x530] sm:$0xff]
    %v3636 = vld [vmem:[#allocation4 + $0x538] sm:$0xff]
    %v3637 = vld [vmem:[#allocation4 + $0x540] sm:$0xff]
    %v3638 = vld [vmem:[#allocation4 + $0x548] sm:$0xff]
    %v3639 = vld [vmem:[#allocation4 + $0x550] sm:$0xff]
    %v3640 = vld [vmem:[#allocation4 + $0x558] sm:$0xff]
    %v3641 = vld [vmem:[#allocation4 + $0x560] sm:$0xff]
    %v3642 = vld [vmem:[#allocation4 + $0x568] sm:$0xff]
    %v3643 = vld [vmem:[#allocation4 + $0x570] sm:$0xff]
    %v3644 = vld [vmem:[#allocation4 + $0x578] sm:$0xff]
    %v3645 = vld [vmem:[#allocation4 + $0x580] sm:$0xff]
    %v3646 = vld [vmem:[#allocation4 + $0x588] sm:$0xff]
    %v3647 = vld [vmem:[#allocation4 + $0x590] sm:$0xff]
    %v3648 = vld [vmem:[#allocation4 + $0x598] sm:$0xff]
    %v3649 = vld [vmem:[#allocation4 + $0x5a0] sm:$0xff]
    %v3650 = vld [vmem:[#allocation4 + $0x5a8] sm:$0xff]
    %v3651 = vld [vmem:[#allocation4 + $0x5b0] sm:$0xff]
    %v3652 = vld [vmem:[#allocation4 + $0x5b8] sm:$0xff]
    %v3653 = vld [vmem:[#allocation4 + $0x5c0] sm:$0xff]
    %v3654 = vld [vmem:[#allocation4 + $0x5c8] sm:$0xff]
    %v3655 = vld [vmem:[#allocation4 + $0x5d0] sm:$0xff]
    %v3656 = vld [vmem:[#allocation4 + $0x5d8] sm:$0xff]
    %v3657 = vld [vmem:[#allocation4 + $0x5e0] sm:$0xff]
    %v3658 = vld [vmem:[#allocation4 + $0x5e8] sm:$0xff]
    %v3659 = vld [vmem:[#allocation4 + $0x5f0] sm:$0xff]
    %v3660 = vld [vmem:[#allocation4 + $0x5f8] sm:$0xff]
    %v3661 = vld [vmem:[#allocation4 + $0x600] sm:$0xff]
    %v3662 = vld [vmem:[#allocation4 + $0x608] sm:$0xff]
    %v3663 = vld [vmem:[#allocation4 + $0x610] sm:$0xff]
    %v3664 = vld [vmem:[#allocation4 + $0x618] sm:$0xff]
    %v3665 = vld [vmem:[#allocation4 + $0x620] sm:$0xff]
    %v3666 = vld [vmem:[#allocation4 + $0x628] sm:$0xff]
    %v3667 = vld [vmem:[#allocation4 + $0x630] sm:$0xff]
    %v3668 = vld [vmem:[#allocation4 + $0x638] sm:$0xff]
    %v3669 = vld [vmem:[#allocation4 + $0x640] sm:$0xff]
    %v3670 = vld [vmem:[#allocation4 + $0x648] sm:$0xff]
    %v3671 = vld [vmem:[#allocation4 + $0x650] sm:$0xff]
    %v3672 = vld [vmem:[#allocation4 + $0x658] sm:$0xff]
    %v3673 = vld [vmem:[#allocation4 + $0x660] sm:$0xff]
    %v3674 = vld [vmem:[#allocation4 + $0x668] sm:$0xff]
    %v3675 = vld [vmem:[#allocation4 + $0x670] sm:$0xff]
    %v3676 = vld [vmem:[#allocation4 + $0x678] sm:$0xff]
    %v3677 = vld [vmem:[#allocation4 + $0x680] sm:$0xff]
    %v3678 = vld [vmem:[#allocation4 + $0x688] sm:$0xff]
    %v3679 = vld [vmem:[#allocation4 + $0x690] sm:$0xff]
    %v3680 = vld [vmem:[#allocation4 + $0x698] sm:$0xff]
    %v3681 = vld [vmem:[#allocation4 + $0x6a0] sm:$0xff]
    %v3682 = vld [vmem:[#allocation4 + $0x6a8] sm:$0xff]
    %v3683 = vld [vmem:[#allocation4 + $0x6b0] sm:$0xff]
    %v3684 = vld [vmem:[#allocation4 + $0x6b8] sm:$0xff]
    %v3685 = vld [vmem:[#allocation4 + $0x6c0] sm:$0xff]
    %v3686 = vld [vmem:[#allocation4 + $0x6c8] sm:$0xff]
    %v3687 = vld [vmem:[#allocation4 + $0x6d0] sm:$0xff]
    %v3688 = vld [vmem:[#allocation4 + $0x6d8] sm:$0xff]
    %v3689 = vld [vmem:[#allocation4 + $0x6e0] sm:$0xff]
    %v3690 = vld [vmem:[#allocation4 + $0x6e8] sm:$0xff]
    %v3691 = vld [vmem:[#allocation4 + $0x6f0] sm:$0xff]
    %v3692 = vld [vmem:[#allocation4 + $0x6f8] sm:$0xff]
    %v3693 = vld [vmem:[#allocation4 + $0x700] sm:$0xff]
    %v3694 = vld [vmem:[#allocation4 + $0x708] sm:$0xff]
    %v3695 = vld [vmem:[#allocation4 + $0x710] sm:$0xff]
    %v3696 = vld [vmem:[#allocation4 + $0x718] sm:$0xff]
    %v3697 = vld [vmem:[#allocation4 + $0x720] sm:$0xff]
    %v3698 = vld [vmem:[#allocation4 + $0x728] sm:$0xff]
    %v3699 = vld [vmem:[#allocation4 + $0x730] sm:$0xff]
    %v3700 = vld [vmem:[#allocation4 + $0x738] sm:$0xff]
    %v3701 = vld [vmem:[#allocation4 + $0x740] sm:$0xff]
    %v3702 = vld [vmem:[#allocation4 + $0x748] sm:$0xff]
    %v3703 = vld [vmem:[#allocation4 + $0x750] sm:$0xff]
    %v3704 = vld [vmem:[#allocation4 + $0x758] sm:$0xff]
    %v3705 = vld [vmem:[#allocation4 + $0x760] sm:$0xff]
    %v3706 = vld [vmem:[#allocation4 + $0x768] sm:$0xff]
    %v3707 = vld [vmem:[#allocation4 + $0x770] sm:$0xff]
    %v3708 = vld [vmem:[#allocation4 + $0x778] sm:$0xff]
    %v3709 = vld [vmem:[#allocation4 + $0x780] sm:$0xff]
    %v3710 = vld [vmem:[#allocation4 + $0x788] sm:$0xff]
    %v3711 = vld [vmem:[#allocation4 + $0x790] sm:$0xff]
    %v3712 = vld [vmem:[#allocation4 + $0x798] sm:$0xff]
    %v3713 = vld [vmem:[#allocation4 + $0x7a0] sm:$0xff]
    %v3714 = vld [vmem:[#allocation4 + $0x7a8] sm:$0xff]
    %v3715 = vld [vmem:[#allocation4 + $0x7b0] sm:$0xff]
    %v3716 = vld [vmem:[#allocation4 + $0x7b8] sm:$0xff]
    %v3717 = vld [vmem:[#allocation4 + $0x7c0] sm:$0xff]
    %v3718 = vld [vmem:[#allocation4 + $0x7c8] sm:$0xff]
    %v3719 = vld [vmem:[#allocation4 + $0x7d0] sm:$0xff]
    %v3720 = vld [vmem:[#allocation4 + $0x7d8] sm:$0xff]
    %v3721 = vld [vmem:[#allocation4 + $0x7e0] sm:$0xff]
    %v3722 = vld [vmem:[#allocation4 + $0x7e8] sm:$0xff]
    %v3723 = vld [vmem:[#allocation4 + $0x7f0] sm:$0xff]
    %v3724 = vld [vmem:[#allocation4 + $0x7f8] sm:$0xff]
    %v3725 = vld [vmem:[#allocation4 + $0x800] sm:$0xff]
    %v3726 = vld [vmem:[#allocation4 + $0x808] sm:$0xff]
    %v3727 = vld [vmem:[#allocation4 + $0x810] sm:$0xff]
    %v3728 = vld [vmem:[#allocation4 + $0x818] sm:$0xff]
    %v3729 = vld [vmem:[#allocation4 + $0x820] sm:$0xff]
    %v3730 = vld [vmem:[#allocation4 + $0x828] sm:$0xff]
    %v3731 = vld [vmem:[#allocation4 + $0x830] sm:$0xff]
    %v3732 = vld [vmem:[#allocation4 + $0x838] sm:$0xff]
    %v3733 = vld [vmem:[#allocation4 + $0x840] sm:$0xff]
    %v3734 = vld [vmem:[#allocation4 + $0x848] sm:$0xff]
    %v3735 = vld [vmem:[#allocation4 + $0x850] sm:$0xff]
    %v3736 = vld [vmem:[#allocation4 + $0x858] sm:$0xff]
    %v3737 = vld [vmem:[#allocation4 + $0x860] sm:$0xff]
    %v3738 = vld [vmem:[#allocation4 + $0x868] sm:$0xff]
    %v3739 = vld [vmem:[#allocation4 + $0x870] sm:$0xff]
    %v3740 = vld [vmem:[#allocation4 + $0x878] sm:$0xff]
    %v3741 = vld [vmem:[#allocation4 + $0x880] sm:$0xff]
    %v3742 = vld [vmem:[#allocation4 + $0x888] sm:$0xff]
    %v3743 = vld [vmem:[#allocation4 + $0x890] sm:$0xff]
    %v3744 = vld [vmem:[#allocation4 + $0x898] sm:$0xff]
    %v3745 = vld [vmem:[#allocation4 + $0x8a0] sm:$0xff]
    %v3746 = vld [vmem:[#allocation4 + $0x8a8] sm:$0xff]
    %v3747 = vld [vmem:[#allocation4 + $0x8b0] sm:$0xff]
    %v3748 = vld [vmem:[#allocation4 + $0x8b8] sm:$0xff]
    %v3749 = vld [vmem:[#allocation4 + $0x8c0] sm:$0xff]
    %v3750 = vld [vmem:[#allocation4 + $0x8c8] sm:$0xff]
    %v3751 = vld [vmem:[#allocation4 + $0x8d0] sm:$0xff]
    %v3752 = vld [vmem:[#allocation4 + $0x8d8] sm:$0xff]
    %v3753 = vld [vmem:[#allocation4 + $0x8e0] sm:$0xff]
    %v3754 = vld [vmem:[#allocation4 + $0x8e8] sm:$0xff]
    %v3755 = vld [vmem:[#allocation4 + $0x8f0] sm:$0xff]
    %v3756 = vld [vmem:[#allocation4 + $0x8f8] sm:$0xff]
    %v3757 = vld [vmem:[#allocation4 + $0x900] sm:$0xff]
    %v3758 = vld [vmem:[#allocation4 + $0x908] sm:$0xff]
    %v3759 = vld [vmem:[#allocation4 + $0x910] sm:$0xff]
    %v3760 = vld [vmem:[#allocation4 + $0x918] sm:$0xff]
    %v3761 = vld [vmem:[#allocation4 + $0x920] sm:$0xff]
    %v3762 = vld [vmem:[#allocation4 + $0x928] sm:$0xff]
    %v3763 = vld [vmem:[#allocation4 + $0x930] sm:$0xff]
    %v3764 = vld [vmem:[#allocation4 + $0x938] sm:$0xff]
    %v3765 = vld [vmem:[#allocation4 + $0x940] sm:$0xff]
    %v3766 = vld [vmem:[#allocation4 + $0x948] sm:$0xff]
    %v3767 = vld [vmem:[#allocation4 + $0x950] sm:$0xff]
    %v3768 = vld [vmem:[#allocation4 + $0x958] sm:$0xff]
    %v3769 = vld [vmem:[#allocation4 + $0x960] sm:$0xff]
    %v3770 = vld [vmem:[#allocation4 + $0x968] sm:$0xff]
    %v3771 = vld [vmem:[#allocation4 + $0x970] sm:$0xff]
    %v3772 = vld [vmem:[#allocation4 + $0x978] sm:$0xff]
    %v3773 = vld [vmem:[#allocation4 + $0x980] sm:$0xff]
    %v3774 = vld [vmem:[#allocation4 + $0x988] sm:$0xff]
    %v3775 = vld [vmem:[#allocation4 + $0x990] sm:$0xff]
    %v3776 = vld [vmem:[#allocation4 + $0x998] sm:$0xff]
    %v3777 = vld [vmem:[#allocation4 + $0x9a0] sm:$0xff]
    %v3778 = vld [vmem:[#allocation4 + $0x9a8] sm:$0xff]
    %v3779 = vld [vmem:[#allocation4 + $0x9b0] sm:$0xff]
    %v3780 = vld [vmem:[#allocation4 + $0x9b8] sm:$0xff]
    %v3781 = vld [vmem:[#allocation4 + $0x9c0] sm:$0xff]
    %v3782 = vld [vmem:[#allocation4 + $0x9c8] sm:$0xff]
    %v3783 = vld [vmem:[#allocation4 + $0x9d0] sm:$0xff]
    %v3784 = vld [vmem:[#allocation4 + $0x9d8] sm:$0xff]
    %v3785 = vld [vmem:[#allocation4 + $0x9e0] sm:$0xff]
    %v3786 = vld [vmem:[#allocation4 + $0x9e8] sm:$0xff]
    %v3787 = vld [vmem:[#allocation4 + $0x9f0] sm:$0xff]
    %v3788 = vld [vmem:[#allocation4 + $0x9f8] sm:$0xff]
    %v3789 = vld [vmem:[#allocation4 + $0xa00] sm:$0xff]
    %v3790 = vld [vmem:[#allocation4 + $0xa08] sm:$0xff]
    %v3791 = vld [vmem:[#allocation4 + $0xa10] sm:$0xff]
    %v3792 = vld [vmem:[#allocation4 + $0xa18] sm:$0xff]
    %v3793 = vld [vmem:[#allocation4 + $0xa20] sm:$0xff]
    %v3794 = vld [vmem:[#allocation4 + $0xa28] sm:$0xff]
    %v3795 = vld [vmem:[#allocation4 + $0xa30] sm:$0xff]
    %v3796 = vld [vmem:[#allocation4 + $0xa38] sm:$0xff]
    %v3797 = vld [vmem:[#allocation4 + $0xa40] sm:$0xff]
    %v3798 = vld [vmem:[#allocation4 + $0xa48] sm:$0xff]
    %v3799 = vld [vmem:[#allocation4 + $0xa50] sm:$0xff]
    %v3800 = vld [vmem:[#allocation4 + $0xa58] sm:$0xff]
    %v3801 = vld [vmem:[#allocation4 + $0xa60] sm:$0xff]
    %v3802 = vld [vmem:[#allocation4 + $0xa68] sm:$0xff]
    %v3803 = vld [vmem:[#allocation4 + $0xa70] sm:$0xff]
    %v3804 = vld [vmem:[#allocation4 + $0xa78] sm:$0xff]
    %v3805 = vld [vmem:[#allocation4 + $0xa80] sm:$0xff]
    %v3806 = vld [vmem:[#allocation4 + $0xa88] sm:$0xff]
    %v3807 = vld [vmem:[#allocation4 + $0xa90] sm:$0xff]
    %v3808 = vld [vmem:[#allocation4 + $0xa98] sm:$0xff]
    %v3809 = vld [vmem:[#allocation4 + $0xaa0] sm:$0xff]
    %v3810 = vld [vmem:[#allocation4 + $0xaa8] sm:$0xff]
    %v3811 = vld [vmem:[#allocation4 + $0xab0] sm:$0xff]
    %v3812 = vld [vmem:[#allocation4 + $0xab8] sm:$0xff]
    %v3813 = vld [vmem:[#allocation4 + $0xac0] sm:$0xff]
    %v3814 = vld [vmem:[#allocation4 + $0xac8] sm:$0xff]
    %v3815 = vld [vmem:[#allocation4 + $0xad0] sm:$0xff]
    %v3816 = vld [vmem:[#allocation4 + $0xad8] sm:$0xff]
    %v3817 = vld [vmem:[#allocation4 + $0xae0] sm:$0xff]
    %v3818 = vld [vmem:[#allocation4 + $0xae8] sm:$0xff]
    %v3819 = vld [vmem:[#allocation4 + $0xaf0] sm:$0xff]
    %v3820 = vld [vmem:[#allocation4 + $0xaf8] sm:$0xff]
    %v3821 = vld [vmem:[#allocation4 + $0xb00] sm:$0xff]
    %v3822 = vld [vmem:[#allocation4 + $0xb08] sm:$0xff]
    %v3823 = vld [vmem:[#allocation4 + $0xb10] sm:$0xff]
    %v3824 = vld [vmem:[#allocation4 + $0xb18] sm:$0xff]
    %v3825 = vld [vmem:[#allocation4 + $0xb20] sm:$0xff]
    %v3826 = vld [vmem:[#allocation4 + $0xb28] sm:$0xff]
    %v3827 = vld [vmem:[#allocation4 + $0xb30] sm:$0xff]
    %v3828 = vld [vmem:[#allocation4 + $0xb38] sm:$0xff]
    %v3829 = vld [vmem:[#allocation4 + $0xb40] sm:$0xff]
    %v3830 = vld [vmem:[#allocation4 + $0xb48] sm:$0xff]
    %v3831 = vld [vmem:[#allocation4 + $0xb50] sm:$0xff]
    %v3832 = vld [vmem:[#allocation4 + $0xb58] sm:$0xff]
    %v3833 = vld [vmem:[#allocation4 + $0xb60] sm:$0xff]
    %v3834 = vld [vmem:[#allocation4 + $0xb68] sm:$0xff]
    %v3835 = vld [vmem:[#allocation4 + $0xb70] sm:$0xff]
    %v3836 = vld [vmem:[#allocation4 + $0xb78] sm:$0xff]
    %v3837 = vld [vmem:[#allocation4 + $0xb80] sm:$0xff]
    %v3838 = vld [vmem:[#allocation4 + $0xb88] sm:$0xff]
    %v3839 = vld [vmem:[#allocation4 + $0xb90] sm:$0xff]
    %v3840 = vld [vmem:[#allocation4 + $0xb98] sm:$0xff]
    %v3841 = vld [vmem:[#allocation4 + $0xba0] sm:$0xff]
    %v3842 = vld [vmem:[#allocation4 + $0xba8] sm:$0xff]
    %v3843 = vld [vmem:[#allocation4 + $0xbb0] sm:$0xff]
    %v3844 = vld [vmem:[#allocation4 + $0xbb8] sm:$0xff]
    %v3845 = vld [vmem:[#allocation4 + $0xbc0] sm:$0xff]
    %v3846 = vld [vmem:[#allocation4 + $0xbc8] sm:$0xff]
    %v3847 = vld [vmem:[#allocation4 + $0xbd0] sm:$0xff]
    %v3848 = vld [vmem:[#allocation4 + $0xbd8] sm:$0xff]
    %v3849 = vld [vmem:[#allocation4 + $0xbe0] sm:$0xff]
    %v3850 = vld [vmem:[#allocation4 + $0xbe8] sm:$0xff]
    %v3851 = vld [vmem:[#allocation4 + $0xbf0] sm:$0xff]
    %v3852 = vld [vmem:[#allocation4 + $0xbf8] sm:$0xff]
    %v4237 = vunpack.c.l.b16 %v3469
    %v4238 = vunpack.c.h.b16 %v3469
    %v4239 = vunpack.c.l.b16 %v3470
    %v4240 = vunpack.c.h.b16 %v3470
    %v4241 = vunpack.c.l.b16 %v3471
    %v4242 = vunpack.c.h.b16 %v3471
    %v4243 = vunpack.c.l.b16 %v3472
    %v4244 = vunpack.c.h.b16 %v3472
    %v4245 = vunpack.c.l.b16 %v3473
    %v4246 = vunpack.c.h.b16 %v3473
    %v4247 = vunpack.c.l.b16 %v3474
    %v4248 = vunpack.c.h.b16 %v3474
    %v4249 = vunpack.c.l.b16 %v3475
    %v4250 = vunpack.c.h.b16 %v3475
    %v4251 = vunpack.c.l.b16 %v3476
    %v4252 = vunpack.c.h.b16 %v3476
    %v4253 = vunpack.c.l.b16 %v3477
    %v4254 = vunpack.c.h.b16 %v3477
    %v4255 = vunpack.c.l.b16 %v3478
    %v4256 = vunpack.c.h.b16 %v3478
    %v4257 = vunpack.c.l.b16 %v3479
    %v4258 = vunpack.c.h.b16 %v3479
    %v4259 = vunpack.c.l.b16 %v3480
    %v4260 = vunpack.c.h.b16 %v3480
    %v4261 = vunpack.c.l.b16 %v3481
    %v4262 = vunpack.c.h.b16 %v3481
    %v4263 = vunpack.c.l.b16 %v3482
    %v4264 = vunpack.c.h.b16 %v3482
    %v4265 = vunpack.c.l.b16 %v3483
    %v4266 = vunpack.c.h.b16 %v3483
    %v4267 = vunpack.c.l.b16 %v3484
    %v4268 = vunpack.c.h.b16 %v3484
    %v4269 = vunpack.c.l.b16 %v3485
    %v4270 = vunpack.c.h.b16 %v3485
    %v4271 = vunpack.c.l.b16 %v3486
    %v4272 = vunpack.c.h.b16 %v3486
    %v4273 = vunpack.c.l.b16 %v3487
    %v4274 = vunpack.c.h.b16 %v3487
    %v4275 = vunpack.c.l.b16 %v3488
    %v4276 = vunpack.c.h.b16 %v3488
    %v4277 = vunpack.c.l.b16 %v3489
    %v4278 = vunpack.c.h.b16 %v3489
    %v4279 = vunpack.c.l.b16 %v3490
    %v4280 = vunpack.c.h.b16 %v3490
    %v4281 = vunpack.c.l.b16 %v3491
    %v4282 = vunpack.c.h.b16 %v3491
    %v4283 = vunpack.c.l.b16 %v3492
    %v4284 = vunpack.c.h.b16 %v3492
    %v4285 = vunpack.c.l.b16 %v3493
    %v4286 = vunpack.c.h.b16 %v3493
    %v4287 = vunpack.c.l.b16 %v3494
    %v4288 = vunpack.c.h.b16 %v3494
    %v4289 = vunpack.c.l.b16 %v3495
    %v4290 = vunpack.c.h.b16 %v3495
    %v4291 = vunpack.c.l.b16 %v3496
    %v4292 = vunpack.c.h.b16 %v3496
    %v4293 = vunpack.c.l.b16 %v3497
    %v4294 = vunpack.c.h.b16 %v3497
    %v4295 = vunpack.c.l.b16 %v3498
    %v4296 = vunpack.c.h.b16 %v3498
    %v4297 = vunpack.c.l.b16 %v3499
    %v4298 = vunpack.c.h.b16 %v3499
    %v4299 = vunpack.c.l.b16 %v3500
    %v4300 = vunpack.c.h.b16 %v3500
    %v4301 = vunpack.c.l.b16 %v3501
    %v4302 = vunpack.c.h.b16 %v3501
    %v4303 = vunpack.c.l.b16 %v3502
    %v4304 = vunpack.c.h.b16 %v3502
    %v4305 = vunpack.c.l.b16 %v3503
    %v4306 = vunpack.c.h.b16 %v3503
    %v4307 = vunpack.c.l.b16 %v3504
    %v4308 = vunpack.c.h.b16 %v3504
    %v4309 = vunpack.c.l.b16 %v3505
    %v4310 = vunpack.c.h.b16 %v3505
    %v4311 = vunpack.c.l.b16 %v3506
    %v4312 = vunpack.c.h.b16 %v3506
    %v4313 = vunpack.c.l.b16 %v3507
    %v4314 = vunpack.c.h.b16 %v3507
    %v4315 = vunpack.c.l.b16 %v3508
    %v4316 = vunpack.c.h.b16 %v3508
    %v4317 = vunpack.c.l.b16 %v3509
    %v4318 = vunpack.c.h.b16 %v3509
    %v4319 = vunpack.c.l.b16 %v3510
    %v4320 = vunpack.c.h.b16 %v3510
    %v4321 = vunpack.c.l.b16 %v3511
    %v4322 = vunpack.c.h.b16 %v3511
    %v4323 = vunpack.c.l.b16 %v3512
    %v4324 = vunpack.c.h.b16 %v3512
    %v4325 = vunpack.c.l.b16 %v3513
    %v4326 = vunpack.c.h.b16 %v3513
    %v4327 = vunpack.c.l.b16 %v3514
    %v4328 = vunpack.c.h.b16 %v3514
    %v4329 = vunpack.c.l.b16 %v3515
    %v4330 = vunpack.c.h.b16 %v3515
    %v4331 = vunpack.c.l.b16 %v3516
    %v4332 = vunpack.c.h.b16 %v3516
    %v4333 = vunpack.c.l.b16 %v3517
    %v4334 = vunpack.c.h.b16 %v3517
    %v4335 = vunpack.c.l.b16 %v3518
    %v4336 = vunpack.c.h.b16 %v3518
    %v4337 = vunpack.c.l.b16 %v3519
    %v4338 = vunpack.c.h.b16 %v3519
    %v4339 = vunpack.c.l.b16 %v3520
    %v4340 = vunpack.c.h.b16 %v3520
    %v4341 = vunpack.c.l.b16 %v3521
    %v4342 = vunpack.c.h.b16 %v3521
    %v4343 = vunpack.c.l.b16 %v3522
    %v4344 = vunpack.c.h.b16 %v3522
    %v4345 = vunpack.c.l.b16 %v3523
    %v4346 = vunpack.c.h.b16 %v3523
    %v4347 = vunpack.c.l.b16 %v3524
    %v4348 = vunpack.c.h.b16 %v3524
    %v4349 = vunpack.c.l.b16 %v3525
    %v4350 = vunpack.c.h.b16 %v3525
    %v4351 = vunpack.c.l.b16 %v3526
    %v4352 = vunpack.c.h.b16 %v3526
    %v4353 = vunpack.c.l.b16 %v3527
    %v4354 = vunpack.c.h.b16 %v3527
    %v4355 = vunpack.c.l.b16 %v3528
    %v4356 = vunpack.c.h.b16 %v3528
    %v4357 = vunpack.c.l.b16 %v3529
    %v4358 = vunpack.c.h.b16 %v3529
    %v4359 = vunpack.c.l.b16 %v3530
    %v4360 = vunpack.c.h.b16 %v3530
    %v4361 = vunpack.c.l.b16 %v3531
    %v4362 = vunpack.c.h.b16 %v3531
    %v4363 = vunpack.c.l.b16 %v3532
    %v4364 = vunpack.c.h.b16 %v3532
    %v4365 = vunpack.c.l.b16 %v3533
    %v4366 = vunpack.c.h.b16 %v3533
    %v4367 = vunpack.c.l.b16 %v3534
    %v4368 = vunpack.c.h.b16 %v3534
    %v4369 = vunpack.c.l.b16 %v3535
    %v4370 = vunpack.c.h.b16 %v3535
    %v4371 = vunpack.c.l.b16 %v3536
    %v4372 = vunpack.c.h.b16 %v3536
    %v4373 = vunpack.c.l.b16 %v3537
    %v4374 = vunpack.c.h.b16 %v3537
    %v4375 = vunpack.c.l.b16 %v3538
    %v4376 = vunpack.c.h.b16 %v3538
    %v4377 = vunpack.c.l.b16 %v3539
    %v4378 = vunpack.c.h.b16 %v3539
    %v4379 = vunpack.c.l.b16 %v3540
    %v4380 = vunpack.c.h.b16 %v3540
    %v4381 = vunpack.c.l.b16 %v3541
    %v4382 = vunpack.c.h.b16 %v3541
    %v4383 = vunpack.c.l.b16 %v3542
    %v4384 = vunpack.c.h.b16 %v3542
    %v4385 = vunpack.c.l.b16 %v3543
    %v4386 = vunpack.c.h.b16 %v3543
    %v4387 = vunpack.c.l.b16 %v3544
    %v4388 = vunpack.c.h.b16 %v3544
    %v4389 = vunpack.c.l.b16 %v3545
    %v4390 = vunpack.c.h.b16 %v3545
    %v4391 = vunpack.c.l.b16 %v3546
    %v4392 = vunpack.c.h.b16 %v3546
    %v4393 = vunpack.c.l.b16 %v3547
    %v4394 = vunpack.c.h.b16 %v3547
    %v4395 = vunpack.c.l.b16 %v3548
    %v4396 = vunpack.c.h.b16 %v3548
    %v4397 = vunpack.c.l.b16 %v3549
    %v4398 = vunpack.c.h.b16 %v3549
    %v4399 = vunpack.c.l.b16 %v3550
    %v4400 = vunpack.c.h.b16 %v3550
    %v4401 = vunpack.c.l.b16 %v3551
    %v4402 = vunpack.c.h.b16 %v3551
    %v4403 = vunpack.c.l.b16 %v3552
    %v4404 = vunpack.c.h.b16 %v3552
    %v4405 = vunpack.c.l.b16 %v3553
    %v4406 = vunpack.c.h.b16 %v3553
    %v4407 = vunpack.c.l.b16 %v3554
    %v4408 = vunpack.c.h.b16 %v3554
    %v4409 = vunpack.c.l.b16 %v3555
    %v4410 = vunpack.c.h.b16 %v3555
    %v4411 = vunpack.c.l.b16 %v3556
    %v4412 = vunpack.c.h.b16 %v3556
    %v4413 = vunpack.c.l.b16 %v3557
    %v4414 = vunpack.c.h.b16 %v3557
    %v4415 = vunpack.c.l.b16 %v3558
    %v4416 = vunpack.c.h.b16 %v3558
    %v4417 = vunpack.c.l.b16 %v3559
    %v4418 = vunpack.c.h.b16 %v3559
    %v4419 = vunpack.c.l.b16 %v3560
    %v4420 = vunpack.c.h.b16 %v3560
    %v4421 = vunpack.c.l.b16 %v3561
    %v4422 = vunpack.c.h.b16 %v3561
    %v4423 = vunpack.c.l.b16 %v3562
    %v4424 = vunpack.c.h.b16 %v3562
    %v4425 = vunpack.c.l.b16 %v3563
    %v4426 = vunpack.c.h.b16 %v3563
    %v4427 = vunpack.c.l.b16 %v3564
    %v4428 = vunpack.c.h.b16 %v3564
    %v4429 = vunpack.c.l.b16 %v3565
    %v4430 = vunpack.c.h.b16 %v3565
    %v4431 = vunpack.c.l.b16 %v3566
    %v4432 = vunpack.c.h.b16 %v3566
    %v4433 = vunpack.c.l.b16 %v3567
    %v4434 = vunpack.c.h.b16 %v3567
    %v4435 = vunpack.c.l.b16 %v3568
    %v4436 = vunpack.c.h.b16 %v3568
    %v4437 = vunpack.c.l.b16 %v3569
    %v4438 = vunpack.c.h.b16 %v3569
    %v4439 = vunpack.c.l.b16 %v3570
    %v4440 = vunpack.c.h.b16 %v3570
    %v4441 = vunpack.c.l.b16 %v3571
    %v4442 = vunpack.c.h.b16 %v3571
    %v4443 = vunpack.c.l.b16 %v3572
    %v4444 = vunpack.c.h.b16 %v3572
    %v4445 = vunpack.c.l.b16 %v3573
    %v4446 = vunpack.c.h.b16 %v3573
    %v4447 = vunpack.c.l.b16 %v3574
    %v4448 = vunpack.c.h.b16 %v3574
    %v4449 = vunpack.c.l.b16 %v3575
    %v4450 = vunpack.c.h.b16 %v3575
    %v4451 = vunpack.c.l.b16 %v3576
    %v4452 = vunpack.c.h.b16 %v3576
    %v4453 = vunpack.c.l.b16 %v3577
    %v4454 = vunpack.c.h.b16 %v3577
    %v4455 = vunpack.c.l.b16 %v3578
    %v4456 = vunpack.c.h.b16 %v3578
    %v4457 = vunpack.c.l.b16 %v3579
    %v4458 = vunpack.c.h.b16 %v3579
    %v4459 = vunpack.c.l.b16 %v3580
    %v4460 = vunpack.c.h.b16 %v3580
    %v4461 = vunpack.c.l.b16 %v3581
    %v4462 = vunpack.c.h.b16 %v3581
    %v4463 = vunpack.c.l.b16 %v3582
    %v4464 = vunpack.c.h.b16 %v3582
    %v4465 = vunpack.c.l.b16 %v3583
    %v4466 = vunpack.c.h.b16 %v3583
    %v4467 = vunpack.c.l.b16 %v3584
    %v4468 = vunpack.c.h.b16 %v3584
    %v4469 = vunpack.c.l.b16 %v3585
    %v4470 = vunpack.c.h.b16 %v3585
    %v4471 = vunpack.c.l.b16 %v3586
    %v4472 = vunpack.c.h.b16 %v3586
    %v4473 = vunpack.c.l.b16 %v3587
    %v4474 = vunpack.c.h.b16 %v3587
    %v4475 = vunpack.c.l.b16 %v3588
    %v4476 = vunpack.c.h.b16 %v3588
    %v4477 = vunpack.c.l.b16 %v3589
    %v4478 = vunpack.c.h.b16 %v3589
    %v4479 = vunpack.c.l.b16 %v3590
    %v4480 = vunpack.c.h.b16 %v3590
    %v4481 = vunpack.c.l.b16 %v3591
    %v4482 = vunpack.c.h.b16 %v3591
    %v4483 = vunpack.c.l.b16 %v3592
    %v4484 = vunpack.c.h.b16 %v3592
    %v4485 = vunpack.c.l.b16 %v3593
    %v4486 = vunpack.c.h.b16 %v3593
    %v4487 = vunpack.c.l.b16 %v3594
    %v4488 = vunpack.c.h.b16 %v3594
    %v4489 = vunpack.c.l.b16 %v3595
    %v4490 = vunpack.c.h.b16 %v3595
    %v4491 = vunpack.c.l.b16 %v3596
    %v4492 = vunpack.c.h.b16 %v3596
    %v4493 = vunpack.c.l.b16 %v3597
    %v4494 = vunpack.c.h.b16 %v3597
    %v4495 = vunpack.c.l.b16 %v3598
    %v4496 = vunpack.c.h.b16 %v3598
    %v4497 = vunpack.c.l.b16 %v3599
    %v4498 = vunpack.c.h.b16 %v3599
    %v4499 = vunpack.c.l.b16 %v3600
    %v4500 = vunpack.c.h.b16 %v3600
    %v4501 = vunpack.c.l.b16 %v3601
    %v4502 = vunpack.c.h.b16 %v3601
    %v4503 = vunpack.c.l.b16 %v3602
    %v4504 = vunpack.c.h.b16 %v3602
    %v4505 = vunpack.c.l.b16 %v3603
    %v4506 = vunpack.c.h.b16 %v3603
    %v4507 = vunpack.c.l.b16 %v3604
    %v4508 = vunpack.c.h.b16 %v3604
    %v4509 = vunpack.c.l.b16 %v3605
    %v4510 = vunpack.c.h.b16 %v3605
    %v4511 = vunpack.c.l.b16 %v3606
    %v4512 = vunpack.c.h.b16 %v3606
    %v4513 = vunpack.c.l.b16 %v3607
    %v4514 = vunpack.c.h.b16 %v3607
    %v4515 = vunpack.c.l.b16 %v3608
    %v4516 = vunpack.c.h.b16 %v3608
    %v4517 = vunpack.c.l.b16 %v3609
    %v4518 = vunpack.c.h.b16 %v3609
    %v4519 = vunpack.c.l.b16 %v3610
    %v4520 = vunpack.c.h.b16 %v3610
    %v4521 = vunpack.c.l.b16 %v3611
    %v4522 = vunpack.c.h.b16 %v3611
    %v4523 = vunpack.c.l.b16 %v3612
    %v4524 = vunpack.c.h.b16 %v3612
    %v4525 = vunpack.c.l.b16 %v3613
    %v4526 = vunpack.c.h.b16 %v3613
    %v4527 = vunpack.c.l.b16 %v3614
    %v4528 = vunpack.c.h.b16 %v3614
    %v4529 = vunpack.c.l.b16 %v3615
    %v4530 = vunpack.c.h.b16 %v3615
    %v4531 = vunpack.c.l.b16 %v3616
    %v4532 = vunpack.c.h.b16 %v3616
    %v4533 = vunpack.c.l.b16 %v3617
    %v4534 = vunpack.c.h.b16 %v3617
    %v4535 = vunpack.c.l.b16 %v3618
    %v4536 = vunpack.c.h.b16 %v3618
    %v4537 = vunpack.c.l.b16 %v3619
    %v4538 = vunpack.c.h.b16 %v3619
    %v4539 = vunpack.c.l.b16 %v3620
    %v4540 = vunpack.c.h.b16 %v3620
    %v4541 = vunpack.c.l.b16 %v3621
    %v4542 = vunpack.c.h.b16 %v3621
    %v4543 = vunpack.c.l.b16 %v3622
    %v4544 = vunpack.c.h.b16 %v3622
    %v4545 = vunpack.c.l.b16 %v3623
    %v4546 = vunpack.c.h.b16 %v3623
    %v4547 = vunpack.c.l.b16 %v3624
    %v4548 = vunpack.c.h.b16 %v3624
    %v4549 = vunpack.c.l.b16 %v3625
    %v4550 = vunpack.c.h.b16 %v3625
    %v4551 = vunpack.c.l.b16 %v3626
    %v4552 = vunpack.c.h.b16 %v3626
    %v4553 = vunpack.c.l.b16 %v3627
    %v4554 = vunpack.c.h.b16 %v3627
    %v4555 = vunpack.c.l.b16 %v3628
    %v4556 = vunpack.c.h.b16 %v3628
    %v4557 = vunpack.c.l.b16 %v3629
    %v4558 = vunpack.c.h.b16 %v3629
    %v4559 = vunpack.c.l.b16 %v3630
    %v4560 = vunpack.c.h.b16 %v3630
    %v4561 = vunpack.c.l.b16 %v3631
    %v4562 = vunpack.c.h.b16 %v3631
    %v4563 = vunpack.c.l.b16 %v3632
    %v4564 = vunpack.c.h.b16 %v3632
    %v4565 = vunpack.c.l.b16 %v3633
    %v4566 = vunpack.c.h.b16 %v3633
    %v4567 = vunpack.c.l.b16 %v3634
    %v4568 = vunpack.c.h.b16 %v3634
    %v4569 = vunpack.c.l.b16 %v3635
    %v4570 = vunpack.c.h.b16 %v3635
    %v4571 = vunpack.c.l.b16 %v3636
    %v4572 = vunpack.c.h.b16 %v3636
    %v4573 = vunpack.c.l.b16 %v3637
    %v4574 = vunpack.c.h.b16 %v3637
    %v4575 = vunpack.c.l.b16 %v3638
    %v4576 = vunpack.c.h.b16 %v3638
    %v4577 = vunpack.c.l.b16 %v3639
    %v4578 = vunpack.c.h.b16 %v3639
    %v4579 = vunpack.c.l.b16 %v3640
    %v4580 = vunpack.c.h.b16 %v3640
    %v4581 = vunpack.c.l.b16 %v3641
    %v4582 = vunpack.c.h.b16 %v3641
    %v4583 = vunpack.c.l.b16 %v3642
    %v4584 = vunpack.c.h.b16 %v3642
    %v4585 = vunpack.c.l.b16 %v3643
    %v4586 = vunpack.c.h.b16 %v3643
    %v4587 = vunpack.c.l.b16 %v3644
    %v4588 = vunpack.c.h.b16 %v3644
    %v4589 = vunpack.c.l.b16 %v3645
    %v4590 = vunpack.c.h.b16 %v3645
    %v4591 = vunpack.c.l.b16 %v3646
    %v4592 = vunpack.c.h.b16 %v3646
    %v4593 = vunpack.c.l.b16 %v3647
    %v4594 = vunpack.c.h.b16 %v3647
    %v4595 = vunpack.c.l.b16 %v3648
    %v4596 = vunpack.c.h.b16 %v3648
    %v4597 = vunpack.c.l.b16 %v3649
    %v4598 = vunpack.c.h.b16 %v3649
    %v4599 = vunpack.c.l.b16 %v3650
    %v4600 = vunpack.c.h.b16 %v3650
    %v4601 = vunpack.c.l.b16 %v3651
    %v4602 = vunpack.c.h.b16 %v3651
    %v4603 = vunpack.c.l.b16 %v3652
    %v4604 = vunpack.c.h.b16 %v3652
    %v4605 = vunpack.c.l.b16 %v3653
    %v4606 = vunpack.c.h.b16 %v3653
    %v4607 = vunpack.c.l.b16 %v3654
    %v4608 = vunpack.c.h.b16 %v3654
    %v4609 = vunpack.c.l.b16 %v3655
    %v4610 = vunpack.c.h.b16 %v3655
    %v4611 = vunpack.c.l.b16 %v3656
    %v4612 = vunpack.c.h.b16 %v3656
    %v4613 = vunpack.c.l.b16 %v3657
    %v4614 = vunpack.c.h.b16 %v3657
    %v4615 = vunpack.c.l.b16 %v3658
    %v4616 = vunpack.c.h.b16 %v3658
    %v4617 = vunpack.c.l.b16 %v3659
    %v4618 = vunpack.c.h.b16 %v3659
    %v4619 = vunpack.c.l.b16 %v3660
    %v4620 = vunpack.c.h.b16 %v3660
    %v4621 = vunpack.c.l.b16 %v3661
    %v4622 = vunpack.c.h.b16 %v3661
    %v4623 = vunpack.c.l.b16 %v3662
    %v4624 = vunpack.c.h.b16 %v3662
    %v4625 = vunpack.c.l.b16 %v3663
    %v4626 = vunpack.c.h.b16 %v3663
    %v4627 = vunpack.c.l.b16 %v3664
    %v4628 = vunpack.c.h.b16 %v3664
    %v4629 = vunpack.c.l.b16 %v3665
    %v4630 = vunpack.c.h.b16 %v3665
    %v4631 = vunpack.c.l.b16 %v3666
    %v4632 = vunpack.c.h.b16 %v3666
    %v4633 = vunpack.c.l.b16 %v3667
    %v4634 = vunpack.c.h.b16 %v3667
    %v4635 = vunpack.c.l.b16 %v3668
    %v4636 = vunpack.c.h.b16 %v3668
    %v4637 = vunpack.c.l.b16 %v3669
    %v4638 = vunpack.c.h.b16 %v3669
    %v4639 = vunpack.c.l.b16 %v3670
    %v4640 = vunpack.c.h.b16 %v3670
    %v4641 = vunpack.c.l.b16 %v3671
    %v4642 = vunpack.c.h.b16 %v3671
    %v4643 = vunpack.c.l.b16 %v3672
    %v4644 = vunpack.c.h.b16 %v3672
    %v4645 = vunpack.c.l.b16 %v3673
    %v4646 = vunpack.c.h.b16 %v3673
    %v4647 = vunpack.c.l.b16 %v3674
    %v4648 = vunpack.c.h.b16 %v3674
    %v4649 = vunpack.c.l.b16 %v3675
    %v4650 = vunpack.c.h.b16 %v3675
    %v4651 = vunpack.c.l.b16 %v3676
    %v4652 = vunpack.c.h.b16 %v3676
    %v4653 = vunpack.c.l.b16 %v3677
    %v4654 = vunpack.c.h.b16 %v3677
    %v4655 = vunpack.c.l.b16 %v3678
    %v4656 = vunpack.c.h.b16 %v3678
    %v4657 = vunpack.c.l.b16 %v3679
    %v4658 = vunpack.c.h.b16 %v3679
    %v4659 = vunpack.c.l.b16 %v3680
    %v4660 = vunpack.c.h.b16 %v3680
    %v4661 = vunpack.c.l.b16 %v3681
    %v4662 = vunpack.c.h.b16 %v3681
    %v4663 = vunpack.c.l.b16 %v3682
    %v4664 = vunpack.c.h.b16 %v3682
    %v4665 = vunpack.c.l.b16 %v3683
    %v4666 = vunpack.c.h.b16 %v3683
    %v4667 = vunpack.c.l.b16 %v3684
    %v4668 = vunpack.c.h.b16 %v3684
    %v4669 = vunpack.c.l.b16 %v3685
    %v4670 = vunpack.c.h.b16 %v3685
    %v4671 = vunpack.c.l.b16 %v3686
    %v4672 = vunpack.c.h.b16 %v3686
    %v4673 = vunpack.c.l.b16 %v3687
    %v4674 = vunpack.c.h.b16 %v3687
    %v4675 = vunpack.c.l.b16 %v3688
    %v4676 = vunpack.c.h.b16 %v3688
    %v4677 = vunpack.c.l.b16 %v3689
    %v4678 = vunpack.c.h.b16 %v3689
    %v4679 = vunpack.c.l.b16 %v3690
    %v4680 = vunpack.c.h.b16 %v3690
    %v4681 = vunpack.c.l.b16 %v3691
    %v4682 = vunpack.c.h.b16 %v3691
    %v4683 = vunpack.c.l.b16 %v3692
    %v4684 = vunpack.c.h.b16 %v3692
    %v4685 = vunpack.c.l.b16 %v3693
    %v4686 = vunpack.c.h.b16 %v3693
    %v4687 = vunpack.c.l.b16 %v3694
    %v4688 = vunpack.c.h.b16 %v3694
    %v4689 = vunpack.c.l.b16 %v3695
    %v4690 = vunpack.c.h.b16 %v3695
    %v4691 = vunpack.c.l.b16 %v3696
    %v4692 = vunpack.c.h.b16 %v3696
    %v4693 = vunpack.c.l.b16 %v3697
    %v4694 = vunpack.c.h.b16 %v3697
    %v4695 = vunpack.c.l.b16 %v3698
    %v4696 = vunpack.c.h.b16 %v3698
    %v4697 = vunpack.c.l.b16 %v3699
    %v4698 = vunpack.c.h.b16 %v3699
    %v4699 = vunpack.c.l.b16 %v3700
    %v4700 = vunpack.c.h.b16 %v3700
    %v4701 = vunpack.c.l.b16 %v3701
    %v4702 = vunpack.c.h.b16 %v3701
    %v4703 = vunpack.c.l.b16 %v3702
    %v4704 = vunpack.c.h.b16 %v3702
    %v4705 = vunpack.c.l.b16 %v3703
    %v4706 = vunpack.c.h.b16 %v3703
    %v4707 = vunpack.c.l.b16 %v3704
    %v4708 = vunpack.c.h.b16 %v3704
    %v4709 = vunpack.c.l.b16 %v3705
    %v4710 = vunpack.c.h.b16 %v3705
    %v4711 = vunpack.c.l.b16 %v3706
    %v4712 = vunpack.c.h.b16 %v3706
    %v4713 = vunpack.c.l.b16 %v3707
    %v4714 = vunpack.c.h.b16 %v3707
    %v4715 = vunpack.c.l.b16 %v3708
    %v4716 = vunpack.c.h.b16 %v3708
    %v4717 = vunpack.c.l.b16 %v3709
    %v4718 = vunpack.c.h.b16 %v3709
    %v4719 = vunpack.c.l.b16 %v3710
    %v4720 = vunpack.c.h.b16 %v3710
    %v4721 = vunpack.c.l.b16 %v3711
    %v4722 = vunpack.c.h.b16 %v3711
    %v4723 = vunpack.c.l.b16 %v3712
    %v4724 = vunpack.c.h.b16 %v3712
    %v4725 = vunpack.c.l.b16 %v3713
    %v4726 = vunpack.c.h.b16 %v3713
    %v4727 = vunpack.c.l.b16 %v3714
    %v4728 = vunpack.c.h.b16 %v3714
    %v4729 = vunpack.c.l.b16 %v3715
    %v4730 = vunpack.c.h.b16 %v3715
    %v4731 = vunpack.c.l.b16 %v3716
    %v4732 = vunpack.c.h.b16 %v3716
    %v4733 = vunpack.c.l.b16 %v3717
    %v4734 = vunpack.c.h.b16 %v3717
    %v4735 = vunpack.c.l.b16 %v3718
    %v4736 = vunpack.c.h.b16 %v3718
    %v4737 = vunpack.c.l.b16 %v3719
    %v4738 = vunpack.c.h.b16 %v3719
    %v4739 = vunpack.c.l.b16 %v3720
    %v4740 = vunpack.c.h.b16 %v3720
    %v4741 = vunpack.c.l.b16 %v3721
    %v4742 = vunpack.c.h.b16 %v3721
    %v4743 = vunpack.c.l.b16 %v3722
    %v4744 = vunpack.c.h.b16 %v3722
    %v4745 = vunpack.c.l.b16 %v3723
    %v4746 = vunpack.c.h.b16 %v3723
    %v4747 = vunpack.c.l.b16 %v3724
    %v4748 = vunpack.c.h.b16 %v3724
    %v4749 = vunpack.c.l.b16 %v3725
    %v4750 = vunpack.c.h.b16 %v3725
    %v4751 = vunpack.c.l.b16 %v3726
    %v4752 = vunpack.c.h.b16 %v3726
    %v4753 = vunpack.c.l.b16 %v3727
    %v4754 = vunpack.c.h.b16 %v3727
    %v4755 = vunpack.c.l.b16 %v3728
    %v4756 = vunpack.c.h.b16 %v3728
    %v4757 = vunpack.c.l.b16 %v3729
    %v4758 = vunpack.c.h.b16 %v3729
    %v4759 = vunpack.c.l.b16 %v3730
    %v4760 = vunpack.c.h.b16 %v3730
    %v4761 = vunpack.c.l.b16 %v3731
    %v4762 = vunpack.c.h.b16 %v3731
    %v4763 = vunpack.c.l.b16 %v3732
    %v4764 = vunpack.c.h.b16 %v3732
    %v4765 = vunpack.c.l.b16 %v3733
    %v4766 = vunpack.c.h.b16 %v3733
    %v4767 = vunpack.c.l.b16 %v3734
    %v4768 = vunpack.c.h.b16 %v3734
    %v4769 = vunpack.c.l.b16 %v3735
    %v4770 = vunpack.c.h.b16 %v3735
    %v4771 = vunpack.c.l.b16 %v3736
    %v4772 = vunpack.c.h.b16 %v3736
    %v4773 = vunpack.c.l.b16 %v3737
    %v4774 = vunpack.c.h.b16 %v3737
    %v4775 = vunpack.c.l.b16 %v3738
    %v4776 = vunpack.c.h.b16 %v3738
    %v4777 = vunpack.c.l.b16 %v3739
    %v4778 = vunpack.c.h.b16 %v3739
    %v4779 = vunpack.c.l.b16 %v3740
    %v4780 = vunpack.c.h.b16 %v3740
    %v4781 = vunpack.c.l.b16 %v3741
    %v4782 = vunpack.c.h.b16 %v3741
    %v4783 = vunpack.c.l.b16 %v3742
    %v4784 = vunpack.c.h.b16 %v3742
    %v4785 = vunpack.c.l.b16 %v3743
    %v4786 = vunpack.c.h.b16 %v3743
    %v4787 = vunpack.c.l.b16 %v3744
    %v4788 = vunpack.c.h.b16 %v3744
    %v4789 = vunpack.c.l.b16 %v3745
    %v4790 = vunpack.c.h.b16 %v3745
    %v4791 = vunpack.c.l.b16 %v3746
    %v4792 = vunpack.c.h.b16 %v3746
    %v4793 = vunpack.c.l.b16 %v3747
    %v4794 = vunpack.c.h.b16 %v3747
    %v4795 = vunpack.c.l.b16 %v3748
    %v4796 = vunpack.c.h.b16 %v3748
    %v4797 = vunpack.c.l.b16 %v3749
    %v4798 = vunpack.c.h.b16 %v3749
    %v4799 = vunpack.c.l.b16 %v3750
    %v4800 = vunpack.c.h.b16 %v3750
    %v4801 = vunpack.c.l.b16 %v3751
    %v4802 = vunpack.c.h.b16 %v3751
    %v4803 = vunpack.c.l.b16 %v3752
    %v4804 = vunpack.c.h.b16 %v3752
    %v4805 = vunpack.c.l.b16 %v3753
    %v4806 = vunpack.c.h.b16 %v3753
    %v4807 = vunpack.c.l.b16 %v3754
    %v4808 = vunpack.c.h.b16 %v3754
    %v4809 = vunpack.c.l.b16 %v3755
    %v4810 = vunpack.c.h.b16 %v3755
    %v4811 = vunpack.c.l.b16 %v3756
    %v4812 = vunpack.c.h.b16 %v3756
    %v4813 = vunpack.c.l.b16 %v3757
    %v4814 = vunpack.c.h.b16 %v3757
    %v4815 = vunpack.c.l.b16 %v3758
    %v4816 = vunpack.c.h.b16 %v3758
    %v4817 = vunpack.c.l.b16 %v3759
    %v4818 = vunpack.c.h.b16 %v3759
    %v4819 = vunpack.c.l.b16 %v3760
    %v4820 = vunpack.c.h.b16 %v3760
    %v4821 = vunpack.c.l.b16 %v3761
    %v4822 = vunpack.c.h.b16 %v3761
    %v4823 = vunpack.c.l.b16 %v3762
    %v4824 = vunpack.c.h.b16 %v3762
    %v4825 = vunpack.c.l.b16 %v3763
    %v4826 = vunpack.c.h.b16 %v3763
    %v4827 = vunpack.c.l.b16 %v3764
    %v4828 = vunpack.c.h.b16 %v3764
    %v4829 = vunpack.c.l.b16 %v3765
    %v4830 = vunpack.c.h.b16 %v3765
    %v4831 = vunpack.c.l.b16 %v3766
    %v4832 = vunpack.c.h.b16 %v3766
    %v4833 = vunpack.c.l.b16 %v3767
    %v4834 = vunpack.c.h.b16 %v3767
    %v4835 = vunpack.c.l.b16 %v3768
    %v4836 = vunpack.c.h.b16 %v3768
    %v4837 = vunpack.c.l.b16 %v3769
    %v4838 = vunpack.c.h.b16 %v3769
    %v4839 = vunpack.c.l.b16 %v3770
    %v4840 = vunpack.c.h.b16 %v3770
    %v4841 = vunpack.c.l.b16 %v3771
    %v4842 = vunpack.c.h.b16 %v3771
    %v4843 = vunpack.c.l.b16 %v3772
    %v4844 = vunpack.c.h.b16 %v3772
    %v4845 = vunpack.c.l.b16 %v3773
    %v4846 = vunpack.c.h.b16 %v3773
    %v4847 = vunpack.c.l.b16 %v3774
    %v4848 = vunpack.c.h.b16 %v3774
    %v4849 = vunpack.c.l.b16 %v3775
    %v4850 = vunpack.c.h.b16 %v3775
    %v4851 = vunpack.c.l.b16 %v3776
    %v4852 = vunpack.c.h.b16 %v3776
    %v4853 = vunpack.c.l.b16 %v3777
    %v4854 = vunpack.c.h.b16 %v3777
    %v4855 = vunpack.c.l.b16 %v3778
    %v4856 = vunpack.c.h.b16 %v3778
    %v4857 = vunpack.c.l.b16 %v3779
    %v4858 = vunpack.c.h.b16 %v3779
    %v4859 = vunpack.c.l.b16 %v3780
    %v4860 = vunpack.c.h.b16 %v3780
    %v4861 = vunpack.c.l.b16 %v3781
    %v4862 = vunpack.c.h.b16 %v3781
    %v4863 = vunpack.c.l.b16 %v3782
    %v4864 = vunpack.c.h.b16 %v3782
    %v4865 = vunpack.c.l.b16 %v3783
    %v4866 = vunpack.c.h.b16 %v3783
    %v4867 = vunpack.c.l.b16 %v3784
    %v4868 = vunpack.c.h.b16 %v3784
    %v4869 = vunpack.c.l.b16 %v3785
    %v4870 = vunpack.c.h.b16 %v3785
    %v4871 = vunpack.c.l.b16 %v3786
    %v4872 = vunpack.c.h.b16 %v3786
    %v4873 = vunpack.c.l.b16 %v3787
    %v4874 = vunpack.c.h.b16 %v3787
    %v4875 = vunpack.c.l.b16 %v3788
    %v4876 = vunpack.c.h.b16 %v3788
    %v4877 = vunpack.c.l.b16 %v3789
    %v4878 = vunpack.c.h.b16 %v3789
    %v4879 = vunpack.c.l.b16 %v3790
    %v4880 = vunpack.c.h.b16 %v3790
    %v4881 = vunpack.c.l.b16 %v3791
    %v4882 = vunpack.c.h.b16 %v3791
    %v4883 = vunpack.c.l.b16 %v3792
    %v4884 = vunpack.c.h.b16 %v3792
    %v4885 = vunpack.c.l.b16 %v3793
    %v4886 = vunpack.c.h.b16 %v3793
    %v4887 = vunpack.c.l.b16 %v3794
    %v4888 = vunpack.c.h.b16 %v3794
    %v4889 = vunpack.c.l.b16 %v3795
    %v4890 = vunpack.c.h.b16 %v3795
    %v4891 = vunpack.c.l.b16 %v3796
    %v4892 = vunpack.c.h.b16 %v3796
    %v4893 = vunpack.c.l.b16 %v3797
    %v4894 = vunpack.c.h.b16 %v3797
    %v4895 = vunpack.c.l.b16 %v3798
    %v4896 = vunpack.c.h.b16 %v3798
    %v4897 = vunpack.c.l.b16 %v3799
    %v4898 = vunpack.c.h.b16 %v3799
    %v4899 = vunpack.c.l.b16 %v3800
    %v4900 = vunpack.c.h.b16 %v3800
    %v4901 = vunpack.c.l.b16 %v3801
    %v4902 = vunpack.c.h.b16 %v3801
    %v4903 = vunpack.c.l.b16 %v3802
    %v4904 = vunpack.c.h.b16 %v3802
    %v4905 = vunpack.c.l.b16 %v3803
    %v4906 = vunpack.c.h.b16 %v3803
    %v4907 = vunpack.c.l.b16 %v3804
    %v4908 = vunpack.c.h.b16 %v3804
    %v4909 = vunpack.c.l.b16 %v3805
    %v4910 = vunpack.c.h.b16 %v3805
    %v4911 = vunpack.c.l.b16 %v3806
    %v4912 = vunpack.c.h.b16 %v3806
    %v4913 = vunpack.c.l.b16 %v3807
    %v4914 = vunpack.c.h.b16 %v3807
    %v4915 = vunpack.c.l.b16 %v3808
    %v4916 = vunpack.c.h.b16 %v3808
    %v4917 = vunpack.c.l.b16 %v3809
    %v4918 = vunpack.c.h.b16 %v3809
    %v4919 = vunpack.c.l.b16 %v3810
    %v4920 = vunpack.c.h.b16 %v3810
    %v4921 = vunpack.c.l.b16 %v3811
    %v4922 = vunpack.c.h.b16 %v3811
    %v4923 = vunpack.c.l.b16 %v3812
    %v4924 = vunpack.c.h.b16 %v3812
    %v4925 = vunpack.c.l.b16 %v3813
    %v4926 = vunpack.c.h.b16 %v3813
    %v4927 = vunpack.c.l.b16 %v3814
    %v4928 = vunpack.c.h.b16 %v3814
    %v4929 = vunpack.c.l.b16 %v3815
    %v4930 = vunpack.c.h.b16 %v3815
    %v4931 = vunpack.c.l.b16 %v3816
    %v4932 = vunpack.c.h.b16 %v3816
    %v4933 = vunpack.c.l.b16 %v3817
    %v4934 = vunpack.c.h.b16 %v3817
    %v4935 = vunpack.c.l.b16 %v3818
    %v4936 = vunpack.c.h.b16 %v3818
    %v4937 = vunpack.c.l.b16 %v3819
    %v4938 = vunpack.c.h.b16 %v3819
    %v4939 = vunpack.c.l.b16 %v3820
    %v4940 = vunpack.c.h.b16 %v3820
    %v4941 = vunpack.c.l.b16 %v3821
    %v4942 = vunpack.c.h.b16 %v3821
    %v4943 = vunpack.c.l.b16 %v3822
    %v4944 = vunpack.c.h.b16 %v3822
    %v4945 = vunpack.c.l.b16 %v3823
    %v4946 = vunpack.c.h.b16 %v3823
    %v4947 = vunpack.c.l.b16 %v3824
    %v4948 = vunpack.c.h.b16 %v3824
    %v4949 = vunpack.c.l.b16 %v3825
    %v4950 = vunpack.c.h.b16 %v3825
    %v4951 = vunpack.c.l.b16 %v3826
    %v4952 = vunpack.c.h.b16 %v3826
    %v4953 = vunpack.c.l.b16 %v3827
    %v4954 = vunpack.c.h.b16 %v3827
    %v4955 = vunpack.c.l.b16 %v3828
    %v4956 = vunpack.c.h.b16 %v3828
    %v4957 = vunpack.c.l.b16 %v3829
    %v4958 = vunpack.c.h.b16 %v3829
    %v4959 = vunpack.c.l.b16 %v3830
    %v4960 = vunpack.c.h.b16 %v3830
    %v4961 = vunpack.c.l.b16 %v3831
    %v4962 = vunpack.c.h.b16 %v3831
    %v4963 = vunpack.c.l.b16 %v3832
    %v4964 = vunpack.c.h.b16 %v3832
    %v4965 = vunpack.c.l.b16 %v3833
    %v4966 = vunpack.c.h.b16 %v3833
    %v4967 = vunpack.c.l.b16 %v3834
    %v4968 = vunpack.c.h.b16 %v3834
    %v4969 = vunpack.c.l.b16 %v3835
    %v4970 = vunpack.c.h.b16 %v3835
    %v4971 = vunpack.c.l.b16 %v3836
    %v4972 = vunpack.c.h.b16 %v3836
    %v4973 = vunpack.c.l.b16 %v3837
    %v4974 = vunpack.c.h.b16 %v3837
    %v4975 = vunpack.c.l.b16 %v3838
    %v4976 = vunpack.c.h.b16 %v3838
    %v4977 = vunpack.c.l.b16 %v3839
    %v4978 = vunpack.c.h.b16 %v3839
    %v4979 = vunpack.c.l.b16 %v3840
    %v4980 = vunpack.c.h.b16 %v3840
    %v4981 = vunpack.c.l.b16 %v3841
    %v4982 = vunpack.c.h.b16 %v3841
    %v4983 = vunpack.c.l.b16 %v3842
    %v4984 = vunpack.c.h.b16 %v3842
    %v4985 = vunpack.c.l.b16 %v3843
    %v4986 = vunpack.c.h.b16 %v3843
    %v4987 = vunpack.c.l.b16 %v3844
    %v4988 = vunpack.c.h.b16 %v3844
    %v4989 = vunpack.c.l.b16 %v3845
    %v4990 = vunpack.c.h.b16 %v3845
    %v4991 = vunpack.c.l.b16 %v3846
    %v4992 = vunpack.c.h.b16 %v3846
    %v4993 = vunpack.c.l.b16 %v3847
    %v4994 = vunpack.c.h.b16 %v3847
    %v4995 = vunpack.c.l.b16 %v3848
    %v4996 = vunpack.c.h.b16 %v3848
    %v4997 = vunpack.c.l.b16 %v3849
    %v4998 = vunpack.c.h.b16 %v3849
    %v4999 = vunpack.c.l.b16 %v3850
    %v5000 = vunpack.c.h.b16 %v3850
    %v5001 = vunpack.c.l.b16 %v3851
    %v5002 = vunpack.c.h.b16 %v3851
    %v5003 = vunpack.c.l.b16 %v3852
    %v5004 = vunpack.c.h.b16 %v3852
    %v5005 = vpack.c.b16 %v4249, %v4237
    %v5006 = vpack.c.b16 %v4250, %v4238
    %v5007 = vpack.c.b16 %v4251, %v4239
    %v5008 = vpack.c.b16 %v4252, %v4240
    %v5009 = vpack.c.b16 %v4253, %v4241
    %v5010 = vpack.c.b16 %v4254, %v4242
    %v5011 = vpack.c.b16 %v4255, %v4243
    %v5012 = vpack.c.b16 %v4256, %v4244
    %v5013 = vpack.c.b16 %v4257, %v4245
    %v5014 = vpack.c.b16 %v4258, %v4246
    %v5015 = vpack.c.b16 %v4259, %v4247
    %v5016 = vpack.c.b16 %v4260, %v4248
    %v5017 = vpack.c.b16 %v4273, %v4261
    %v5018 = vpack.c.b16 %v4274, %v4262
    %v5019 = vpack.c.b16 %v4275, %v4263
    %v5020 = vpack.c.b16 %v4276, %v4264
    %v5021 = vpack.c.b16 %v4277, %v4265
    %v5022 = vpack.c.b16 %v4278, %v4266
    %v5023 = vpack.c.b16 %v4279, %v4267
    %v5024 = vpack.c.b16 %v4280, %v4268
    %v5025 = vpack.c.b16 %v4281, %v4269
    %v5026 = vpack.c.b16 %v4282, %v4270
    %v5027 = vpack.c.b16 %v4283, %v4271
    %v5028 = vpack.c.b16 %v4284, %v4272
    %v5029 = vpack.c.b16 %v4297, %v4285
    %v5030 = vpack.c.b16 %v4298, %v4286
    %v5031 = vpack.c.b16 %v4299, %v4287
    %v5032 = vpack.c.b16 %v4300, %v4288
    %v5033 = vpack.c.b16 %v4301, %v4289
    %v5034 = vpack.c.b16 %v4302, %v4290
    %v5035 = vpack.c.b16 %v4303, %v4291
    %v5036 = vpack.c.b16 %v4304, %v4292
    %v5037 = vpack.c.b16 %v4305, %v4293
    %v5038 = vpack.c.b16 %v4306, %v4294
    %v5039 = vpack.c.b16 %v4307, %v4295
    %v5040 = vpack.c.b16 %v4308, %v4296
    %v5041 = vpack.c.b16 %v4321, %v4309
    %v5042 = vpack.c.b16 %v4322, %v4310
    %v5043 = vpack.c.b16 %v4323, %v4311
    %v5044 = vpack.c.b16 %v4324, %v4312
    %v5045 = vpack.c.b16 %v4325, %v4313
    %v5046 = vpack.c.b16 %v4326, %v4314
    %v5047 = vpack.c.b16 %v4327, %v4315
    %v5048 = vpack.c.b16 %v4328, %v4316
    %v5049 = vpack.c.b16 %v4329, %v4317
    %v5050 = vpack.c.b16 %v4330, %v4318
    %v5051 = vpack.c.b16 %v4331, %v4319
    %v5052 = vpack.c.b16 %v4332, %v4320
    %v5053 = vpack.c.b16 %v4345, %v4333
    %v5054 = vpack.c.b16 %v4346, %v4334
    %v5055 = vpack.c.b16 %v4347, %v4335
    %v5056 = vpack.c.b16 %v4348, %v4336
    %v5057 = vpack.c.b16 %v4349, %v4337
    %v5058 = vpack.c.b16 %v4350, %v4338
    %v5059 = vpack.c.b16 %v4351, %v4339
    %v5060 = vpack.c.b16 %v4352, %v4340
    %v5061 = vpack.c.b16 %v4353, %v4341
    %v5062 = vpack.c.b16 %v4354, %v4342
    %v5063 = vpack.c.b16 %v4355, %v4343
    %v5064 = vpack.c.b16 %v4356, %v4344
    %v5065 = vpack.c.b16 %v4369, %v4357
    %v5066 = vpack.c.b16 %v4370, %v4358
    %v5067 = vpack.c.b16 %v4371, %v4359
    %v5068 = vpack.c.b16 %v4372, %v4360
    %v5069 = vpack.c.b16 %v4373, %v4361
    %v5070 = vpack.c.b16 %v4374, %v4362
    %v5071 = vpack.c.b16 %v4375, %v4363
    %v5072 = vpack.c.b16 %v4376, %v4364
    %v5073 = vpack.c.b16 %v4377, %v4365
    %v5074 = vpack.c.b16 %v4378, %v4366
    %v5075 = vpack.c.b16 %v4379, %v4367
    %v5076 = vpack.c.b16 %v4380, %v4368
    %v5077 = vpack.c.b16 %v4393, %v4381
    %v5078 = vpack.c.b16 %v4394, %v4382
    %v5079 = vpack.c.b16 %v4395, %v4383
    %v5080 = vpack.c.b16 %v4396, %v4384
    %v5081 = vpack.c.b16 %v4397, %v4385
    %v5082 = vpack.c.b16 %v4398, %v4386
    %v5083 = vpack.c.b16 %v4399, %v4387
    %v5084 = vpack.c.b16 %v4400, %v4388
    %v5085 = vpack.c.b16 %v4401, %v4389
    %v5086 = vpack.c.b16 %v4402, %v4390
    %v5087 = vpack.c.b16 %v4403, %v4391
    %v5088 = vpack.c.b16 %v4404, %v4392
    %v5089 = vpack.c.b16 %v4417, %v4405
    %v5090 = vpack.c.b16 %v4418, %v4406
    %v5091 = vpack.c.b16 %v4419, %v4407
    %v5092 = vpack.c.b16 %v4420, %v4408
    %v5093 = vpack.c.b16 %v4421, %v4409
    %v5094 = vpack.c.b16 %v4422, %v4410
    %v5095 = vpack.c.b16 %v4423, %v4411
    %v5096 = vpack.c.b16 %v4424, %v4412
    %v5097 = vpack.c.b16 %v4425, %v4413
    %v5098 = vpack.c.b16 %v4426, %v4414
    %v5099 = vpack.c.b16 %v4427, %v4415
    %v5100 = vpack.c.b16 %v4428, %v4416
    %v5101 = vpack.c.b16 %v4441, %v4429
    %v5102 = vpack.c.b16 %v4442, %v4430
    %v5103 = vpack.c.b16 %v4443, %v4431
    %v5104 = vpack.c.b16 %v4444, %v4432
    %v5105 = vpack.c.b16 %v4445, %v4433
    %v5106 = vpack.c.b16 %v4446, %v4434
    %v5107 = vpack.c.b16 %v4447, %v4435
    %v5108 = vpack.c.b16 %v4448, %v4436
    %v5109 = vpack.c.b16 %v4449, %v4437
    %v5110 = vpack.c.b16 %v4450, %v4438
    %v5111 = vpack.c.b16 %v4451, %v4439
    %v5112 = vpack.c.b16 %v4452, %v4440
    %v5113 = vpack.c.b16 %v4465, %v4453
    %v5114 = vpack.c.b16 %v4466, %v4454
    %v5115 = vpack.c.b16 %v4467, %v4455
    %v5116 = vpack.c.b16 %v4468, %v4456
    %v5117 = vpack.c.b16 %v4469, %v4457
    %v5118 = vpack.c.b16 %v4470, %v4458
    %v5119 = vpack.c.b16 %v4471, %v4459
    %v5120 = vpack.c.b16 %v4472, %v4460
    %v5121 = vpack.c.b16 %v4473, %v4461
    %v5122 = vpack.c.b16 %v4474, %v4462
    %v5123 = vpack.c.b16 %v4475, %v4463
    %v5124 = vpack.c.b16 %v4476, %v4464
    %v5125 = vpack.c.b16 %v4489, %v4477
    %v5126 = vpack.c.b16 %v4490, %v4478
    %v5127 = vpack.c.b16 %v4491, %v4479
    %v5128 = vpack.c.b16 %v4492, %v4480
    %v5129 = vpack.c.b16 %v4493, %v4481
    %v5130 = vpack.c.b16 %v4494, %v4482
    %v5131 = vpack.c.b16 %v4495, %v4483
    %v5132 = vpack.c.b16 %v4496, %v4484
    %v5133 = vpack.c.b16 %v4497, %v4485
    %v5134 = vpack.c.b16 %v4498, %v4486
    %v5135 = vpack.c.b16 %v4499, %v4487
    %v5136 = vpack.c.b16 %v4500, %v4488
    %v5137 = vpack.c.b16 %v4513, %v4501
    %v5138 = vpack.c.b16 %v4514, %v4502
    %v5139 = vpack.c.b16 %v4515, %v4503
    %v5140 = vpack.c.b16 %v4516, %v4504
    %v5141 = vpack.c.b16 %v4517, %v4505
    %v5142 = vpack.c.b16 %v4518, %v4506
    %v5143 = vpack.c.b16 %v4519, %v4507
    %v5144 = vpack.c.b16 %v4520, %v4508
    %v5145 = vpack.c.b16 %v4521, %v4509
    %v5146 = vpack.c.b16 %v4522, %v4510
    %v5147 = vpack.c.b16 %v4523, %v4511
    %v5148 = vpack.c.b16 %v4524, %v4512
    %v5149 = vpack.c.b16 %v4537, %v4525
    %v5150 = vpack.c.b16 %v4538, %v4526
    %v5151 = vpack.c.b16 %v4539, %v4527
    %v5152 = vpack.c.b16 %v4540, %v4528
    %v5153 = vpack.c.b16 %v4541, %v4529
    %v5154 = vpack.c.b16 %v4542, %v4530
    %v5155 = vpack.c.b16 %v4543, %v4531
    %v5156 = vpack.c.b16 %v4544, %v4532
    %v5157 = vpack.c.b16 %v4545, %v4533
    %v5158 = vpack.c.b16 %v4546, %v4534
    %v5159 = vpack.c.b16 %v4547, %v4535
    %v5160 = vpack.c.b16 %v4548, %v4536
    %v5161 = vpack.c.b16 %v4561, %v4549
    %v5162 = vpack.c.b16 %v4562, %v4550
    %v5163 = vpack.c.b16 %v4563, %v4551
    %v5164 = vpack.c.b16 %v4564, %v4552
    %v5165 = vpack.c.b16 %v4565, %v4553
    %v5166 = vpack.c.b16 %v4566, %v4554
    %v5167 = vpack.c.b16 %v4567, %v4555
    %v5168 = vpack.c.b16 %v4568, %v4556
    %v5169 = vpack.c.b16 %v4569, %v4557
    %v5170 = vpack.c.b16 %v4570, %v4558
    %v5171 = vpack.c.b16 %v4571, %v4559
    %v5172 = vpack.c.b16 %v4572, %v4560
    %v5173 = vpack.c.b16 %v4585, %v4573
    %v5174 = vpack.c.b16 %v4586, %v4574
    %v5175 = vpack.c.b16 %v4587, %v4575
    %v5176 = vpack.c.b16 %v4588, %v4576
    %v5177 = vpack.c.b16 %v4589, %v4577
    %v5178 = vpack.c.b16 %v4590, %v4578
    %v5179 = vpack.c.b16 %v4591, %v4579
    %v5180 = vpack.c.b16 %v4592, %v4580
    %v5181 = vpack.c.b16 %v4593, %v4581
    %v5182 = vpack.c.b16 %v4594, %v4582
    %v5183 = vpack.c.b16 %v4595, %v4583
    %v5184 = vpack.c.b16 %v4596, %v4584
    %v5185 = vpack.c.b16 %v4609, %v4597
    %v5186 = vpack.c.b16 %v4610, %v4598
    %v5187 = vpack.c.b16 %v4611, %v4599
    %v5188 = vpack.c.b16 %v4612, %v4600
    %v5189 = vpack.c.b16 %v4613, %v4601
    %v5190 = vpack.c.b16 %v4614, %v4602
    %v5191 = vpack.c.b16 %v4615, %v4603
    %v5192 = vpack.c.b16 %v4616, %v4604
    %v5193 = vpack.c.b16 %v4617, %v4605
    %v5194 = vpack.c.b16 %v4618, %v4606
    %v5195 = vpack.c.b16 %v4619, %v4607
    %v5196 = vpack.c.b16 %v4620, %v4608
    %v5197 = vpack.c.b16 %v4633, %v4621
    %v5198 = vpack.c.b16 %v4634, %v4622
    %v5199 = vpack.c.b16 %v4635, %v4623
    %v5200 = vpack.c.b16 %v4636, %v4624
    %v5201 = vpack.c.b16 %v4637, %v4625
    %v5202 = vpack.c.b16 %v4638, %v4626
    %v5203 = vpack.c.b16 %v4639, %v4627
    %v5204 = vpack.c.b16 %v4640, %v4628
    %v5205 = vpack.c.b16 %v4641, %v4629
    %v5206 = vpack.c.b16 %v4642, %v4630
    %v5207 = vpack.c.b16 %v4643, %v4631
    %v5208 = vpack.c.b16 %v4644, %v4632
    %v5209 = vpack.c.b16 %v4657, %v4645
    %v5210 = vpack.c.b16 %v4658, %v4646
    %v5211 = vpack.c.b16 %v4659, %v4647
    %v5212 = vpack.c.b16 %v4660, %v4648
    %v5213 = vpack.c.b16 %v4661, %v4649
    %v5214 = vpack.c.b16 %v4662, %v4650
    %v5215 = vpack.c.b16 %v4663, %v4651
    %v5216 = vpack.c.b16 %v4664, %v4652
    %v5217 = vpack.c.b16 %v4665, %v4653
    %v5218 = vpack.c.b16 %v4666, %v4654
    %v5219 = vpack.c.b16 %v4667, %v4655
    %v5220 = vpack.c.b16 %v4668, %v4656
    %v5221 = vpack.c.b16 %v4681, %v4669
    %v5222 = vpack.c.b16 %v4682, %v4670
    %v5223 = vpack.c.b16 %v4683, %v4671
    %v5224 = vpack.c.b16 %v4684, %v4672
    %v5225 = vpack.c.b16 %v4685, %v4673
    %v5226 = vpack.c.b16 %v4686, %v4674
    %v5227 = vpack.c.b16 %v4687, %v4675
    %v5228 = vpack.c.b16 %v4688, %v4676
    %v5229 = vpack.c.b16 %v4689, %v4677
    %v5230 = vpack.c.b16 %v4690, %v4678
    %v5231 = vpack.c.b16 %v4691, %v4679
    %v5232 = vpack.c.b16 %v4692, %v4680
    %v5233 = vpack.c.b16 %v4705, %v4693
    %v5234 = vpack.c.b16 %v4706, %v4694
    %v5235 = vpack.c.b16 %v4707, %v4695
    %v5236 = vpack.c.b16 %v4708, %v4696
    %v5237 = vpack.c.b16 %v4709, %v4697
    %v5238 = vpack.c.b16 %v4710, %v4698
    %v5239 = vpack.c.b16 %v4711, %v4699
    %v5240 = vpack.c.b16 %v4712, %v4700
    %v5241 = vpack.c.b16 %v4713, %v4701
    %v5242 = vpack.c.b16 %v4714, %v4702
    %v5243 = vpack.c.b16 %v4715, %v4703
    %v5244 = vpack.c.b16 %v4716, %v4704
    %v5245 = vpack.c.b16 %v4729, %v4717
    %v5246 = vpack.c.b16 %v4730, %v4718
    %v5247 = vpack.c.b16 %v4731, %v4719
    %v5248 = vpack.c.b16 %v4732, %v4720
    %v5249 = vpack.c.b16 %v4733, %v4721
    %v5250 = vpack.c.b16 %v4734, %v4722
    %v5251 = vpack.c.b16 %v4735, %v4723
    %v5252 = vpack.c.b16 %v4736, %v4724
    %v5253 = vpack.c.b16 %v4737, %v4725
    %v5254 = vpack.c.b16 %v4738, %v4726
    %v5255 = vpack.c.b16 %v4739, %v4727
    %v5256 = vpack.c.b16 %v4740, %v4728
    %v5257 = vpack.c.b16 %v4753, %v4741
    %v5258 = vpack.c.b16 %v4754, %v4742
    %v5259 = vpack.c.b16 %v4755, %v4743
    %v5260 = vpack.c.b16 %v4756, %v4744
    %v5261 = vpack.c.b16 %v4757, %v4745
    %v5262 = vpack.c.b16 %v4758, %v4746
    %v5263 = vpack.c.b16 %v4759, %v4747
    %v5264 = vpack.c.b16 %v4760, %v4748
    %v5265 = vpack.c.b16 %v4761, %v4749
    %v5266 = vpack.c.b16 %v4762, %v4750
    %v5267 = vpack.c.b16 %v4763, %v4751
    %v5268 = vpack.c.b16 %v4764, %v4752
    %v5269 = vpack.c.b16 %v4777, %v4765
    %v5270 = vpack.c.b16 %v4778, %v4766
    %v5271 = vpack.c.b16 %v4779, %v4767
    %v5272 = vpack.c.b16 %v4780, %v4768
    %v5273 = vpack.c.b16 %v4781, %v4769
    %v5274 = vpack.c.b16 %v4782, %v4770
    %v5275 = vpack.c.b16 %v4783, %v4771
    %v5276 = vpack.c.b16 %v4784, %v4772
    %v5277 = vpack.c.b16 %v4785, %v4773
    %v5278 = vpack.c.b16 %v4786, %v4774
    %v5279 = vpack.c.b16 %v4787, %v4775
    %v5280 = vpack.c.b16 %v4788, %v4776
    %v5281 = vpack.c.b16 %v4801, %v4789
    %v5282 = vpack.c.b16 %v4802, %v4790
    %v5283 = vpack.c.b16 %v4803, %v4791
    %v5284 = vpack.c.b16 %v4804, %v4792
    %v5285 = vpack.c.b16 %v4805, %v4793
    %v5286 = vpack.c.b16 %v4806, %v4794
    %v5287 = vpack.c.b16 %v4807, %v4795
    %v5288 = vpack.c.b16 %v4808, %v4796
    %v5289 = vpack.c.b16 %v4809, %v4797
    %v5290 = vpack.c.b16 %v4810, %v4798
    %v5291 = vpack.c.b16 %v4811, %v4799
    %v5292 = vpack.c.b16 %v4812, %v4800
    %v5293 = vpack.c.b16 %v4825, %v4813
    %v5294 = vpack.c.b16 %v4826, %v4814
    %v5295 = vpack.c.b16 %v4827, %v4815
    %v5296 = vpack.c.b16 %v4828, %v4816
    %v5297 = vpack.c.b16 %v4829, %v4817
    %v5298 = vpack.c.b16 %v4830, %v4818
    %v5299 = vpack.c.b16 %v4831, %v4819
    %v5300 = vpack.c.b16 %v4832, %v4820
    %v5301 = vpack.c.b16 %v4833, %v4821
    %v5302 = vpack.c.b16 %v4834, %v4822
    %v5303 = vpack.c.b16 %v4835, %v4823
    %v5304 = vpack.c.b16 %v4836, %v4824
    %v5305 = vpack.c.b16 %v4849, %v4837
    %v5306 = vpack.c.b16 %v4850, %v4838
    %v5307 = vpack.c.b16 %v4851, %v4839
    %v5308 = vpack.c.b16 %v4852, %v4840
    %v5309 = vpack.c.b16 %v4853, %v4841
    %v5310 = vpack.c.b16 %v4854, %v4842
    %v5311 = vpack.c.b16 %v4855, %v4843
    %v5312 = vpack.c.b16 %v4856, %v4844
    %v5313 = vpack.c.b16 %v4857, %v4845
    %v5314 = vpack.c.b16 %v4858, %v4846
    %v5315 = vpack.c.b16 %v4859, %v4847
    %v5316 = vpack.c.b16 %v4860, %v4848
    %v5317 = vpack.c.b16 %v4873, %v4861
    %v5318 = vpack.c.b16 %v4874, %v4862
    %v5319 = vpack.c.b16 %v4875, %v4863
    %v5320 = vpack.c.b16 %v4876, %v4864
    %v5321 = vpack.c.b16 %v4877, %v4865
    %v5322 = vpack.c.b16 %v4878, %v4866
    %v5323 = vpack.c.b16 %v4879, %v4867
    %v5324 = vpack.c.b16 %v4880, %v4868
    %v5325 = vpack.c.b16 %v4881, %v4869
    %v5326 = vpack.c.b16 %v4882, %v4870
    %v5327 = vpack.c.b16 %v4883, %v4871
    %v5328 = vpack.c.b16 %v4884, %v4872
    %v5329 = vpack.c.b16 %v4897, %v4885
    %v5330 = vpack.c.b16 %v4898, %v4886
    %v5331 = vpack.c.b16 %v4899, %v4887
    %v5332 = vpack.c.b16 %v4900, %v4888
    %v5333 = vpack.c.b16 %v4901, %v4889
    %v5334 = vpack.c.b16 %v4902, %v4890
    %v5335 = vpack.c.b16 %v4903, %v4891
    %v5336 = vpack.c.b16 %v4904, %v4892
    %v5337 = vpack.c.b16 %v4905, %v4893
    %v5338 = vpack.c.b16 %v4906, %v4894
    %v5339 = vpack.c.b16 %v4907, %v4895
    %v5340 = vpack.c.b16 %v4908, %v4896
    %v5341 = vpack.c.b16 %v4921, %v4909
    %v5342 = vpack.c.b16 %v4922, %v4910
    %v5343 = vpack.c.b16 %v4923, %v4911
    %v5344 = vpack.c.b16 %v4924, %v4912
    %v5345 = vpack.c.b16 %v4925, %v4913
    %v5346 = vpack.c.b16 %v4926, %v4914
    %v5347 = vpack.c.b16 %v4927, %v4915
    %v5348 = vpack.c.b16 %v4928, %v4916
    %v5349 = vpack.c.b16 %v4929, %v4917
    %v5350 = vpack.c.b16 %v4930, %v4918
    %v5351 = vpack.c.b16 %v4931, %v4919
    %v5352 = vpack.c.b16 %v4932, %v4920
    %v5353 = vpack.c.b16 %v4945, %v4933
    %v5354 = vpack.c.b16 %v4946, %v4934
    %v5355 = vpack.c.b16 %v4947, %v4935
    %v5356 = vpack.c.b16 %v4948, %v4936
    %v5357 = vpack.c.b16 %v4949, %v4937
    %v5358 = vpack.c.b16 %v4950, %v4938
    %v5359 = vpack.c.b16 %v4951, %v4939
    %v5360 = vpack.c.b16 %v4952, %v4940
    %v5361 = vpack.c.b16 %v4953, %v4941
    %v5362 = vpack.c.b16 %v4954, %v4942
    %v5363 = vpack.c.b16 %v4955, %v4943
    %v5364 = vpack.c.b16 %v4956, %v4944
    %v5365 = vpack.c.b16 %v4969, %v4957
    %v5366 = vpack.c.b16 %v4970, %v4958
    %v5367 = vpack.c.b16 %v4971, %v4959
    %v5368 = vpack.c.b16 %v4972, %v4960
    %v5369 = vpack.c.b16 %v4973, %v4961
    %v5370 = vpack.c.b16 %v4974, %v4962
    %v5371 = vpack.c.b16 %v4975, %v4963
    %v5372 = vpack.c.b16 %v4976, %v4964
    %v5373 = vpack.c.b16 %v4977, %v4965
    %v5374 = vpack.c.b16 %v4978, %v4966
    %v5375 = vpack.c.b16 %v4979, %v4967
    %v5376 = vpack.c.b16 %v4980, %v4968
    %v5377 = vpack.c.b16 %v4993, %v4981
    %v5378 = vpack.c.b16 %v4994, %v4982
    %v5379 = vpack.c.b16 %v4995, %v4983
    %v5380 = vpack.c.b16 %v4996, %v4984
    %v5381 = vpack.c.b16 %v4997, %v4985
    %v5382 = vpack.c.b16 %v4998, %v4986
    %v5383 = vpack.c.b16 %v4999, %v4987
    %v5384 = vpack.c.b16 %v5000, %v4988
    %v5385 = vpack.c.b16 %v5001, %v4989
    %v5386 = vpack.c.b16 %v5002, %v4990
    %v5387 = vpack.c.b16 %v5003, %v4991
    %v5388 = vpack.c.b16 %v5004, %v4992
    %5773 = vmatprep.subr.bf16.mxu0 %v5090
    %5774 = vmatpush1.bf16.msra.mxu0 %v5089
    %5775 = vmatprep.subr.bf16.mxu0 %v5078
    %5776 = vmatpush1.bf16.msra.mxu0 %v5077
    %5777 = vmatprep.subr.bf16.mxu0 %v5066
    %5778 = vmatpush1.bf16.msra.mxu0 %v5065
    %5779 = vmatprep.subr.bf16.mxu0 %v5054
    %5780 = vmatpush1.bf16.msra.mxu0 %v5053
    %5781 = vmatprep.subr.bf16.mxu0 %v5042
    %5782 = vmatpush1.bf16.msra.mxu0 %v5041
    %5783 = vmatprep.subr.bf16.mxu0 %v5030
    %5784 = vmatpush1.bf16.msra.mxu0 %v5029
    %5785 = vmatprep.subr.bf16.mxu0 %v5018
    %5786 = vmatpush1.bf16.msra.mxu0 %v5017
    %5787 = vmatprep.subr.bf16.mxu0 %v5006
    %5788 = vmatpush1.bf16.msra.mxu0 %v5005
    %5789 = vmatprep.subr.bf16.mxu0 %v5186
    %5790 = vmatpush2.bf16.msra.mxu0 %v5185
    %5791 = vmatprep.subr.bf16.mxu0 %v5174
    %5792 = vmatpush2.bf16.msra.mxu0 %v5173
    %5793 = vmatprep.subr.bf16.mxu0 %v5162
    %5794 = vmatpush2.bf16.msra.mxu0 %v5161
    %5795 = vmatprep.subr.bf16.mxu0 %v5150
    %5796 = vmatpush2.bf16.msra.mxu0 %v5149
    %5797 = vmatprep.subr.bf16.mxu0 %v5138
    %5798 = vmatpush2.bf16.msra.mxu0 %v5137
    %5799 = vmatprep.subr.bf16.mxu0 %v5126
    %5800 = vmatpush2.bf16.msra.mxu0 %v5125
    %5801 = vmatprep.subr.bf16.mxu0 %v5114
    %5802 = vmatpush2.bf16.msra.mxu0 %v5113
    %5803 = vmatprep.subr.bf16.mxu0 %v5102
    %5804 = vmatpush2.bf16.msra.mxu0 %v5101
    %5805 = vmatprep.mubr.bf16.mxu0 %v3458
    %5806 = vmatmul.mubr.bf16.gmra.mxu0 %v3457
    %v5807 = vpop.f32.mrf.mxu0
    %v5808 = vadd.f32 0.0, %v5807
    %v5809 = vpop.f32.mrf.mxu0
    %v5810 = vadd.f32 0.0, %v5809
    %v5811 = vpop.f32.mrf.mxu0
    %v5812 = vadd.f32 0.0, %v5811
    %v5813 = vpop.f32.mrf.mxu0
    %v5814 = vadd.f32 0.0, %v5813
    %5815 = vmatprep.mubr.bf16.mxu0 %v3462
    %5816 = vmatmul.mubr.bf16.gmra.mxu0 %v3461
    %v5817 = vpop.f32.mrf.mxu0
    %v5818 = vadd.f32 0.0, %v5817
    %v5819 = vpop.f32.mrf.mxu0
    %v5820 = vadd.f32 0.0, %v5819
    %v5821 = vpop.f32.mrf.mxu0
    %v5822 = vadd.f32 0.0, %v5821
    %v5823 = vpop.f32.mrf.mxu0
    %v5824 = vadd.f32 0.0, %v5823
    %5825 = vmatprep.mubr.bf16.mxu0 %v3466
    %5826 = vmatmul.mubr.bf16.gmra.mxu0 %v3465
    %v5827 = vpop.f32.mrf.mxu0
    %v5828 = vadd.f32 0.0, %v5827
    %v5829 = vpop.f32.mrf.mxu0
    %v5830 = vadd.f32 0.0, %v5829
    %v5831 = vpop.f32.mrf.mxu0
    %v5832 = vpop.f32.mrf.mxu0
    %5833 = vdwg.mxu0
    %5834 = vmatprep.subr.bf16.mxu0 %v5282
    %5835 = vmatpush1.bf16.msra.mxu0 %v5281
    %5836 = vmatprep.subr.bf16.mxu0 %v5270
    %5837 = vmatpush1.bf16.msra.mxu0 %v5269
    %5838 = vmatprep.subr.bf16.mxu0 %v5258
    %5839 = vmatpush1.bf16.msra.mxu0 %v5257
    %5840 = vmatprep.subr.bf16.mxu0 %v5246
    %5841 = vmatpush1.bf16.msra.mxu0 %v5245
    %5842 = vmatprep.subr.bf16.mxu0 %v5234
    %5843 = vmatpush1.bf16.msra.mxu0 %v5233
    %5844 = vmatprep.subr.bf16.mxu0 %v5222
    %5845 = vmatpush1.bf16.msra.mxu0 %v5221
    %5846 = vmatprep.subr.bf16.mxu0 %v5210
    %5847 = vmatpush1.bf16.msra.mxu0 %v5209
    %5848 = vmatprep.subr.bf16.mxu0 %v5198
    %5849 = vmatpush1.bf16.msra.mxu0 %v5197
    %5850 = vmatprep.subr.bf16.mxu0 %v5378
    %5851 = vmatpush2.bf16.msra.mxu0 %v5377
    %5852 = vmatprep.subr.bf16.mxu0 %v5366
    %5853 = vmatpush2.bf16.msra.mxu0 %v5365
    %5854 = vmatprep.subr.bf16.mxu0 %v5354
    %5855 = vmatpush2.bf16.msra.mxu0 %v5353
    %5856 = vmatprep.subr.bf16.mxu0 %v5342
    %5857 = vmatpush2.bf16.msra.mxu0 %v5341
    %5858 = vmatprep.subr.bf16.mxu0 %v5330
    %5859 = vmatpush2.bf16.msra.mxu0 %v5329
    %5860 = vmatprep.subr.bf16.mxu0 %v5318
    %5861 = vmatpush2.bf16.msra.mxu0 %v5317
    %5862 = vmatprep.subr.bf16.mxu0 %v5306
    %5863 = vmatpush2.bf16.msra.mxu0 %v5305
    %5864 = vmatprep.subr.bf16.mxu0 %v5294
    %5865 = vmatpush2.bf16.msra.mxu0 %v5293
    %5866 = vmatprep.mubr.bf16.mxu0 %v3460
    %5867 = vmatmul.mubr.bf16.gmra.mxu0 %v3459
    %v5868 = vpop.f32.mrf.mxu0
    %v5869 = vadd.f32 %v5808, %v5868
    %v5870 = vpop.f32.mrf.mxu0
    %v5871 = vadd.f32 %v5810, %v5870
    %v5872 = vpop.f32.mrf.mxu0
    %v5873 = vadd.f32 %v5812, %v5872
    %v5874 = vpop.f32.mrf.mxu0
    %v5875 = vadd.f32 %v5814, %v5874
    %5876 = vmatprep.mubr.bf16.mxu0 %v3464
    %5877 = vmatmul.mubr.bf16.gmra.mxu0 %v3463
    %v5878 = vpop.f32.mrf.mxu0
    %v5879 = vadd.f32 %v5818, %v5878
    %v5880 = vpop.f32.mrf.mxu0
    %v5881 = vadd.f32 %v5820, %v5880
    %v5882 = vpop.f32.mrf.mxu0
    %v5883 = vadd.f32 %v5822, %v5882
    %v5884 = vpop.f32.mrf.mxu0
    %v5885 = vadd.f32 %v5824, %v5884
    %5886 = vmatprep.mubr.bf16.mxu0 %v3468
    %5887 = vmatmul.mubr.bf16.gmra.mxu0 %v3467
    %v5888 = vpop.f32.mrf.mxu0
    %v5889 = vadd.f32 %v5828, %v5888
    %v5890 = vpop.f32.mrf.mxu0
    %v5891 = vadd.f32 %v5830, %v5890
    %v5892 = vpop.f32.mrf.mxu0
    %v5893 = vpop.f32.mrf.mxu0
    %5894 = vdwg.mxu0
    %5895 = vmatprep.subr.bf16.mxu0 %v5092
    %5896 = vmatpush1.bf16.msra.mxu0 %v5091
    %5897 = vmatprep.subr.bf16.mxu0 %v5080
    %5898 = vmatpush1.bf16.msra.mxu0 %v5079
    %5899 = vmatprep.subr.bf16.mxu0 %v5068
    %5900 = vmatpush1.bf16.msra.mxu0 %v5067
    %5901 = vmatprep.subr.bf16.mxu0 %v5056
    %5902 = vmatpush1.bf16.msra.mxu0 %v5055
    %5903 = vmatprep.subr.bf16.mxu0 %v5044
    %5904 = vmatpush1.bf16.msra.mxu0 %v5043
    %5905 = vmatprep.subr.bf16.mxu0 %v5032
    %5906 = vmatpush1.bf16.msra.mxu0 %v5031
    %5907 = vmatprep.subr.bf16.mxu0 %v5020
    %5908 = vmatpush1.bf16.msra.mxu0 %v5019
    %5909 = vmatprep.subr.bf16.mxu0 %v5008
    %5910 = vmatpush1.bf16.msra.mxu0 %v5007
    %5911 = vmatprep.subr.bf16.mxu0 %v5188
    %5912 = vmatpush2.bf16.msra.mxu0 %v5187
    %5913 = vmatprep.subr.bf16.mxu0 %v5176
    %5914 = vmatpush2.bf16.msra.mxu0 %v5175
    %5915 = vmatprep.subr.bf16.mxu0 %v5164
    %5916 = vmatpush2.bf16.msra.mxu0 %v5163
    %5917 = vmatprep.subr.bf16.mxu0 %v5152
    %5918 = vmatpush2.bf16.msra.mxu0 %v5151
    %5919 = vmatprep.subr.bf16.mxu0 %v5140
    %5920 = vmatpush2.bf16.msra.mxu0 %v5139
    %5921 = vmatprep.subr.bf16.mxu0 %v5128
    %5922 = vmatpush2.bf16.msra.mxu0 %v5127
    %5923 = vmatprep.subr.bf16.mxu0 %v5116
    %5924 = vmatpush2.bf16.msra.mxu0 %v5115
    %5925 = vmatprep.subr.bf16.mxu0 %v5104
    %5926 = vmatpush2.bf16.msra.mxu0 %v5103
    %5927 = vmatprep.mubr.bf16.mxu0 %v3458
    %5928 = vmatmul.mubr.bf16.gmra.mxu0 %v3457
    %v5929 = vpop.f32.mrf.mxu0
    %v5930 = vadd.f32 0.0, %v5929
    %v5931 = vpop.f32.mrf.mxu0
    %v5932 = vadd.f32 0.0, %v5931
    %v5933 = vpop.f32.mrf.mxu0
    %v5934 = vadd.f32 0.0, %v5933
    %v5935 = vpop.f32.mrf.mxu0
    %v5936 = vadd.f32 0.0, %v5935
    %5937 = vmatprep.mubr.bf16.mxu0 %v3462
    %5938 = vmatmul.mubr.bf16.gmra.mxu0 %v3461
    %v5939 = vpop.f32.mrf.mxu0
    %v5940 = vadd.f32 0.0, %v5939
    %v5941 = vpop.f32.mrf.mxu0
    %v5942 = vadd.f32 0.0, %v5941
    %v5943 = vpop.f32.mrf.mxu0
    %v5944 = vadd.f32 0.0, %v5943
    %v5945 = vpop.f32.mrf.mxu0
    %v5946 = vadd.f32 0.0, %v5945
    %5947 = vmatprep.mubr.bf16.mxu0 %v3466
    %5948 = vmatmul.mubr.bf16.gmra.mxu0 %v3465
    %v5949 = vpop.f32.mrf.mxu0
    %v5950 = vadd.f32 0.0, %v5949
    %v5951 = vpop.f32.mrf.mxu0
    %v5952 = vadd.f32 0.0, %v5951
    %v5953 = vpop.f32.mrf.mxu0
    %v5954 = vpop.f32.mrf.mxu0
    %5955 = vdwg.mxu0
    %5956 = vmatprep.subr.bf16.mxu0 %v5284
    %5957 = vmatpush1.bf16.msra.mxu0 %v5283
    %5958 = vmatprep.subr.bf16.mxu0 %v5272
    %5959 = vmatpush1.bf16.msra.mxu0 %v5271
    %5960 = vmatprep.subr.bf16.mxu0 %v5260
    %5961 = vmatpush1.bf16.msra.mxu0 %v5259
    %5962 = vmatprep.subr.bf16.mxu0 %v5248
    %5963 = vmatpush1.bf16.msra.mxu0 %v5247
    %5964 = vmatprep.subr.bf16.mxu0 %v5236
    %5965 = vmatpush1.bf16.msra.mxu0 %v5235
    %5966 = vmatprep.subr.bf16.mxu0 %v5224
    %5967 = vmatpush1.bf16.msra.mxu0 %v5223
    %5968 = vmatprep.subr.bf16.mxu0 %v5212
    %5969 = vmatpush1.bf16.msra.mxu0 %v5211
    %5970 = vmatprep.subr.bf16.mxu0 %v5200
    %5971 = vmatpush1.bf16.msra.mxu0 %v5199
    %5972 = vmatprep.subr.bf16.mxu0 %v5380
    %5973 = vmatpush2.bf16.msra.mxu0 %v5379
    %5974 = vmatprep.subr.bf16.mxu0 %v5368
    %5975 = vmatpush2.bf16.msra.mxu0 %v5367
    %5976 = vmatprep.subr.bf16.mxu0 %v5356
    %5977 = vmatpush2.bf16.msra.mxu0 %v5355
    %5978 = vmatprep.subr.bf16.mxu0 %v5344
    %5979 = vmatpush2.bf16.msra.mxu0 %v5343
    %5980 = vmatprep.subr.bf16.mxu0 %v5332
    %5981 = vmatpush2.bf16.msra.mxu0 %v5331
    %5982 = vmatprep.subr.bf16.mxu0 %v5320
    %5983 = vmatpush2.bf16.msra.mxu0 %v5319
    %5984 = vmatprep.subr.bf16.mxu0 %v5308
    %5985 = vmatpush2.bf16.msra.mxu0 %v5307
    %5986 = vmatprep.subr.bf16.mxu0 %v5296
    %5987 = vmatpush2.bf16.msra.mxu0 %v5295
    %5988 = vmatprep.mubr.bf16.mxu0 %v3460
    %5989 = vmatmul.mubr.bf16.gmra.mxu0 %v3459
    %v5990 = vpop.f32.mrf.mxu0
    %v5991 = vadd.f32 %v5930, %v5990
    %v5992 = vpop.f32.mrf.mxu0
    %v5993 = vadd.f32 %v5932, %v5992
    %v5994 = vpop.f32.mrf.mxu0
    %v5995 = vadd.f32 %v5934, %v5994
    %v5996 = vpop.f32.mrf.mxu0
    %v5997 = vadd.f32 %v5936, %v5996
    %5998 = vmatprep.mubr.bf16.mxu0 %v3464
    %5999 = vmatmul.mubr.bf16.gmra.mxu0 %v3463
    %v6000 = vpop.f32.mrf.mxu0
    %v6001 = vadd.f32 %v5940, %v6000
    %v6002 = vpop.f32.mrf.mxu0
    %v6003 = vadd.f32 %v5942, %v6002
    %v6004 = vpop.f32.mrf.mxu0
    %v6005 = vadd.f32 %v5944, %v6004
    %v6006 = vpop.f32.mrf.mxu0
    %v6007 = vadd.f32 %v5946, %v6006
    %6008 = vmatprep.mubr.bf16.mxu0 %v3468
    %6009 = vmatmul.mubr.bf16.gmra.mxu0 %v3467
    %v6010 = vpop.f32.mrf.mxu0
    %v6011 = vadd.f32 %v5950, %v6010
    %v6012 = vpop.f32.mrf.mxu0
    %v6013 = vadd.f32 %v5952, %v6012
    %v6014 = vpop.f32.mrf.mxu0
    %v6015 = vpop.f32.mrf.mxu0
    %6016 = vdwg.mxu0
    %6017 = vmatprep.subr.bf16.mxu0 %v5094
    %6018 = vmatpush1.bf16.msra.mxu0 %v5093
    %6019 = vmatprep.subr.bf16.mxu0 %v5082
    %6020 = vmatpush1.bf16.msra.mxu0 %v5081
    %6021 = vmatprep.subr.bf16.mxu0 %v5070
    %6022 = vmatpush1.bf16.msra.mxu0 %v5069
    %6023 = vmatprep.subr.bf16.mxu0 %v5058
    %6024 = vmatpush1.bf16.msra.mxu0 %v5057
    %6025 = vmatprep.subr.bf16.mxu0 %v5046
    %6026 = vmatpush1.bf16.msra.mxu0 %v5045
    %6027 = vmatprep.subr.bf16.mxu0 %v5034
    %6028 = vmatpush1.bf16.msra.mxu0 %v5033
    %6029 = vmatprep.subr.bf16.mxu0 %v5022
    %6030 = vmatpush1.bf16.msra.mxu0 %v5021
    %6031 = vmatprep.subr.bf16.mxu0 %v5010
    %6032 = vmatpush1.bf16.msra.mxu0 %v5009
    %6033 = vmatprep.subr.bf16.mxu0 %v5190
    %6034 = vmatpush2.bf16.msra.mxu0 %v5189
    %6035 = vmatprep.subr.bf16.mxu0 %v5178
    %6036 = vmatpush2.bf16.msra.mxu0 %v5177
    %6037 = vmatprep.subr.bf16.mxu0 %v5166
    %6038 = vmatpush2.bf16.msra.mxu0 %v5165
    %6039 = vmatprep.subr.bf16.mxu0 %v5154
    %6040 = vmatpush2.bf16.msra.mxu0 %v5153
    %6041 = vmatprep.subr.bf16.mxu0 %v5142
    %6042 = vmatpush2.bf16.msra.mxu0 %v5141
    %6043 = vmatprep.subr.bf16.mxu0 %v5130
    %6044 = vmatpush2.bf16.msra.mxu0 %v5129
    %6045 = vmatprep.subr.bf16.mxu0 %v5118
    %6046 = vmatpush2.bf16.msra.mxu0 %v5117
    %6047 = vmatprep.subr.bf16.mxu0 %v5106
    %6048 = vmatpush2.bf16.msra.mxu0 %v5105
    %6049 = vmatprep.mubr.bf16.mxu0 %v3458
    %6050 = vmatmul.mubr.bf16.gmra.mxu0 %v3457
    %v6051 = vpop.f32.mrf.mxu0
    %v6052 = vadd.f32 0.0, %v6051
    %v6053 = vpop.f32.mrf.mxu0
    %v6054 = vadd.f32 0.0, %v6053
    %v6055 = vpop.f32.mrf.mxu0
    %v6056 = vadd.f32 0.0, %v6055
    %v6057 = vpop.f32.mrf.mxu0
    %v6058 = vadd.f32 0.0, %v6057
    %6059 = vmatprep.mubr.bf16.mxu0 %v3462
    %6060 = vmatmul.mubr.bf16.gmra.mxu0 %v3461
    %v6061 = vpop.f32.mrf.mxu0
    %v6062 = vadd.f32 0.0, %v6061
    %v6063 = vpop.f32.mrf.mxu0
    %v6064 = vadd.f32 0.0, %v6063
    %v6065 = vpop.f32.mrf.mxu0
    %v6066 = vadd.f32 0.0, %v6065
    %v6067 = vpop.f32.mrf.mxu0
    %v6068 = vadd.f32 0.0, %v6067
    %6069 = vmatprep.mubr.bf16.mxu0 %v3466
    %6070 = vmatmul.mubr.bf16.gmra.mxu0 %v3465
    %v6071 = vpop.f32.mrf.mxu0
    %v6072 = vadd.f32 0.0, %v6071
    %v6073 = vpop.f32.mrf.mxu0
    %v6074 = vadd.f32 0.0, %v6073
    %v6075 = vpop.f32.mrf.mxu0
    %v6076 = vpop.f32.mrf.mxu0
    %6077 = vdwg.mxu0
    %6078 = vmatprep.subr.bf16.mxu0 %v5286
    %6079 = vmatpush1.bf16.msra.mxu0 %v5285
    %6080 = vmatprep.subr.bf16.mxu0 %v5274
    %6081 = vmatpush1.bf16.msra.mxu0 %v5273
    %6082 = vmatprep.subr.bf16.mxu0 %v5262
    %6083 = vmatpush1.bf16.msra.mxu0 %v5261
    %6084 = vmatprep.subr.bf16.mxu0 %v5250
    %6085 = vmatpush1.bf16.msra.mxu0 %v5249
    %6086 = vmatprep.subr.bf16.mxu0 %v5238
    %6087 = vmatpush1.bf16.msra.mxu0 %v5237
    %6088 = vmatprep.subr.bf16.mxu0 %v5226
    %6089 = vmatpush1.bf16.msra.mxu0 %v5225
    %6090 = vmatprep.subr.bf16.mxu0 %v5214
    %6091 = vmatpush1.bf16.msra.mxu0 %v5213
    %6092 = vmatprep.subr.bf16.mxu0 %v5202
    %6093 = vmatpush1.bf16.msra.mxu0 %v5201
    %6094 = vmatprep.subr.bf16.mxu0 %v5382
    %6095 = vmatpush2.bf16.msra.mxu0 %v5381
    %6096 = vmatprep.subr.bf16.mxu0 %v5370
    %6097 = vmatpush2.bf16.msra.mxu0 %v5369
    %6098 = vmatprep.subr.bf16.mxu0 %v5358
    %6099 = vmatpush2.bf16.msra.mxu0 %v5357
    %6100 = vmatprep.subr.bf16.mxu0 %v5346
    %6101 = vmatpush2.bf16.msra.mxu0 %v5345
    %6102 = vmatprep.subr.bf16.mxu0 %v5334
    %6103 = vmatpush2.bf16.msra.mxu0 %v5333
    %6104 = vmatprep.subr.bf16.mxu0 %v5322
    %6105 = vmatpush2.bf16.msra.mxu0 %v5321
    %6106 = vmatprep.subr.bf16.mxu0 %v5310
    %6107 = vmatpush2.bf16.msra.mxu0 %v5309
    %6108 = vmatprep.subr.bf16.mxu0 %v5298
    %6109 = vmatpush2.bf16.msra.mxu0 %v5297
    %6110 = vmatprep.mubr.bf16.mxu0 %v3460
    %6111 = vmatmul.mubr.bf16.gmra.mxu0 %v3459
    %v6112 = vpop.f32.mrf.mxu0
    %v6113 = vadd.f32 %v6052, %v6112
    %v6114 = vpop.f32.mrf.mxu0
    %v6115 = vadd.f32 %v6054, %v6114
    %v6116 = vpop.f32.mrf.mxu0
    %v6117 = vadd.f32 %v6056, %v6116
    %v6118 = vpop.f32.mrf.mxu0
    %v6119 = vadd.f32 %v6058, %v6118
    %6120 = vmatprep.mubr.bf16.mxu0 %v3464
    %6121 = vmatmul.mubr.bf16.gmra.mxu0 %v3463
    %v6122 = vpop.f32.mrf.mxu0
    %v6123 = vadd.f32 %v6062, %v6122
    %v6124 = vpop.f32.mrf.mxu0
    %v6125 = vadd.f32 %v6064, %v6124
    %v6126 = vpop.f32.mrf.mxu0
    %v6127 = vadd.f32 %v6066, %v6126
    %v6128 = vpop.f32.mrf.mxu0
    %v6129 = vadd.f32 %v6068, %v6128
    %6130 = vmatprep.mubr.bf16.mxu0 %v3468
    %6131 = vmatmul.mubr.bf16.gmra.mxu0 %v3467
    %v6132 = vpop.f32.mrf.mxu0
    %v6133 = vadd.f32 %v6072, %v6132
    %v6134 = vpop.f32.mrf.mxu0
    %v6135 = vadd.f32 %v6074, %v6134
    %v6136 = vpop.f32.mrf.mxu0
    %v6137 = vpop.f32.mrf.mxu0
    %6138 = vdwg.mxu0
    %6139 = vmatprep.subr.bf16.mxu0 %v5096
    %6140 = vmatpush1.bf16.msra.mxu0 %v5095
    %6141 = vmatprep.subr.bf16.mxu0 %v5084
    %6142 = vmatpush1.bf16.msra.mxu0 %v5083
    %6143 = vmatprep.subr.bf16.mxu0 %v5072
    %6144 = vmatpush1.bf16.msra.mxu0 %v5071
    %6145 = vmatprep.subr.bf16.mxu0 %v5060
    %6146 = vmatpush1.bf16.msra.mxu0 %v5059
    %6147 = vmatprep.subr.bf16.mxu0 %v5048
    %6148 = vmatpush1.bf16.msra.mxu0 %v5047
    %6149 = vmatprep.subr.bf16.mxu0 %v5036
    %6150 = vmatpush1.bf16.msra.mxu0 %v5035
    %6151 = vmatprep.subr.bf16.mxu0 %v5024
    %6152 = vmatpush1.bf16.msra.mxu0 %v5023
    %6153 = vmatprep.subr.bf16.mxu0 %v5012
    %6154 = vmatpush1.bf16.msra.mxu0 %v5011
    %6155 = vmatprep.subr.bf16.mxu0 %v5192
    %6156 = vmatpush2.bf16.msra.mxu0 %v5191
    %6157 = vmatprep.subr.bf16.mxu0 %v5180
    %6158 = vmatpush2.bf16.msra.mxu0 %v5179
    %6159 = vmatprep.subr.bf16.mxu0 %v5168
    %6160 = vmatpush2.bf16.msra.mxu0 %v5167
    %6161 = vmatprep.subr.bf16.mxu0 %v5156
    %6162 = vmatpush2.bf16.msra.mxu0 %v5155
    %6163 = vmatprep.subr.bf16.mxu0 %v5144
    %6164 = vmatpush2.bf16.msra.mxu0 %v5143
    %6165 = vmatprep.subr.bf16.mxu0 %v5132
    %6166 = vmatpush2.bf16.msra.mxu0 %v5131
    %6167 = vmatprep.subr.bf16.mxu0 %v5120
    %6168 = vmatpush2.bf16.msra.mxu0 %v5119
    %6169 = vmatprep.subr.bf16.mxu0 %v5108
    %6170 = vmatpush2.bf16.msra.mxu0 %v5107
    %6171 = vmatprep.mubr.bf16.mxu0 %v3458
    %6172 = vmatmul.mubr.bf16.gmra.mxu0 %v3457
    %v6173 = vpop.f32.mrf.mxu0
    %v6174 = vadd.f32 0.0, %v6173
    %v6175 = vpop.f32.mrf.mxu0
    %v6176 = vadd.f32 0.0, %v6175
    %v6177 = vpop.f32.mrf.mxu0
    %v6178 = vadd.f32 0.0, %v6177
    %v6179 = vpop.f32.mrf.mxu0
    %v6180 = vadd.f32 0.0, %v6179
    %6181 = vmatprep.mubr.bf16.mxu0 %v3462
    %6182 = vmatmul.mubr.bf16.gmra.mxu0 %v3461
    %v6183 = vpop.f32.mrf.mxu0
    %v6184 = vadd.f32 0.0, %v6183
    %v6185 = vpop.f32.mrf.mxu0
    %v6186 = vadd.f32 0.0, %v6185
    %v6187 = vpop.f32.mrf.mxu0
    %v6188 = vadd.f32 0.0, %v6187
    %v6189 = vpop.f32.mrf.mxu0
    %v6190 = vadd.f32 0.0, %v6189
    %6191 = vmatprep.mubr.bf16.mxu0 %v3466
    %6192 = vmatmul.mubr.bf16.gmra.mxu0 %v3465
    %v6193 = vpop.f32.mrf.mxu0
    %v6194 = vadd.f32 0.0, %v6193
    %v6195 = vpop.f32.mrf.mxu0
    %v6196 = vadd.f32 0.0, %v6195
    %v6197 = vpop.f32.mrf.mxu0
    %v6198 = vpop.f32.mrf.mxu0
    %6199 = vdwg.mxu0
    %6200 = vmatprep.subr.bf16.mxu0 %v5288
    %6201 = vmatpush1.bf16.msra.mxu0 %v5287
    %6202 = vmatprep.subr.bf16.mxu0 %v5276
    %6203 = vmatpush1.bf16.msra.mxu0 %v5275
    %6204 = vmatprep.subr.bf16.mxu0 %v5264
    %6205 = vmatpush1.bf16.msra.mxu0 %v5263
    %6206 = vmatprep.subr.bf16.mxu0 %v5252
    %6207 = vmatpush1.bf16.msra.mxu0 %v5251
    %6208 = vmatprep.subr.bf16.mxu0 %v5240
    %6209 = vmatpush1.bf16.msra.mxu0 %v5239
    %6210 = vmatprep.subr.bf16.mxu0 %v5228
    %6211 = vmatpush1.bf16.msra.mxu0 %v5227
    %6212 = vmatprep.subr.bf16.mxu0 %v5216
    %6213 = vmatpush1.bf16.msra.mxu0 %v5215
    %6214 = vmatprep.subr.bf16.mxu0 %v5204
    %6215 = vmatpush1.bf16.msra.mxu0 %v5203
    %6216 = vmatprep.subr.bf16.mxu0 %v5384
    %6217 = vmatpush2.bf16.msra.mxu0 %v5383
    %6218 = vmatprep.subr.bf16.mxu0 %v5372
    %6219 = vmatpush2.bf16.msra.mxu0 %v5371
    %6220 = vmatprep.subr.bf16.mxu0 %v5360
    %6221 = vmatpush2.bf16.msra.mxu0 %v5359
    %6222 = vmatprep.subr.bf16.mxu0 %v5348
    %6223 = vmatpush2.bf16.msra.mxu0 %v5347
    %6224 = vmatprep.subr.bf16.mxu0 %v5336
    %6225 = vmatpush2.bf16.msra.mxu0 %v5335
    %6226 = vmatprep.subr.bf16.mxu0 %v5324
    %6227 = vmatpush2.bf16.msra.mxu0 %v5323
    %6228 = vmatprep.subr.bf16.mxu0 %v5312
    %6229 = vmatpush2.bf16.msra.mxu0 %v5311
    %6230 = vmatprep.subr.bf16.mxu0 %v5300
    %6231 = vmatpush2.bf16.msra.mxu0 %v5299
    %6232 = vmatprep.mubr.bf16.mxu0 %v3460
    %6233 = vmatmul.mubr.bf16.gmra.mxu0 %v3459
    %v6234 = vpop.f32.mrf.mxu0
    %v6235 = vadd.f32 %v6174, %v6234
    %v6236 = vpop.f32.mrf.mxu0
    %v6237 = vadd.f32 %v6176, %v6236
    %v6238 = vpop.f32.mrf.mxu0
    %v6239 = vadd.f32 %v6178, %v6238
    %v6240 = vpop.f32.mrf.mxu0
    %v6241 = vadd.f32 %v6180, %v6240
    %6242 = vmatprep.mubr.bf16.mxu0 %v3464
    %6243 = vmatmul.mubr.bf16.gmra.mxu0 %v3463
    %v6244 = vpop.f32.mrf.mxu0
    %v6245 = vadd.f32 %v6184, %v6244
    %v6246 = vpop.f32.mrf.mxu0
    %v6247 = vadd.f32 %v6186, %v6246
    %v6248 = vpop.f32.mrf.mxu0
    %v6249 = vadd.f32 %v6188, %v6248
    %v6250 = vpop.f32.mrf.mxu0
    %v6251 = vadd.f32 %v6190, %v6250
    %6252 = vmatprep.mubr.bf16.mxu0 %v3468
    %6253 = vmatmul.mubr.bf16.gmra.mxu0 %v3467
    %v6254 = vpop.f32.mrf.mxu0
    %v6255 = vadd.f32 %v6194, %v6254
    %v6256 = vpop.f32.mrf.mxu0
    %v6257 = vadd.f32 %v6196, %v6256
    %v6258 = vpop.f32.mrf.mxu0
    %v6259 = vpop.f32.mrf.mxu0
    %6260 = vdwg.mxu0
    %6261 = vmatprep.subr.bf16.mxu0 %v5098
    %6262 = vmatpush1.bf16.msra.mxu0 %v5097
    %6263 = vmatprep.subr.bf16.mxu0 %v5086
    %6264 = vmatpush1.bf16.msra.mxu0 %v5085
    %6265 = vmatprep.subr.bf16.mxu0 %v5074
    %6266 = vmatpush1.bf16.msra.mxu0 %v5073
    %6267 = vmatprep.subr.bf16.mxu0 %v5062
    %6268 = vmatpush1.bf16.msra.mxu0 %v5061
    %6269 = vmatprep.subr.bf16.mxu0 %v5050
    %6270 = vmatpush1.bf16.msra.mxu0 %v5049
    %6271 = vmatprep.subr.bf16.mxu0 %v5038
    %6272 = vmatpush1.bf16.msra.mxu0 %v5037
    %6273 = vmatprep.subr.bf16.mxu0 %v5026
    %6274 = vmatpush1.bf16.msra.mxu0 %v5025
    %6275 = vmatprep.subr.bf16.mxu0 %v5014
    %6276 = vmatpush1.bf16.msra.mxu0 %v5013
    %6277 = vmatprep.subr.bf16.mxu0 %v5194
    %6278 = vmatpush2.bf16.msra.mxu0 %v5193
    %6279 = vmatprep.subr.bf16.mxu0 %v5182
    %6280 = vmatpush2.bf16.msra.mxu0 %v5181
    %6281 = vmatprep.subr.bf16.mxu0 %v5170
    %6282 = vmatpush2.bf16.msra.mxu0 %v5169
    %6283 = vmatprep.subr.bf16.mxu0 %v5158
    %6284 = vmatpush2.bf16.msra.mxu0 %v5157
    %6285 = vmatprep.subr.bf16.mxu0 %v5146
    %6286 = vmatpush2.bf16.msra.mxu0 %v5145
    %6287 = vmatprep.subr.bf16.mxu0 %v5134
    %6288 = vmatpush2.bf16.msra.mxu0 %v5133
    %6289 = vmatprep.subr.bf16.mxu0 %v5122
    %6290 = vmatpush2.bf16.msra.mxu0 %v5121
    %6291 = vmatprep.subr.bf16.mxu0 %v5110
    %6292 = vmatpush2.bf16.msra.mxu0 %v5109
    %6293 = vmatprep.mubr.bf16.mxu0 %v3458
    %6294 = vmatmul.mubr.bf16.gmra.mxu0 %v3457
    %v6295 = vpop.f32.mrf.mxu0
    %v6296 = vadd.f32 0.0, %v6295
    %v6297 = vpop.f32.mrf.mxu0
    %v6298 = vadd.f32 0.0, %v6297
    %v6299 = vpop.f32.mrf.mxu0
    %v6300 = vadd.f32 0.0, %v6299
    %v6301 = vpop.f32.mrf.mxu0
    %v6302 = vadd.f32 0.0, %v6301
    %6303 = vmatprep.mubr.bf16.mxu0 %v3462
    %6304 = vmatmul.mubr.bf16.gmra.mxu0 %v3461
    %v6305 = vpop.f32.mrf.mxu0
    %v6306 = vadd.f32 0.0, %v6305
    %v6307 = vpop.f32.mrf.mxu0
    %v6308 = vadd.f32 0.0, %v6307
    %v6309 = vpop.f32.mrf.mxu0
    %v6310 = vadd.f32 0.0, %v6309
    %v6311 = vpop.f32.mrf.mxu0
    %v6312 = vadd.f32 0.0, %v6311
    %6313 = vmatprep.mubr.bf16.mxu0 %v3466
    %6314 = vmatmul.mubr.bf16.gmra.mxu0 %v3465
    %v6315 = vpop.f32.mrf.mxu0
    %v6316 = vadd.f32 0.0, %v6315
    %v6317 = vpop.f32.mrf.mxu0
    %v6318 = vadd.f32 0.0, %v6317
    %v6319 = vpop.f32.mrf.mxu0
    %v6320 = vpop.f32.mrf.mxu0
    %6321 = vdwg.mxu0
    %6322 = vmatprep.subr.bf16.mxu0 %v5290
    %6323 = vmatpush1.bf16.msra.mxu0 %v5289
    %6324 = vmatprep.subr.bf16.mxu0 %v5278
    %6325 = vmatpush1.bf16.msra.mxu0 %v5277
    %6326 = vmatprep.subr.bf16.mxu0 %v5266
    %6327 = vmatpush1.bf16.msra.mxu0 %v5265
    %6328 = vmatprep.subr.bf16.mxu0 %v5254
    %6329 = vmatpush1.bf16.msra.mxu0 %v5253
    %6330 = vmatprep.subr.bf16.mxu0 %v5242
    %6331 = vmatpush1.bf16.msra.mxu0 %v5241
    %6332 = vmatprep.subr.bf16.mxu0 %v5230
    %6333 = vmatpush1.bf16.msra.mxu0 %v5229
    %6334 = vmatprep.subr.bf16.mxu0 %v5218
    %6335 = vmatpush1.bf16.msra.mxu0 %v5217
    %6336 = vmatprep.subr.bf16.mxu0 %v5206
    %6337 = vmatpush1.bf16.msra.mxu0 %v5205
    %6338 = vmatprep.subr.bf16.mxu0 %v5386
    %6339 = vmatpush2.bf16.msra.mxu0 %v5385
    %6340 = vmatprep.subr.bf16.mxu0 %v5374
    %6341 = vmatpush2.bf16.msra.mxu0 %v5373
    %6342 = vmatprep.subr.bf16.mxu0 %v5362
    %6343 = vmatpush2.bf16.msra.mxu0 %v5361
    %6344 = vmatprep.subr.bf16.mxu0 %v5350
    %6345 = vmatpush2.bf16.msra.mxu0 %v5349
    %6346 = vmatprep.subr.bf16.mxu0 %v5338
    %6347 = vmatpush2.bf16.msra.mxu0 %v5337
    %6348 = vmatprep.subr.bf16.mxu0 %v5326
    %6349 = vmatpush2.bf16.msra.mxu0 %v5325
    %6350 = vmatprep.subr.bf16.mxu0 %v5314
    %6351 = vmatpush2.bf16.msra.mxu0 %v5313
    %6352 = vmatprep.subr.bf16.mxu0 %v5302
    %6353 = vmatpush2.bf16.msra.mxu0 %v5301
    %6354 = vmatprep.mubr.bf16.mxu0 %v3460
    %6355 = vmatmul.mubr.bf16.gmra.mxu0 %v3459
    %v6356 = vpop.f32.mrf.mxu0
    %v6357 = vadd.f32 %v6296, %v6356
    %v6358 = vpop.f32.mrf.mxu0
    %v6359 = vadd.f32 %v6298, %v6358
    %v6360 = vpop.f32.mrf.mxu0
    %v6361 = vadd.f32 %v6300, %v6360
    %v6362 = vpop.f32.mrf.mxu0
    %v6363 = vadd.f32 %v6302, %v6362
    %6364 = vmatprep.mubr.bf16.mxu0 %v3464
    %6365 = vmatmul.mubr.bf16.gmra.mxu0 %v3463
    %v6366 = vpop.f32.mrf.mxu0
    %v6367 = vadd.f32 %v6306, %v6366
    %v6368 = vpop.f32.mrf.mxu0
    %v6369 = vadd.f32 %v6308, %v6368
    %v6370 = vpop.f32.mrf.mxu0
    %v6371 = vadd.f32 %v6310, %v6370
    %v6372 = vpop.f32.mrf.mxu0
    %v6373 = vadd.f32 %v6312, %v6372
    %6374 = vmatprep.mubr.bf16.mxu0 %v3468
    %6375 = vmatmul.mubr.bf16.gmra.mxu0 %v3467
    %v6376 = vpop.f32.mrf.mxu0
    %v6377 = vadd.f32 %v6316, %v6376
    %v6378 = vpop.f32.mrf.mxu0
    %v6379 = vadd.f32 %v6318, %v6378
    %v6380 = vpop.f32.mrf.mxu0
    %v6381 = vpop.f32.mrf.mxu0
    %6382 = vdwg.mxu0
    %6383 = vmatprep.subr.bf16.mxu0 %v5100
    %6384 = vmatpush1.bf16.msra.mxu0 %v5099
    %6385 = vmatprep.subr.bf16.mxu0 %v5088
    %6386 = vmatpush1.bf16.msra.mxu0 %v5087
    %6387 = vmatprep.subr.bf16.mxu0 %v5076
    %6388 = vmatpush1.bf16.msra.mxu0 %v5075
    %6389 = vmatprep.subr.bf16.mxu0 %v5064
    %6390 = vmatpush1.bf16.msra.mxu0 %v5063
    %6391 = vmatprep.subr.bf16.mxu0 %v5052
    %6392 = vmatpush1.bf16.msra.mxu0 %v5051
    %6393 = vmatprep.subr.bf16.mxu0 %v5040
    %6394 = vmatpush1.bf16.msra.mxu0 %v5039
    %6395 = vmatprep.subr.bf16.mxu0 %v5028
    %6396 = vmatpush1.bf16.msra.mxu0 %v5027
    %6397 = vmatprep.subr.bf16.mxu0 %v5016
    %6398 = vmatpush1.bf16.msra.mxu0 %v5015
    %6399 = vmatprep.subr.bf16.mxu0 %v5196
    %6400 = vmatpush2.bf16.msra.mxu0 %v5195
    %6401 = vmatprep.subr.bf16.mxu0 %v5184
    %6402 = vmatpush2.bf16.msra.mxu0 %v5183
    %6403 = vmatprep.subr.bf16.mxu0 %v5172
    %6404 = vmatpush2.bf16.msra.mxu0 %v5171
    %6405 = vmatprep.subr.bf16.mxu0 %v5160
    %6406 = vmatpush2.bf16.msra.mxu0 %v5159
    %6407 = vmatprep.subr.bf16.mxu0 %v5148
    %6408 = vmatpush2.bf16.msra.mxu0 %v5147
    %6409 = vmatprep.subr.bf16.mxu0 %v5136
    %6410 = vmatpush2.bf16.msra.mxu0 %v5135
    %6411 = vmatprep.subr.bf16.mxu0 %v5124
    %6412 = vmatpush2.bf16.msra.mxu0 %v5123
    %6413 = vmatprep.subr.bf16.mxu0 %v5112
    %6414 = vmatpush2.bf16.msra.mxu0 %v5111
    %6415 = vmatprep.mubr.bf16.mxu0 %v3458
    %6416 = vmatmul.mubr.bf16.gmra.mxu0 %v3457
    %v6417 = vpop.f32.mrf.mxu0
    %v6418 = vadd.f32 0.0, %v6417
    %v6419 = vpop.f32.mrf.mxu0
    %v6420 = vadd.f32 0.0, %v6419
    %v6421 = vpop.f32.mrf.mxu0
    %v6422 = vadd.f32 0.0, %v6421
    %v6423 = vpop.f32.mrf.mxu0
    %v6424 = vadd.f32 0.0, %v6423
    %6425 = vmatprep.mubr.bf16.mxu0 %v3462
    %6426 = vmatmul.mubr.bf16.gmra.mxu0 %v3461
    %v6427 = vpop.f32.mrf.mxu0
    %v6428 = vadd.f32 0.0, %v6427
    %v6429 = vpop.f32.mrf.mxu0
    %v6430 = vadd.f32 0.0, %v6429
    %v6431 = vpop.f32.mrf.mxu0
    %v6432 = vadd.f32 0.0, %v6431
    %v6433 = vpop.f32.mrf.mxu0
    %v6434 = vadd.f32 0.0, %v6433
    %6435 = vmatprep.mubr.bf16.mxu0 %v3466
    %6436 = vmatmul.mubr.bf16.gmra.mxu0 %v3465
    %v6437 = vpop.f32.mrf.mxu0
    %v6438 = vadd.f32 0.0, %v6437
    %v6439 = vpop.f32.mrf.mxu0
    %v6440 = vadd.f32 0.0, %v6439
    %v6441 = vpop.f32.mrf.mxu0
    %v6442 = vpop.f32.mrf.mxu0
    %6443 = vdwg.mxu0
    %6444 = vmatprep.subr.bf16.mxu0 %v5292
    %6445 = vmatpush1.bf16.msra.mxu0 %v5291
    %6446 = vmatprep.subr.bf16.mxu0 %v5280
    %6447 = vmatpush1.bf16.msra.mxu0 %v5279
    %6448 = vmatprep.subr.bf16.mxu0 %v5268
    %6449 = vmatpush1.bf16.msra.mxu0 %v5267
    %6450 = vmatprep.subr.bf16.mxu0 %v5256
    %6451 = vmatpush1.bf16.msra.mxu0 %v5255
    %6452 = vmatprep.subr.bf16.mxu0 %v5244
    %6453 = vmatpush1.bf16.msra.mxu0 %v5243
    %6454 = vmatprep.subr.bf16.mxu0 %v5232
    %6455 = vmatpush1.bf16.msra.mxu0 %v5231
    %6456 = vmatprep.subr.bf16.mxu0 %v5220
    %6457 = vmatpush1.bf16.msra.mxu0 %v5219
    %6458 = vmatprep.subr.bf16.mxu0 %v5208
    %6459 = vmatpush1.bf16.msra.mxu0 %v5207
    %6460 = vmatprep.subr.bf16.mxu0 %v5388
    %6461 = vmatpush2.bf16.msra.mxu0 %v5387
    %6462 = vmatprep.subr.bf16.mxu0 %v5376
    %6463 = vmatpush2.bf16.msra.mxu0 %v5375
    %6464 = vmatprep.subr.bf16.mxu0 %v5364
    %6465 = vmatpush2.bf16.msra.mxu0 %v5363
    %6466 = vmatprep.subr.bf16.mxu0 %v5352
    %6467 = vmatpush2.bf16.msra.mxu0 %v5351
    %6468 = vmatprep.subr.bf16.mxu0 %v5340
    %6469 = vmatpush2.bf16.msra.mxu0 %v5339
    %6470 = vmatprep.subr.bf16.mxu0 %v5328
    %6471 = vmatpush2.bf16.msra.mxu0 %v5327
    %6472 = vmatprep.subr.bf16.mxu0 %v5316
    %6473 = vmatpush2.bf16.msra.mxu0 %v5315
    %6474 = vmatprep.subr.bf16.mxu0 %v5304
    %6475 = vmatpush2.bf16.msra.mxu0 %v5303
    %6476 = vmatprep.mubr.bf16.mxu0 %v3460
    %6477 = vmatmul.mubr.bf16.gmra.mxu0 %v3459
    %v6478 = vpop.f32.mrf.mxu0
    %v6479 = vadd.f32 %v6418, %v6478
    %v6480 = vpop.f32.mrf.mxu0
    %v6481 = vadd.f32 %v6420, %v6480
    %v6482 = vpop.f32.mrf.mxu0
    %v6483 = vadd.f32 %v6422, %v6482
    %v6484 = vpop.f32.mrf.mxu0
    %v6485 = vadd.f32 %v6424, %v6484
    %6486 = vmatprep.mubr.bf16.mxu0 %v3464
    %6487 = vmatmul.mubr.bf16.gmra.mxu0 %v3463
    %v6488 = vpop.f32.mrf.mxu0
    %v6489 = vadd.f32 %v6428, %v6488
    %v6490 = vpop.f32.mrf.mxu0
    %v6491 = vadd.f32 %v6430, %v6490
    %v6492 = vpop.f32.mrf.mxu0
    %v6493 = vadd.f32 %v6432, %v6492
    %v6494 = vpop.f32.mrf.mxu0
    %v6495 = vadd.f32 %v6434, %v6494
    %6496 = vmatprep.mubr.bf16.mxu0 %v3468
    %6497 = vmatmul.mubr.bf16.gmra.mxu0 %v3467
    %v6498 = vpop.f32.mrf.mxu0
    %v6499 = vadd.f32 %v6438, %v6498
    %v6500 = vpop.f32.mrf.mxu0
    %v6501 = vadd.f32 %v6440, %v6500
    %v6502 = vpop.f32.mrf.mxu0
    %v6503 = vpop.f32.mrf.mxu0
    %6504 = vdwg.mxu0
    %v6525 = vrot.slane %v5869, 7
    %v6526 = vrot.slane %v5871, 7
    %v6527 = vrot.slane %v5991, 7
    %v6528 = vrot.slane %v5993, 7
    %v6529 = vrot.slane %v5873, 7
    %v6530 = vsel %vm3167, %v6525, %v6529
    %v6531 = vrot.slane %v5875, 7
    %v6532 = vsel %vm3167, %v6526, %v6531
    %v6533 = vrot.slane %v5995, 7
    %v6534 = vsel %vm3167, %v6527, %v6533
    %v6535 = vrot.slane %v5997, 7
    %v6536 = vsel %vm3167, %v6528, %v6535
    %v6537 = vrot.slane %v5879, 7
    %v6538 = vsel %vm3167, %v6529, %v6537
    %v6539 = vrot.slane %v5881, 7
    %v6540 = vsel %vm3167, %v6531, %v6539
    %v6541 = vrot.slane %v6001, 7
    %v6542 = vsel %vm3167, %v6533, %v6541
    %v6543 = vrot.slane %v6003, 7
    %v6544 = vsel %vm3167, %v6535, %v6543
    %v6545 = vrot.slane %v5883, 7
    %v6546 = vsel %vm3167, %v6537, %v6545
    %v6547 = vrot.slane %v5885, 7
    %v6548 = vsel %vm3167, %v6539, %v6547
    %v6549 = vrot.slane %v6005, 7
    %v6550 = vsel %vm3167, %v6541, %v6549
    %v6551 = vrot.slane %v6007, 7
    %v6552 = vsel %vm3167, %v6543, %v6551
    %v6553 = vrot.slane %v5889, 7
    %v6554 = vsel %vm3167, %v6545, %v6553
    %v6555 = vrot.slane %v5891, 7
    %v6556 = vsel %vm3167, %v6547, %v6555
    %v6557 = vrot.slane %v6011, 7
    %v6558 = vsel %vm3167, %v6549, %v6557
    %v6559 = vrot.slane %v6013, 7
    %v6560 = vsel %vm3167, %v6551, %v6559
    %v6581 = vsel %vm3167, 0.0, %v6525
    %v6582 = vsel %vm3167, 0.0, %v6526
    %v6583 = vsel %vm3167, 0.0, %v6527
    %v6584 = vsel %vm3167, 0.0, %v6528
    %v6585 = vadd.f32 %v6113, %v6581
    %v6586 = vadd.f32 %v6115, %v6582
    %v6587 = vadd.f32 %v6235, %v6583
    %v6588 = vadd.f32 %v6237, %v6584
    %v6589 = vadd.f32 %v6117, %v6530
    %v6590 = vadd.f32 %v6119, %v6532
    %v6591 = vadd.f32 %v6239, %v6534
    %v6592 = vadd.f32 %v6241, %v6536
    %v6593 = vadd.f32 %v6123, %v6538
    %v6594 = vadd.f32 %v6125, %v6540
    %v6595 = vadd.f32 %v6245, %v6542
    %v6596 = vadd.f32 %v6247, %v6544
    %v6597 = vadd.f32 %v6127, %v6546
    %v6598 = vadd.f32 %v6129, %v6548
    %v6599 = vadd.f32 %v6249, %v6550
    %v6600 = vadd.f32 %v6251, %v6552
    %v6601 = vadd.f32 %v6133, %v6554
    %v6602 = vadd.f32 %v6135, %v6556
    %v6603 = vadd.f32 %v6255, %v6558
    %v6604 = vadd.f32 %v6257, %v6560
    %v6625 = vrot.slane %v6357, 1
    %v6626 = vrot.slane %v6361, 1
    %v6627 = vsel %vm3268, %v6625, %v6626
    %v6628 = vrot.slane %v6359, 1
    %v6629 = vrot.slane %v6363, 1
    %v6630 = vsel %vm3268, %v6628, %v6629
    %v6631 = vrot.slane %v6479, 1
    %v6632 = vrot.slane %v6483, 1
    %v6633 = vsel %vm3268, %v6631, %v6632
    %v6634 = vrot.slane %v6481, 1
    %v6635 = vrot.slane %v6485, 1
    %v6636 = vsel %vm3268, %v6634, %v6635
    %v6637 = vrot.slane %v6367, 1
    %v6638 = vsel %vm3268, %v6626, %v6637
    %v6639 = vrot.slane %v6369, 1
    %v6640 = vsel %vm3268, %v6629, %v6639
    %v6641 = vrot.slane %v6489, 1
    %v6642 = vsel %vm3268, %v6632, %v6641
    %v6643 = vrot.slane %v6491, 1
    %v6644 = vsel %vm3268, %v6635, %v6643
    %v6645 = vrot.slane %v6371, 1
    %v6646 = vsel %vm3268, %v6637, %v6645
    %v6647 = vrot.slane %v6373, 1
    %v6648 = vsel %vm3268, %v6639, %v6647
    %v6649 = vrot.slane %v6493, 1
    %v6650 = vsel %vm3268, %v6641, %v6649
    %v6651 = vrot.slane %v6495, 1
    %v6652 = vsel %vm3268, %v6643, %v6651
    %v6653 = vrot.slane %v6377, 1
    %v6654 = vsel %vm3268, %v6645, %v6653
    %v6655 = vrot.slane %v6379, 1
    %v6656 = vsel %vm3268, %v6647, %v6655
    %v6657 = vrot.slane %v6499, 1
    %v6658 = vsel %vm3268, %v6649, %v6657
    %v6659 = vrot.slane %v6501, 1
    %v6660 = vsel %vm3268, %v6651, %v6659
    %v6681 = vsel %vm3325, %v6653, 0.0
    %v6682 = vsel %vm3325, %v6655, 0.0
    %v6683 = vsel %vm3325, %v6657, 0.0
    %v6684 = vsel %vm3325, %v6659, 0.0
    %v6685 = vadd.f32 %v6585, %v6627
    %v6686 = vadd.f32 %v6586, %v6630
    %v6687 = vadd.f32 %v6587, %v6633
    %v6688 = vadd.f32 %v6588, %v6636
    %v6689 = vadd.f32 %v6589, %v6638
    %v6690 = vadd.f32 %v6590, %v6640
    %v6691 = vadd.f32 %v6591, %v6642
    %v6692 = vadd.f32 %v6592, %v6644
    %v6693 = vadd.f32 %v6593, %v6646
    %v6694 = vadd.f32 %v6594, %v6648
    %v6695 = vadd.f32 %v6595, %v6650
    %v6696 = vadd.f32 %v6596, %v6652
    %v6697 = vadd.f32 %v6597, %v6654
    %v6698 = vadd.f32 %v6598, %v6656
    %v6699 = vadd.f32 %v6599, %v6658
    %v6700 = vadd.f32 %v6600, %v6660
    %v6701 = vadd.f32 %v6601, %v6681
    %v6702 = vadd.f32 %v6602, %v6682
    %v6703 = vadd.f32 %v6603, %v6683
    %v6704 = vadd.f32 %v6604, %v6684
    %v6705 = vld [vmem:[#allocation7] sm:$0xf]
    %v6707 = vlaneseq
    %v6708 = vshrl.u32 %v6707, 7
    %v6709 = vsub.s32 0, %v6708
    %v6710 = vrot.slane %v6705, %v6709
    %v6711 = vlaneseq
    %v6712 = vshrl.u32 %v6711, 7
    %v6713 = vsub.s32 1, %v6712
    %v6714 = vrot.slane %v6705, %v6713
    %v6715 = vlaneseq
    %v6716 = vshrl.u32 %v6715, 7
    %v6717 = vsub.s32 2, %v6716
    %v6718 = vrot.slane %v6705, %v6717
    %v6719 = vlaneseq
    %v6720 = vshrl.u32 %v6719, 7
    %v6721 = vsub.s32 3, %v6720
    %v6722 = vrot.slane %v6705, %v6721
    %v6727 = vadd.f32 %v6685, %v6710
    %v6728 = vadd.f32 %v6686, %v6714
    %v6729 = vadd.f32 %v6687, %v6718
    %v6730 = vadd.f32 %v6688, %v6722
    %v6731 = vadd.f32 %v6689, %v6710
    %v6732 = vadd.f32 %v6690, %v6714
    %v6733 = vadd.f32 %v6691, %v6718
    %v6734 = vadd.f32 %v6692, %v6722
    %v6735 = vadd.f32 %v6693, %v6710
    %v6736 = vadd.f32 %v6694, %v6714
    %v6737 = vadd.f32 %v6695, %v6718
    %v6738 = vadd.f32 %v6696, %v6722
    %v6739 = vadd.f32 %v6697, %v6710
    %v6740 = vadd.f32 %v6698, %v6714
    %v6741 = vadd.f32 %v6699, %v6718
    %v6742 = vadd.f32 %v6700, %v6722
    %v6743 = vadd.f32 %v6701, %v6710
    %v6744 = vadd.f32 %v6702, %v6714
    %v6745 = vadd.f32 %v6703, %v6718
    %v6746 = vadd.f32 %v6704, %v6722
    %v6747 = vmax.f32 %v6727, 0.0
    %v6748 = vmax.f32 %v6728, 0.0
    %v6749 = vmax.f32 %v6729, 0.0
    %v6750 = vmax.f32 %v6730, 0.0
    %v6751 = vmax.f32 %v6731, 0.0
    %v6752 = vmax.f32 %v6732, 0.0
    %v6753 = vmax.f32 %v6733, 0.0
    %v6754 = vmax.f32 %v6734, 0.0
    %v6755 = vmax.f32 %v6735, 0.0
    %v6756 = vmax.f32 %v6736, 0.0
    %v6757 = vmax.f32 %v6737, 0.0
    %v6758 = vmax.f32 %v6738, 0.0
    %v6759 = vmax.f32 %v6739, 0.0
    %v6760 = vmax.f32 %v6740, 0.0
    %v6761 = vmax.f32 %v6741, 0.0
    %v6762 = vmax.f32 %v6742, 0.0
    %v6763 = vmax.f32 %v6743, 0.0
    %v6764 = vmax.f32 %v6744, 0.0
    %v6765 = vmax.f32 %v6745, 0.0
    %v6766 = vmax.f32 %v6746, 0.0
    %v6767 = vmul.f32 %v3415, %v6747
    %v6768 = vmul.f32 %v3415, %v6748
    %v6769 = vmul.f32 %v3415, %v6749
    %v6770 = vmul.f32 %v3415, %v6750
    %v6771 = vmul.f32 %v3420, %v6751
    %v6772 = vmul.f32 %v3420, %v6752
    %v6773 = vmul.f32 %v3420, %v6753
    %v6774 = vmul.f32 %v3420, %v6754
    %v6775 = vmul.f32 %v3425, %v6755
    %v6776 = vmul.f32 %v3425, %v6756
    %v6777 = vmul.f32 %v3425, %v6757
    %v6778 = vmul.f32 %v3425, %v6758
    %v6779 = vmul.f32 %v3430, %v6759
    %v6780 = vmul.f32 %v3430, %v6760
    %v6781 = vmul.f32 %v3430, %v6761
    %v6782 = vmul.f32 %v3430, %v6762
    %v6783 = vmul.f32 %v3435, %v6763
    %v6784 = vmul.f32 %v3435, %v6764
    %v6785 = vmul.f32 %v3435, %v6765
    %v6786 = vmul.f32 %v3435, %v6766
    %v6787 = vadd.f32 %v74, %v6767
    %v6788 = vadd.f32 %v75, %v6768
    %v6789 = vadd.f32 %v76, %v6769
    %v6790 = vadd.f32 %v77, %v6770
    %v6791 = vadd.f32 %v78, %v6771
    %v6792 = vadd.f32 %v79, %v6772
    %v6793 = vadd.f32 %v80, %v6773
    %v6794 = vadd.f32 %v81, %v6774
    %v6795 = vadd.f32 %v82, %v6775
    %v6796 = vadd.f32 %v83, %v6776
    %v6797 = vadd.f32 %v84, %v6777
    %v6798 = vadd.f32 %v85, %v6778
    %v6799 = vadd.f32 %v86, %v6779
    %v6800 = vadd.f32 %v87, %v6780
    %v6801 = vadd.f32 %v88, %v6781
    %v6802 = vadd.f32 %v89, %v6782
    %v6803 = vadd.f32 %v90, %v6783
    %v6804 = vadd.f32 %v91, %v6784
    %v6805 = vadd.f32 %v92, %v6785
    %v6806 = vadd.f32 %v93, %v6786
    %6807 = vst [vmem:[%s6] sm:$0xff] %v6787
    %6808 = vst [vmem:[%s6 + $0x8] sm:$0xff] %v6788
    %6809 = vst [vmem:[%s6 + $0x10] sm:$0xff] %v6789
    %6810 = vst [vmem:[%s6 + $0x18] sm:$0xff] %v6790
    %6811 = vst [vmem:[%s6 + $0x20] sm:$0xff] %v6791
    %6812 = vst [vmem:[%s6 + $0x28] sm:$0xff] %v6792
    %6813 = vst [vmem:[%s6 + $0x30] sm:$0xff] %v6793
    %6814 = vst [vmem:[%s6 + $0x38] sm:$0xff] %v6794
    %6815 = vst [vmem:[%s6 + $0x40] sm:$0xff] %v6795
    %6816 = vst [vmem:[%s6 + $0x48] sm:$0xff] %v6796
    %6817 = vst [vmem:[%s6 + $0x50] sm:$0xff] %v6797
    %6818 = vst [vmem:[%s6 + $0x58] sm:$0xff] %v6798
    %6819 = vst [vmem:[%s6 + $0x60] sm:$0xff] %v6799
    %6820 = vst [vmem:[%s6 + $0x68] sm:$0xff] %v6800
    %6821 = vst [vmem:[%s6 + $0x70] sm:$0xff] %v6801
    %6822 = vst [vmem:[%s6 + $0x78] sm:$0xff] %v6802
    %6823 = vst [vmem:[%s6 + $0x80] sm:$0xf] %v6803
    %6824 = vst [vmem:[%s6 + $0x88] sm:$0xf] %v6804
    %6825 = vst [vmem:[%s6 + $0x90] sm:$0xf] %v6805
    %6826 = vst [vmem:[%s6 + $0x98] sm:$0xf] %v6806
    // Predicated region
    $region42: #{resblock_nchw.1} parent=1 // pred_check
      _
    $region43: #{resblock_nchw.1} parent=1 // pred_check_branch
      %6828 = sbr.rel (0) target = $region45
    $region44: #{resblock_nchw.1} parent=1 // pred_region
      _
    $region45: #{resblock_nchw.1} parent=1 // pred_fallthru
      _
    // Predicated region
    $region46: #{resblock_nchw.1} parent=1 // pred_check
      _
    $region47: #{resblock_nchw.1} parent=1 // pred_check_branch
      %6830 = sbr.rel (0) target = $region49
    $region48: #{resblock_nchw.1} parent=1 // pred_region
      _
    $region49: #{resblock_nchw.1} parent=1 // pred_fallthru
      _
    %6831 = vsyncpa [#allocation3], 1
    %6832 = vsyncpa [#allocation5], 1
    %6833 = vsyncpa [#allocation8], 1

</llo_original>
